<compile_context>
chip_gen: v5e
topology: v5e:2x2
jax: 0.10.0
libtpu: 0.0.40
codegen_flags: <defaults>
</compile_context>

<pallas_src>
import functools

import jax
import jax.numpy as jnp
import numpy as np
from jax.experimental import pallas as pl
from jax.experimental.pallas import tpu as pltpu

_BN_EPS = 1e-5
_IM2COL_MAX_CIN = 64          # below: im2col big-K matmul; at/above: 9 acc matmuls
_DIRATES = (1, 1, 2, 4, 8, 4, 2, 1)
_STAGE_NAMES = ("in", "1", "2", "3", "4", "3d", "2d", "1d")


# ----------------------------------------------------------------------------
# Fused Pallas kernel: the whole RSU4F forward for one image per grid step.
# ----------------------------------------------------------------------------
def _rsu4f_kernel(*refs, H, W, halo):
    """Channels on sublanes, flattened pixels (H*W) on lanes.

    refs = (x, w_in, b_in, w1, b1, ..., w1d, b1d, o,
            s_in, s1, s2, s3, s4, s3d, s2d, pad, col)
      x        : (1, Cin, HW)   bf16 input image
      w_*      : (Cout, 9*cin)  bf16 BN-folded weights (tap-major K)
      b_*      : (Cout, 1)      f32  BN-folded bias
      o        : (1, Cout, HW)  f32  output (x_1d + x_in)
      s_*      : (C, HW)        bf16 VMEM-resident stage activations
      pad      : (cin_max, HW + 2*halo) bf16 flat halo buffer
      col      : (9*cin_im2col_max, HW) bf16 im2col buffer (tiny-cin path)
    """
    HW = H * W
    (x_ref,
     w_in, b_in, w1, b1, w2, b2, w3, b3, w4, b4,
     w3d, b3d, w2d, b2d, w1d, b1d,
     o_ref,
     s_in, s1, s2, s3, s4, s3d, s2d,
     pad_ref, col_ref) = refs

    # Zero ONLY the two halo column bands (the interior rows are always fully
    # overwritten before each read).  Done every grid step so correctness does
    # not depend on scratch persistence when the batch axis is core-sharded.
    zero_h = jnp.zeros((pad_ref.shape[0], halo), jnp.bfloat16)
    pad_ref[:, 0:halo] = zero_h
    pad_ref[:, halo + HW:halo + HW + halo] = zero_h

    # Single-row column index; masks broadcast inside jnp.where.
    col_idx = jax.lax.broadcasted_iota(jnp.int32, (1, HW), 1) % W

    def stage(srcs, w_ref, b_ref, d):
        """One REBNCONVp: fused pad+concat + dilated 3x3 conv + BN + ReLU.

        srcs: list of (c, HW) bf16 arrays (len > 1 == fused channel concat).
        Returns the (cout, HW) f32 activation.
        """
        cins = [int(s.shape[0]) for s in srcs]
        cin_t = sum(cins)
        assert halo >= d * (W + 1)   # flat-shift halo must cover the max tap shift

        # 1) fused zero-pad + channel-concat into the flat halo buffer.
        c0 = 0
        for s, c in zip(srcs, cins):
            pad_ref[c0:c0 + c, halo:halo + HW] = s.astype(jnp.bfloat16)
            c0 += c

        mask_l = col_idx >= d          # tap dx == 0 reads column x - d
        mask_r = col_idx < (W - d)     # tap dx == 2 reads column x + d

        def tap(k):
            dy, dx = k // 3, k % 3
            off = (dy - 1) * d * W + (dx - 1) * d
            xs = pad_ref[0:cin_t, halo + off:halo + off + HW]
            if dx == 0:
                xs = jnp.where(mask_l, xs, jnp.zeros_like(xs))
            elif dx == 2:
                xs = jnp.where(mask_r, xs, jnp.zeros_like(xs))
            return xs

        # 2-3) conv as MXU matmul(s): bf16 operands, f32 accumulate.
        if cin_t < _IM2COL_MAX_CIN:
            # Tiny K per tap: stack the 9 taps along K -> one big-K matmul.
            for k in range(9):
                col_ref[k * cin_t:(k + 1) * cin_t, :] = tap(k)
            acc = jnp.dot(w_ref[...], col_ref[0:9 * cin_t, :],
                          preferred_element_type=jnp.float32)
        else:
            # Production channel counts: K = cin_t already fills the MXU;
            # accumulate 9 matmuls straight off the halo buffer (no col scratch).
            acc = jnp.dot(w_ref[:, 0:cin_t], tap(0),
                          preferred_element_type=jnp.float32)
            for k in range(1, 9):
                acc = acc + jnp.dot(w_ref[:, k * cin_t:(k + 1) * cin_t], tap(k),
                                    preferred_element_type=jnp.float32)

        # 4) f32 epilogue: folded-BN bias + ReLU.
        return jnp.maximum(acc + b_ref[...], 0.0)

    # --- the 8 REBNCONVp stages, all VMEM-resident ---
    s_in[...] = stage([x_ref[0]], w_in, b_in, 1).astype(jnp.bfloat16)
    s1[...] = stage([s_in[...]], w1, b1, 1).astype(jnp.bfloat16)
    s2[...] = stage([s1[...]], w2, b2, 2).astype(jnp.bfloat16)
    s3[...] = stage([s2[...]], w3, b3, 4).astype(jnp.bfloat16)
    s4[...] = stage([s3[...]], w4, b4, 8).astype(jnp.bfloat16)
    s3d[...] = stage([s4[...], s3[...]], w3d, b3d, 4).astype(jnp.bfloat16)   # concat
    s2d[...] = stage([s3d[...], s2[...]], w2d, b2d, 2).astype(jnp.bfloat16)  # concat
    y1d = stage([s2d[...], s1[...]], w1d, b1d, 1)                            # concat
    # Fused residual add (x_1d + x_in), f32 output.
    o_ref[0] = (y1d + s_in[...].astype(jnp.float32)).astype(o_ref.dtype)


# ----------------------------------------------------------------------------
# Deterministic parameter construction (conv + BN folded, im2col weight layout).
# ----------------------------------------------------------------------------
def init_rebnconv(key, in_ch, out_ch):
    k1, k2, k3, k4 = jax.random.split(key, 4)
    w = 0.1 * jax.random.normal(k1, (3, 3, in_ch, out_ch), jnp.float32)   # HWIO
    bias = 0.1 * jax.random.normal(k2, (out_ch,), jnp.float32)
    gamma = 1.0 + 0.1 * jax.random.normal(k3, (out_ch,), jnp.float32)
    beta = 0.1 * jax.random.normal(k4, (out_ch,), jnp.float32)
    running_mean = jnp.zeros((out_ch,), jnp.float32)
    running_var = jnp.ones((out_ch,), jnp.float32)

    scale = gamma / jnp.sqrt(running_var + _BN_EPS)
    w_fold = w * scale[None, None, None, :]                  # (3,3,Cin,Cout)
    b_fold = (bias - running_mean) * scale + beta            # (Cout,)

    # Tap-major / channel-minor K layout for the im2col matmul: (Cout, 9*Cin).
    w_mat = jnp.transpose(w_fold.reshape(9, in_ch, out_ch),
                          (2, 0, 1)).reshape(out_ch, 9 * in_ch)
    return w_mat.astype(jnp.bfloat16), b_fold.reshape(out_ch, 1)


def init_rsu4f(key, in_ch, mid_ch, out_ch):
    names_specs = [
        ("in", in_ch, out_ch), ("1", out_ch, mid_ch), ("2", mid_ch, mid_ch),
        ("3", mid_ch, mid_ch), ("4", mid_ch, mid_ch),
        ("3d", 2 * mid_ch, mid_ch), ("2d", 2 * mid_ch, mid_ch),
        ("1d", 2 * mid_ch, out_ch),
    ]
    keys = jax.random.split(key, len(names_specs))
    return {name: init_rebnconv(k, ci, co)
            for k, (name, ci, co) in zip(keys, names_specs)}


# ----------------------------------------------------------------------------
# RSU4F forward (NCHW in / NCHW out, matching the PyTorch module).
# ----------------------------------------------------------------------------
def rsu4f_forward(x_nchw, params):
    N, C, H, W = map(int, x_nchw.shape)
    HW = H * W
    # TODO(synk): for resolutions where H*W is not a multiple of 128, pad the
    # flattened pixel axis to the next multiple of 128 and mask the tail so
    # output stores stay lane-dense.
    assert HW % 128 == 0

    out_ch = int(params["in"][0].shape[0])
    mid_ch = int(params["1"][0].shape[0])
    in_ch = int(params["in"][0].shape[1]) // 9
    assert in_ch == C

    max_d = max(_DIRATES)
    halo = -(-(max_d * (W + 1)) // 128) * 128        # lane-aligned flat halo
    assert halo >= max_d * (W + 1)

    cin_list = [in_ch, out_ch, mid_ch, mid_ch, mid_ch,
                2 * mid_ch, 2 * mid_ch, 2 * mid_ch]
    cout_list = [out_ch, mid_ch, mid_ch, mid_ch, mid_ch,
                 mid_ch, mid_ch, out_ch]
    cin_max = max(cin_list)
    im2col_cins = [c for c in cin_list if c < _IM2COL_MAX_CIN]
    col_rows = 9 * max(im2col_cins) if im2col_cins else 8

    x = x_nchw.reshape(N, C, HW).astype(jnp.bfloat16)      # lane-dense layout

    inputs = [x]
    in_specs = [pl.BlockSpec((1, C, HW), lambda n: (n, 0, 0))]
    flops = 0
    bytes_accessed = x.size * 2 + N * out_ch * HW * 4
    for name, cin, cout in zip(_STAGE_NAMES, cin_list, cout_list):
        w, b = params[name]
        assert w.shape == (cout, 9 * cin) and b.shape == (cout, 1)
        inputs += [w, b]
        in_specs += [
            pl.BlockSpec((cout, 9 * cin), lambda n: (0, 0)),
            pl.BlockSpec((cout, 1), lambda n: (0, 0)),
        ]
        flops += 2 * cout * 9 * cin * HW * N
        bytes_accessed += w.size * 2 + b.size * 4

    scratch_shapes = (
        [pltpu.VMEM((c, HW), jnp.bfloat16)
         for c in (out_ch, mid_ch, mid_ch, mid_ch, mid_ch, mid_ch, mid_ch)]
        + [pltpu.VMEM((cin_max, HW + 2 * halo), jnp.bfloat16),   # halo buffer
           pltpu.VMEM((col_rows, HW), jnp.bfloat16)]             # im2col buffer
    )

    kernel = functools.partial(_rsu4f_kernel, H=H, W=W, halo=halo)

    out = pl.pallas_call(
        kernel,
        out_shape=jax.ShapeDtypeStruct((N, out_ch, HW), jnp.float32),
        grid_spec=pltpu.PrefetchScalarGridSpec(
            num_scalar_prefetch=0,
            grid=(N,),
            in_specs=in_specs,
            out_specs=pl.BlockSpec((1, out_ch, HW), lambda n: (n, 0, 0)),
            scratch_shapes=scratch_shapes,
        ),
        compiler_params=pltpu.CompilerParams(
            dimension_semantics=("parallel",),
            vmem_limit_bytes=32 * 1024 * 1024),
        cost_estimate=pl.CostEstimate(
            flops=flops, transcendentals=0, bytes_accessed=bytes_accessed),
    )(*inputs)
    return out.reshape(N, out_ch, H, W)


# ----------------------------------------------------------------------------
# Pure-JAX reference (lax conv, same bf16-storage numerics) for correctness.
# ----------------------------------------------------------------------------
def _rebnconv_ref(x_list, params, dirate):
    x = jnp.concatenate(x_list, axis=1) if len(x_list) > 1 else x_list[0]
    w_mat, b = params
    cout, cin = int(w_mat.shape[0]), int(x.shape[1])
    w_hwio = (w_mat.astype(jnp.float32).reshape(cout, 9, cin)
              .transpose(1, 2, 0).reshape(3, 3, cin, cout))
    y = jax.lax.conv_general_dilated(
        x, w_hwio, window_strides=(1, 1),
        padding=[(dirate, dirate), (dirate, dirate)],
        rhs_dilation=(dirate, dirate),
        dimension_numbers=("NCHW", "HWIO", "NCHW"))
    return jnp.maximum(y + b.reshape(1, cout, 1, 1), 0.0)


def _rsu4f_ref(x_nchw, params):
    store = lambda t: t.astype(jnp.bfloat16).astype(jnp.float32)  # bf16 storage
    x = store(x_nchw)
    hxin = store(_rebnconv_ref([x], params["in"], 1))
    hx1 = store(_rebnconv_ref([hxin], params["1"], 1))
    hx2 = store(_rebnconv_ref([hx1], params["2"], 2))
    hx3 = store(_rebnconv_ref([hx2], params["3"], 4))
    hx4 = store(_rebnconv_ref([hx3], params["4"], 8))
    hx3d = store(_rebnconv_ref([hx4, hx3], params["3d"], 4))
    hx2d = store(_rebnconv_ref([hx3d, hx2], params["2d"], 2))
    hx1d = _rebnconv_ref([hx2d, hx1], params["1d"], 1)
    return hx1d + hxin


if __name__ == "__main__":
    N, IN_CH, MID_CH, OUT_CH, H, W = 2, 4, 8, 4, 16, 16

    root = jax.random.PRNGKey(0)
    kx, kp = jax.random.split(root)
    x = jax.random.normal(kx, (N, IN_CH, H, W), jnp.float32)     # NCHW input
    params = init_rsu4f(kp, IN_CH, MID_CH, OUT_CH)

    out = jax.block_until_ready(jax.jit(rsu4f_forward)(x, params))
    ref = jax.block_until_ready(_rsu4f_ref(x, params))

    assert out.shape == (N, OUT_CH, H, W)
    np.testing.assert_allclose(np.asarray(out), np.asarray(ref),
                               rtol=2e-2, atol=2e-2)
    print("KERNEL_OK")
</pallas_src>

<mosaic_0001>
module attributes {stable_mosaic.version = 11 : i64} {
  func.func @_rsu4f_kernel(%arg0: i32, %arg1: memref<1x4x256xbf16, #tpu.memory_space<vmem>>, %arg2: memref<4x36xbf16, #tpu.memory_space<vmem>>, %arg3: memref<4x1xf32, #tpu.memory_space<vmem>>, %arg4: memref<8x36xbf16, #tpu.memory_space<vmem>>, %arg5: memref<8x1xf32, #tpu.memory_space<vmem>>, %arg6: memref<8x72xbf16, #tpu.memory_space<vmem>>, %arg7: memref<8x1xf32, #tpu.memory_space<vmem>>, %arg8: memref<8x72xbf16, #tpu.memory_space<vmem>>, %arg9: memref<8x1xf32, #tpu.memory_space<vmem>>, %arg10: memref<8x72xbf16, #tpu.memory_space<vmem>>, %arg11: memref<8x1xf32, #tpu.memory_space<vmem>>, %arg12: memref<8x144xbf16, #tpu.memory_space<vmem>>, %arg13: memref<8x1xf32, #tpu.memory_space<vmem>>, %arg14: memref<8x144xbf16, #tpu.memory_space<vmem>>, %arg15: memref<8x1xf32, #tpu.memory_space<vmem>>, %arg16: memref<4x144xbf16, #tpu.memory_space<vmem>>, %arg17: memref<4x1xf32, #tpu.memory_space<vmem>>, %arg18: memref<1x4x256xf32, #tpu.memory_space<vmem>>, %arg19: memref<4x256xbf16, #tpu.memory_space<vmem>>, %arg20: memref<8x256xbf16, #tpu.memory_space<vmem>>, %arg21: memref<8x256xbf16, #tpu.memory_space<vmem>>, %arg22: memref<8x256xbf16, #tpu.memory_space<vmem>>, %arg23: memref<8x256xbf16, #tpu.memory_space<vmem>>, %arg24: memref<8x256xbf16, #tpu.memory_space<vmem>>, %arg25: memref<8x256xbf16, #tpu.memory_space<vmem>>, %arg26: memref<16x768xbf16, #tpu.memory_space<vmem>>, %arg27: memref<144x256xbf16, #tpu.memory_space<vmem>>) attributes {dimension_semantics = [#tpu.dimension_semantics<parallel>], iteration_bounds = array<i64: 2>, scalar_prefetch = 0 : i64, scratch_operands = 9 : i64, tpu.core_type = #tpu.core_type<tc>, window_params = [{transform_indices = @transform_0, window_bounds = array<i64: 1, 4, 256>}, {pipeline_mode = #tpu.pipeline_mode<synchronous>, transform_indices = @transform_1, window_bounds = array<i64: 4, 36>}, {pipeline_mode = #tpu.pipeline_mode<synchronous>, transform_indices = @transform_2, window_bounds = array<i64: 4, 1>}, {pipeline_mode = #tpu.pipeline_mode<synchronous>, transform_indices = @transform_3, window_bounds = array<i64: 8, 36>}, {pipeline_mode = #tpu.pipeline_mode<synchronous>, transform_indices = @transform_4, window_bounds = array<i64: 8, 1>}, {pipeline_mode = #tpu.pipeline_mode<synchronous>, transform_indices = @transform_5, window_bounds = array<i64: 8, 72>}, {pipeline_mode = #tpu.pipeline_mode<synchronous>, transform_indices = @transform_6, window_bounds = array<i64: 8, 1>}, {pipeline_mode = #tpu.pipeline_mode<synchronous>, transform_indices = @transform_7, window_bounds = array<i64: 8, 72>}, {pipeline_mode = #tpu.pipeline_mode<synchronous>, transform_indices = @transform_8, window_bounds = array<i64: 8, 1>}, {pipeline_mode = #tpu.pipeline_mode<synchronous>, transform_indices = @transform_9, window_bounds = array<i64: 8, 72>}, {pipeline_mode = #tpu.pipeline_mode<synchronous>, transform_indices = @transform_10, window_bounds = array<i64: 8, 1>}, {pipeline_mode = #tpu.pipeline_mode<synchronous>, transform_indices = @transform_11, window_bounds = array<i64: 8, 144>}, {pipeline_mode = #tpu.pipeline_mode<synchronous>, transform_indices = @transform_12, window_bounds = array<i64: 8, 1>}, {pipeline_mode = #tpu.pipeline_mode<synchronous>, transform_indices = @transform_13, window_bounds = array<i64: 8, 144>}, {pipeline_mode = #tpu.pipeline_mode<synchronous>, transform_indices = @transform_14, window_bounds = array<i64: 8, 1>}, {pipeline_mode = #tpu.pipeline_mode<synchronous>, transform_indices = @transform_15, window_bounds = array<i64: 4, 144>}, {pipeline_mode = #tpu.pipeline_mode<synchronous>, transform_indices = @transform_16, window_bounds = array<i64: 4, 1>}, {transform_indices = @transform_17, window_bounds = array<i64: 1, 4, 256>}]} {
    %cst = arith.constant 0.000000e+00 : bf16
    %0 = vector.broadcast %cst : bf16 to vector<16x256xbf16>
    %c0 = arith.constant 0 : index
    %c0_0 = arith.constant 0 : index
    %1 = vector.load %arg26[%c0, %c0_0] : memref<16x768xbf16, #tpu.memory_space<vmem>>, vector<16x256xbf16>
    tpu.vector_store %arg26[%c0, %c0_0], %0 {strides = array<i32>} : memref<16x768xbf16, #tpu.memory_space<vmem>>, vector<16x256xbf16>,
    %c0_1 = arith.constant 0 : index
    %c512 = arith.constant 512 : index
    %2 = vector.load %arg26[%c0_1, %c512] : memref<16x768xbf16, #tpu.memory_space<vmem>>, vector<16x256xbf16>
    tpu.vector_store %arg26[%c0_1, %c512], %0 {strides = array<i32>} : memref<16x768xbf16, #tpu.memory_space<vmem>>, vector<16x256xbf16>,
    %3 = tpu.iota {dimensions = array<i32: 1>} : vector<1x256xi32>
    %c16_i32 = arith.constant 16 : i32
    %c0_i32 = arith.constant 0 : i32
    %4 = arith.cmpi eq, %c16_i32, %c0_i32 : i32
    %c1_i32 = arith.constant 1 : i32
    %5 = arith.select %4, %c1_i32, %c16_i32 : i32
    %6 = vector.broadcast %5 : i32 to vector<1x256xi32>
    %7 = arith.remsi %3, %6 : vector<1x256xi32>
    %c0_i32_2 = arith.constant 0 : i32
    %8 = vector.broadcast %c0_i32_2 : i32 to vector<1x256xi32>
    %9 = arith.cmpi ne, %7, %8 : vector<1x256xi32>
    %c0_i32_3 = arith.constant 0 : i32
    %10 = vector.broadcast %c0_i32_3 : i32 to vector<1x256xi32>
    %11 = arith.cmpi slt, %7, %10 : vector<1x256xi32>
    %c0_i32_4 = arith.constant 0 : i32
    %12 = arith.cmpi slt, %5, %c0_i32_4 : i32
    %13 = vector.broadcast %12 : i1 to vector<1x256xi1>
    %14 = vector.broadcast %13 : vector<1x256xi1> to vector<1x256xi1>
    %15 = arith.xori %11, %14 : vector<1x256xi1>
    %16 = arith.andi %15, %9 : vector<1x256xi1>
    %17 = vector.broadcast %5 : i32 to vector<1x256xi32>
    %18 = arith.addi %7, %17 : vector<1x256xi32>
    %19 = arith.select %16, %18, %7 : vector<1x256xi1>, vector<1x256xi32>
    %c0_5 = arith.constant 0 : index
    %c0_6 = arith.constant 0 : index
    %c0_7 = arith.constant 0 : index
    %20 = vector.load %arg1[%c0_5, %c0_6, %c0_7] : memref<1x4x256xbf16, #tpu.memory_space<vmem>>, vector<1x4x256xbf16>
    %21 = vector.shape_cast %20 : vector<1x4x256xbf16> to vector<4x256xbf16>
    %c0_8 = arith.constant 0 : index
    %c256 = arith.constant 256 : index
    %22 = vector.load %arg26[%c0_8, %c256] : memref<16x768xbf16, #tpu.memory_space<vmem>>, vector<4x256xbf16>
    tpu.vector_store %arg26[%c0_8, %c256], %21 {strides = array<i32>} : memref<16x768xbf16, #tpu.memory_space<vmem>>, vector<4x256xbf16>,
    %c1_i32_9 = arith.constant 1 : i32
    %23 = vector.broadcast %c1_i32_9 : i32 to vector<1x256xi32>
    %24 = arith.cmpi sge, %19, %23 : vector<1x256xi32>
    %c15_i32 = arith.constant 15 : i32
    %25 = vector.broadcast %c15_i32 : i32 to vector<1x256xi32>
    %26 = arith.cmpi slt, %19, %25 : vector<1x256xi32>
    %c0_10 = arith.constant 0 : index
    %c239 = arith.constant 239 : index
    %27 = vector.load %arg26[%c0_10, %c239] : memref<16x768xbf16, #tpu.memory_space<vmem>>, vector<4x256xbf16>
    %cst_11 = arith.constant 0.000000e+00 : bf16
    %28 = vector.broadcast %cst_11 : bf16 to vector<4x256xbf16>
    %29 = vector.shape_cast %24 : vector<1x256xi1> to vector<1x256xi1>
    %30 = vector.broadcast %29 : vector<1x256xi1> to vector<4x256xi1>
    %31 = arith.select %30, %27, %28 : vector<4x256xi1>, vector<4x256xbf16>
    %c0_12 = arith.constant 0 : index
    %c0_13 = arith.constant 0 : index
    %32 = vector.load %arg27[%c0_12, %c0_13] : memref<144x256xbf16, #tpu.memory_space<vmem>>, vector<4x256xbf16>
    tpu.vector_store %arg27[%c0_12, %c0_13], %31 {strides = array<i32>} : memref<144x256xbf16, #tpu.memory_space<vmem>>, vector<4x256xbf16>,
    %c0_14 = arith.constant 0 : index
    %c240 = arith.constant 240 : index
    %33 = vector.load %arg26[%c0_14, %c240] : memref<16x768xbf16, #tpu.memory_space<vmem>>, vector<4x256xbf16>
    %c4 = arith.constant 4 : index
    %c0_15 = arith.constant 0 : index
    %34 = vector.load %arg27[%c4, %c0_15] : memref<144x256xbf16, #tpu.memory_space<vmem>>, vector<4x256xbf16>
    tpu.vector_store %arg27[%c4, %c0_15], %33 {strides = array<i32>} : memref<144x256xbf16, #tpu.memory_space<vmem>>, vector<4x256xbf16>,
    %c0_16 = arith.constant 0 : index
    %c241 = arith.constant 241 : index
    %35 = vector.load %arg26[%c0_16, %c241] : memref<16x768xbf16, #tpu.memory_space<vmem>>, vector<4x256xbf16>
    %cst_17 = arith.constant 0.000000e+00 : bf16
    %36 = vector.broadcast %cst_17 : bf16 to vector<4x256xbf16>
    %37 = vector.shape_cast %26 : vector<1x256xi1> to vector<1x256xi1>
    %38 = vector.broadcast %37 : vector<1x256xi1> to vector<4x256xi1>
    %39 = arith.select %38, %35, %36 : vector<4x256xi1>, vector<4x256xbf16>
    %c8 = arith.constant 8 : index
    %c0_18 = arith.constant 0 : index
    %40 = vector.load %arg27[%c8, %c0_18] : memref<144x256xbf16, #tpu.memory_space<vmem>>, vector<4x256xbf16>
    tpu.vector_store %arg27[%c8, %c0_18], %39 {strides = array<i32>} : memref<144x256xbf16, #tpu.memory_space<vmem>>, vector<4x256xbf16>,
    %c0_19 = arith.constant 0 : index
    %c255 = arith.constant 255 : index
    %41 = vector.load %arg26[%c0_19, %c255] : memref<16x768xbf16, #tpu.memory_space<vmem>>, vector<4x256xbf16>
    %cst_20 = arith.constant 0.000000e+00 : bf16
    %42 = vector.broadcast %cst_20 : bf16 to vector<4x256xbf16>
    %43 = vector.shape_cast %24 : vector<1x256xi1> to vector<1x256xi1>
    %44 = vector.broadcast %43 : vector<1x256xi1> to vector<4x256xi1>
    %45 = arith.select %44, %41, %42 : vector<4x256xi1>, vector<4x256xbf16>
    %c12 = arith.constant 12 : index
    %c0_21 = arith.constant 0 : index
    %46 = vector.load %arg27[%c12, %c0_21] : memref<144x256xbf16, #tpu.memory_space<vmem>>, vector<4x256xbf16>
    tpu.vector_store %arg27[%c12, %c0_21], %45 {strides = array<i32>} : memref<144x256xbf16, #tpu.memory_space<vmem>>, vector<4x256xbf16>,
    %c0_22 = arith.constant 0 : index
    %c256_23 = arith.constant 256 : index
    %47 = vector.load %arg26[%c0_22, %c256_23] : memref<16x768xbf16, #tpu.memory_space<vmem>>, vector<4x256xbf16>
    %c16 = arith.constant 16 : index
    %c0_24 = arith.constant 0 : index
    %48 = vector.load %arg27[%c16, %c0_24] : memref<144x256xbf16, #tpu.memory_space<vmem>>, vector<4x256xbf16>
    tpu.vector_store %arg27[%c16, %c0_24], %47 {strides = array<i32>} : memref<144x256xbf16, #tpu.memory_space<vmem>>, vector<4x256xbf16>,
    %c0_25 = arith.constant 0 : index
    %c257 = arith.constant 257 : index
    %49 = vector.load %arg26[%c0_25, %c257] : memref<16x768xbf16, #tpu.memory_space<vmem>>, vector<4x256xbf16>
    %cst_26 = arith.constant 0.000000e+00 : bf16
    %50 = vector.broadcast %cst_26 : bf16 to vector<4x256xbf16>
    %51 = vector.shape_cast %26 : vector<1x256xi1> to vector<1x256xi1>
    %52 = vector.broadcast %51 : vector<1x256xi1> to vector<4x256xi1>
    %53 = arith.select %52, %49, %50 : vector<4x256xi1>, vector<4x256xbf16>
    %c20 = arith.constant 20 : index
    %c0_27 = arith.constant 0 : index
    %54 = vector.load %arg27[%c20, %c0_27] : memref<144x256xbf16, #tpu.memory_space<vmem>>, vector<4x256xbf16>
    tpu.vector_store %arg27[%c20, %c0_27], %53 {strides = array<i32>} : memref<144x256xbf16, #tpu.memory_space<vmem>>, vector<4x256xbf16>,
    %c0_28 = arith.constant 0 : index
    %c271 = arith.constant 271 : index
    %55 = vector.load %arg26[%c0_28, %c271] : memref<16x768xbf16, #tpu.memory_space<vmem>>, vector<4x256xbf16>
    %cst_29 = arith.constant 0.000000e+00 : bf16
    %56 = vector.broadcast %cst_29 : bf16 to vector<4x256xbf16>
    %57 = vector.shape_cast %24 : vector<1x256xi1> to vector<1x256xi1>
    %58 = vector.broadcast %57 : vector<1x256xi1> to vector<4x256xi1>
    %59 = arith.select %58, %55, %56 : vector<4x256xi1>, vector<4x256xbf16>
    %c24 = arith.constant 24 : index
    %c0_30 = arith.constant 0 : index
    %60 = vector.load %arg27[%c24, %c0_30] : memref<144x256xbf16, #tpu.memory_space<vmem>>, vector<4x256xbf16>
    tpu.vector_store %arg27[%c24, %c0_30], %59 {strides = array<i32>} : memref<144x256xbf16, #tpu.memory_space<vmem>>, vector<4x256xbf16>,
    %c0_31 = arith.constant 0 : index
    %c272 = arith.constant 272 : index
    %61 = vector.load %arg26[%c0_31, %c272] : memref<16x768xbf16, #tpu.memory_space<vmem>>, vector<4x256xbf16>
    %c28 = arith.constant 28 : index
    %c0_32 = arith.constant 0 : index
    %62 = vector.load %arg27[%c28, %c0_32] : memref<144x256xbf16, #tpu.memory_space<vmem>>, vector<4x256xbf16>
    tpu.vector_store %arg27[%c28, %c0_32], %61 {strides = array<i32>} : memref<144x256xbf16, #tpu.memory_space<vmem>>, vector<4x256xbf16>,
    %c0_33 = arith.constant 0 : index
    %c273 = arith.constant 273 : index
    %63 = vector.load %arg26[%c0_33, %c273] : memref<16x768xbf16, #tpu.memory_space<vmem>>, vector<4x256xbf16>
    %cst_34 = arith.constant 0.000000e+00 : bf16
    %64 = vector.broadcast %cst_34 : bf16 to vector<4x256xbf16>
    %65 = vector.shape_cast %26 : vector<1x256xi1> to vector<1x256xi1>
    %66 = vector.broadcast %65 : vector<1x256xi1> to vector<4x256xi1>
    %67 = arith.select %66, %63, %64 : vector<4x256xi1>, vector<4x256xbf16>
    %c32 = arith.constant 32 : index
    %c0_35 = arith.constant 0 : index
    %68 = vector.load %arg27[%c32, %c0_35] : memref<144x256xbf16, #tpu.memory_space<vmem>>, vector<4x256xbf16>
    tpu.vector_store %arg27[%c32, %c0_35], %67 {strides = array<i32>} : memref<144x256xbf16, #tpu.memory_space<vmem>>, vector<4x256xbf16>,
    %c0_36 = arith.constant 0 : index
    %c0_37 = arith.constant 0 : index
    %69 = vector.load %arg2[%c0_36, %c0_37] : memref<4x36xbf16, #tpu.memory_space<vmem>>, vector<4x36xbf16>
    %c0_38 = arith.constant 0 : index
    %c0_39 = arith.constant 0 : index
    %70 = vector.load %arg27[%c0_38, %c0_39] : memref<144x256xbf16, #tpu.memory_space<vmem>>, vector<36x256xbf16>
    %cst_40 = arith.constant dense<0.000000e+00> : vector<4x256xf32>
    %71 = tpu.matmul %69, %70, %cst_40 {dimension_numbers = #tpu.dot_dimension_numbers<[1], [0], [0], [1], [0, 0, 1, 1], [], []>} : vector<4x36xbf16>, vector<36x256xbf16>, vector<4x256xf32> -> vector<4x256xf32>
    %c0_41 = arith.constant 0 : index
    %c0_42 = arith.constant 0 : index
    %72 = vector.load %arg3[%c0_41, %c0_42] : memref<4x1xf32, #tpu.memory_space<vmem>>, vector<4x1xf32>
    %73 = vector.broadcast %72 : vector<4x1xf32> to vector<4x256xf32>
    %74 = arith.addf %71, %73 : vector<4x256xf32>
    %cst_43 = arith.constant 0.000000e+00 : f32
    %75 = vector.broadcast %cst_43 : f32 to vector<4x256xf32>
    %76 = arith.maximumf %74, %75 : vector<4x256xf32>
    %77 = arith.truncf %76 : vector<4x256xf32> to vector<4x256xbf16>
    %c0_44 = arith.constant 0 : index
    %c0_45 = arith.constant 0 : index
    %78 = vector.load %arg19[%c0_44, %c0_45] : memref<4x256xbf16, #tpu.memory_space<vmem>>, vector<4x256xbf16>
    tpu.vector_store %arg19[%c0_44, %c0_45], %77 {strides = array<i32>} : memref<4x256xbf16, #tpu.memory_space<vmem>>, vector<4x256xbf16>,
    %c0_46 = arith.constant 0 : index
    %c0_47 = arith.constant 0 : index
    %79 = vector.load %arg19[%c0_46, %c0_47] : memref<4x256xbf16, #tpu.memory_space<vmem>>, vector<4x256xbf16>
    %c0_48 = arith.constant 0 : index
    %c256_49 = arith.constant 256 : index
    %80 = vector.load %arg26[%c0_48, %c256_49] : memref<16x768xbf16, #tpu.memory_space<vmem>>, vector<4x256xbf16>
    tpu.vector_store %arg26[%c0_48, %c256_49], %79 {strides = array<i32>} : memref<16x768xbf16, #tpu.memory_space<vmem>>, vector<4x256xbf16>,
    %c1_i32_50 = arith.constant 1 : i32
    %81 = vector.broadcast %c1_i32_50 : i32 to vector<1x256xi32>
    %82 = arith.cmpi sge, %19, %81 : vector<1x256xi32>
    %c15_i32_51 = arith.constant 15 : i32
    %83 = vector.broadcast %c15_i32_51 : i32 to vector<1x256xi32>
    %84 = arith.cmpi slt, %19, %83 : vector<1x256xi32>
    %c0_52 = arith.constant 0 : index
    %c239_53 = arith.constant 239 : index
    %85 = vector.load %arg26[%c0_52, %c239_53] : memref<16x768xbf16, #tpu.memory_space<vmem>>, vector<4x256xbf16>
    %cst_54 = arith.constant 0.000000e+00 : bf16
    %86 = vector.broadcast %cst_54 : bf16 to vector<4x256xbf16>
    %87 = vector.shape_cast %82 : vector<1x256xi1> to vector<1x256xi1>
    %88 = vector.broadcast %87 : vector<1x256xi1> to vector<4x256xi1>
    %89 = arith.select %88, %85, %86 : vector<4x256xi1>, vector<4x256xbf16>
    %c0_55 = arith.constant 0 : index
    %c0_56 = arith.constant 0 : index
    %90 = vector.load %arg27[%c0_55, %c0_56] : memref<144x256xbf16, #tpu.memory_space<vmem>>, vector<4x256xbf16>
    tpu.vector_store %arg27[%c0_55, %c0_56], %89 {strides = array<i32>} : memref<144x256xbf16, #tpu.memory_space<vmem>>, vector<4x256xbf16>,
    %c0_57 = arith.constant 0 : index
    %c240_58 = arith.constant 240 : index
    %91 = vector.load %arg26[%c0_57, %c240_58] : memref<16x768xbf16, #tpu.memory_space<vmem>>, vector<4x256xbf16>
    %c4_59 = arith.constant 4 : index
    %c0_60 = arith.constant 0 : index
    %92 = vector.load %arg27[%c4_59, %c0_60] : memref<144x256xbf16, #tpu.memory_space<vmem>>, vector<4x256xbf16>
    tpu.vector_store %arg27[%c4_59, %c0_60], %91 {strides = array<i32>} : memref<144x256xbf16, #tpu.memory_space<vmem>>, vector<4x256xbf16>,
    %c0_61 = arith.constant 0 : index
    %c241_62 = arith.constant 241 : index
    %93 = vector.load %arg26[%c0_61, %c241_62] : memref<16x768xbf16, #tpu.memory_space<vmem>>, vector<4x256xbf16>
    %cst_63 = arith.constant 0.000000e+00 : bf16
    %94 = vector.broadcast %cst_63 : bf16 to vector<4x256xbf16>
    %95 = vector.shape_cast %84 : vector<1x256xi1> to vector<1x256xi1>
    %96 = vector.broadcast %95 : vector<1x256xi1> to vector<4x256xi1>
    %97 = arith.select %96, %93, %94 : vector<4x256xi1>, vector<4x256xbf16>
    %c8_64 = arith.constant 8 : index
    %c0_65 = arith.constant 0 : index
    %98 = vector.load %arg27[%c8_64, %c0_65] : memref<144x256xbf16, #tpu.memory_space<vmem>>, vector<4x256xbf16>
    tpu.vector_store %arg27[%c8_64, %c0_65], %97 {strides = array<i32>} : memref<144x256xbf16, #tpu.memory_space<vmem>>, vector<4x256xbf16>,
    %c0_66 = arith.constant 0 : index
    %c255_67 = arith.constant 255 : index
    %99 = vector.load %arg26[%c0_66, %c255_67] : memref<16x768xbf16, #tpu.memory_space<vmem>>, vector<4x256xbf16>
    %cst_68 = arith.constant 0.000000e+00 : bf16
    %100 = vector.broadcast %cst_68 : bf16 to vector<4x256xbf16>
    %101 = vector.shape_cast %82 : vector<1x256xi1> to vector<1x256xi1>
    %102 = vector.broadcast %101 : vector<1x256xi1> to vector<4x256xi1>
    %103 = arith.select %102, %99, %100 : vector<4x256xi1>, vector<4x256xbf16>
    %c12_69 = arith.constant 12 : index
    %c0_70 = arith.constant 0 : index
    %104 = vector.load %arg27[%c12_69, %c0_70] : memref<144x256xbf16, #tpu.memory_space<vmem>>, vector<4x256xbf16>
    tpu.vector_store %arg27[%c12_69, %c0_70], %103 {strides = array<i32>} : memref<144x256xbf16, #tpu.memory_space<vmem>>, vector<4x256xbf16>,
    %c0_71 = arith.constant 0 : index
    %c256_72 = arith.constant 256 : index
    %105 = vector.load %arg26[%c0_71, %c256_72] : memref<16x768xbf16, #tpu.memory_space<vmem>>, vector<4x256xbf16>
    %c16_73 = arith.constant 16 : index
    %c0_74 = arith.constant 0 : index
    %106 = vector.load %arg27[%c16_73, %c0_74] : memref<144x256xbf16, #tpu.memory_space<vmem>>, vector<4x256xbf16>
    tpu.vector_store %arg27[%c16_73, %c0_74], %105 {strides = array<i32>} : memref<144x256xbf16, #tpu.memory_space<vmem>>, vector<4x256xbf16>,
    %c0_75 = arith.constant 0 : index
    %c257_76 = arith.constant 257 : index
    %107 = vector.load %arg26[%c0_75, %c257_76] : memref<16x768xbf16, #tpu.memory_space<vmem>>, vector<4x256xbf16>
    %cst_77 = arith.constant 0.000000e+00 : bf16
    %108 = vector.broadcast %cst_77 : bf16 to vector<4x256xbf16>
    %109 = vector.shape_cast %84 : vector<1x256xi1> to vector<1x256xi1>
    %110 = vector.broadcast %109 : vector<1x256xi1> to vector<4x256xi1>
    %111 = arith.select %110, %107, %108 : vector<4x256xi1>, vector<4x256xbf16>
    %c20_78 = arith.constant 20 : index
    %c0_79 = arith.constant 0 : index
    %112 = vector.load %arg27[%c20_78, %c0_79] : memref<144x256xbf16, #tpu.memory_space<vmem>>, vector<4x256xbf16>
    tpu.vector_store %arg27[%c20_78, %c0_79], %111 {strides = array<i32>} : memref<144x256xbf16, #tpu.memory_space<vmem>>, vector<4x256xbf16>,
    %c0_80 = arith.constant 0 : index
    %c271_81 = arith.constant 271 : index
    %113 = vector.load %arg26[%c0_80, %c271_81] : memref<16x768xbf16, #tpu.memory_space<vmem>>, vector<4x256xbf16>
    %cst_82 = arith.constant 0.000000e+00 : bf16
    %114 = vector.broadcast %cst_82 : bf16 to vector<4x256xbf16>
    %115 = vector.shape_cast %82 : vector<1x256xi1> to vector<1x256xi1>
    %116 = vector.broadcast %115 : vector<1x256xi1> to vector<4x256xi1>
    %117 = arith.select %116, %113, %114 : vector<4x256xi1>, vector<4x256xbf16>
    %c24_83 = arith.constant 24 : index
    %c0_84 = arith.constant 0 : index
    %118 = vector.load %arg27[%c24_83, %c0_84] : memref<144x256xbf16, #tpu.memory_space<vmem>>, vector<4x256xbf16>
    tpu.vector_store %arg27[%c24_83, %c0_84], %117 {strides = array<i32>} : memref<144x256xbf16, #tpu.memory_space<vmem>>, vector<4x256xbf16>,
    %c0_85 = arith.constant 0 : index
    %c272_86 = arith.constant 272 : index
    %119 = vector.load %arg26[%c0_85, %c272_86] : memref<16x768xbf16, #tpu.memory_space<vmem>>, vector<4x256xbf16>
    %c28_87 = arith.constant 28 : index
    %c0_88 = arith.constant 0 : index
    %120 = vector.load %arg27[%c28_87, %c0_88] : memref<144x256xbf16, #tpu.memory_space<vmem>>, vector<4x256xbf16>
    tpu.vector_store %arg27[%c28_87, %c0_88], %119 {strides = array<i32>} : memref<144x256xbf16, #tpu.memory_space<vmem>>, vector<4x256xbf16>,
    %c0_89 = arith.constant 0 : index
    %c273_90 = arith.constant 273 : index
    %121 = vector.load %arg26[%c0_89, %c273_90] : memref<16x768xbf16, #tpu.memory_space<vmem>>, vector<4x256xbf16>
    %cst_91 = arith.constant 0.000000e+00 : bf16
    %122 = vector.broadcast %cst_91 : bf16 to vector<4x256xbf16>
    %123 = vector.shape_cast %84 : vector<1x256xi1> to vector<1x256xi1>
    %124 = vector.broadcast %123 : vector<1x256xi1> to vector<4x256xi1>
    %125 = arith.select %124, %121, %122 : vector<4x256xi1>, vector<4x256xbf16>
    %c32_92 = arith.constant 32 : index
    %c0_93 = arith.constant 0 : index
    %126 = vector.load %arg27[%c32_92, %c0_93] : memref<144x256xbf16, #tpu.memory_space<vmem>>, vector<4x256xbf16>
    tpu.vector_store %arg27[%c32_92, %c0_93], %125 {strides = array<i32>} : memref<144x256xbf16, #tpu.memory_space<vmem>>, vector<4x256xbf16>,
    %c0_94 = arith.constant 0 : index
    %c0_95 = arith.constant 0 : index
    %127 = vector.load %arg4[%c0_94, %c0_95] : memref<8x36xbf16, #tpu.memory_space<vmem>>, vector<8x36xbf16>
    %c0_96 = arith.constant 0 : index
    %c0_97 = arith.constant 0 : index
    %128 = vector.load %arg27[%c0_96, %c0_97] : memref<144x256xbf16, #tpu.memory_space<vmem>>, vector<36x256xbf16>
    %cst_98 = arith.constant dense<0.000000e+00> : vector<8x256xf32>
    %129 = tpu.matmul %127, %128, %cst_98 {dimension_numbers = #tpu.dot_dimension_numbers<[1], [0], [0], [1], [0, 0, 1, 1], [], []>} : vector<8x36xbf16>, vector<36x256xbf16>, vector<8x256xf32> -> vector<8x256xf32>
    %c0_99 = arith.constant 0 : index
    %c0_100 = arith.constant 0 : index
    %130 = vector.load %arg5[%c0_99, %c0_100] : memref<8x1xf32, #tpu.memory_space<vmem>>, vector<8x1xf32>
    %131 = vector.broadcast %130 : vector<8x1xf32> to vector<8x256xf32>
    %132 = arith.addf %129, %131 : vector<8x256xf32>
    %cst_101 = arith.constant 0.000000e+00 : f32
    %133 = vector.broadcast %cst_101 : f32 to vector<8x256xf32>
    %134 = arith.maximumf %132, %133 : vector<8x256xf32>
    %135 = arith.truncf %134 : vector<8x256xf32> to vector<8x256xbf16>
    %c0_102 = arith.constant 0 : index
    %c0_103 = arith.constant 0 : index
    %136 = vector.load %arg20[%c0_102, %c0_103] : memref<8x256xbf16, #tpu.memory_space<vmem>>, vector<8x256xbf16>
    tpu.vector_store %arg20[%c0_102, %c0_103], %135 {strides = array<i32>} : memref<8x256xbf16, #tpu.memory_space<vmem>>, vector<8x256xbf16>,
    %c0_104 = arith.constant 0 : index
    %c0_105 = arith.constant 0 : index
    %137 = vector.load %arg20[%c0_104, %c0_105] : memref<8x256xbf16, #tpu.memory_space<vmem>>, vector<8x256xbf16>
    %c0_106 = arith.constant 0 : index
    %c256_107 = arith.constant 256 : index
    %138 = vector.load %arg26[%c0_106, %c256_107] : memref<16x768xbf16, #tpu.memory_space<vmem>>, vector<8x256xbf16>
    tpu.vector_store %arg26[%c0_106, %c256_107], %137 {strides = array<i32>} : memref<16x768xbf16, #tpu.memory_space<vmem>>, vector<8x256xbf16>,
    %c2_i32 = arith.constant 2 : i32
    %139 = vector.broadcast %c2_i32 : i32 to vector<1x256xi32>
    %140 = arith.cmpi sge, %19, %139 : vector<1x256xi32>
    %c14_i32 = arith.constant 14 : i32
    %141 = vector.broadcast %c14_i32 : i32 to vector<1x256xi32>
    %142 = arith.cmpi slt, %19, %141 : vector<1x256xi32>
    %c0_108 = arith.constant 0 : index
    %c222 = arith.constant 222 : index
    %143 = vector.load %arg26[%c0_108, %c222] : memref<16x768xbf16, #tpu.memory_space<vmem>>, vector<8x256xbf16>
    %cst_109 = arith.constant 0.000000e+00 : bf16
    %144 = vector.broadcast %cst_109 : bf16 to vector<8x256xbf16>
    %145 = vector.shape_cast %140 : vector<1x256xi1> to vector<1x256xi1>
    %146 = vector.broadcast %145 : vector<1x256xi1> to vector<8x256xi1>
    %147 = arith.select %146, %143, %144 : vector<8x256xi1>, vector<8x256xbf16>
    %c0_110 = arith.constant 0 : index
    %c0_111 = arith.constant 0 : index
    %148 = vector.load %arg27[%c0_110, %c0_111] : memref<144x256xbf16, #tpu.memory_space<vmem>>, vector<8x256xbf16>
    tpu.vector_store %arg27[%c0_110, %c0_111], %147 {strides = array<i32>} : memref<144x256xbf16, #tpu.memory_space<vmem>>, vector<8x256xbf16>,
    %c0_112 = arith.constant 0 : index
    %c224 = arith.constant 224 : index
    %149 = vector.load %arg26[%c0_112, %c224] : memref<16x768xbf16, #tpu.memory_space<vmem>>, vector<8x256xbf16>
    %c8_113 = arith.constant 8 : index
    %c0_114 = arith.constant 0 : index
    %150 = vector.load %arg27[%c8_113, %c0_114] : memref<144x256xbf16, #tpu.memory_space<vmem>>, vector<8x256xbf16>
    tpu.vector_store %arg27[%c8_113, %c0_114], %149 {strides = array<i32>} : memref<144x256xbf16, #tpu.memory_space<vmem>>, vector<8x256xbf16>,
    %c0_115 = arith.constant 0 : index
    %c226 = arith.constant 226 : index
    %151 = vector.load %arg26[%c0_115, %c226] : memref<16x768xbf16, #tpu.memory_space<vmem>>, vector<8x256xbf16>
    %cst_116 = arith.constant 0.000000e+00 : bf16
    %152 = vector.broadcast %cst_116 : bf16 to vector<8x256xbf16>
    %153 = vector.shape_cast %142 : vector<1x256xi1> to vector<1x256xi1>
    %154 = vector.broadcast %153 : vector<1x256xi1> to vector<8x256xi1>
    %155 = arith.select %154, %151, %152 : vector<8x256xi1>, vector<8x256xbf16>
    %c16_117 = arith.constant 16 : index
    %c0_118 = arith.constant 0 : index
    %156 = vector.load %arg27[%c16_117, %c0_118] : memref<144x256xbf16, #tpu.memory_space<vmem>>, vector<8x256xbf16>
    tpu.vector_store %arg27[%c16_117, %c0_118], %155 {strides = array<i32>} : memref<144x256xbf16, #tpu.memory_space<vmem>>, vector<8x256xbf16>,
    %c0_119 = arith.constant 0 : index
    %c254 = arith.constant 254 : index
    %157 = vector.load %arg26[%c0_119, %c254] : memref<16x768xbf16, #tpu.memory_space<vmem>>, vector<8x256xbf16>
    %cst_120 = arith.constant 0.000000e+00 : bf16
    %158 = vector.broadcast %cst_120 : bf16 to vector<8x256xbf16>
    %159 = vector.shape_cast %140 : vector<1x256xi1> to vector<1x256xi1>
    %160 = vector.broadcast %159 : vector<1x256xi1> to vector<8x256xi1>
    %161 = arith.select %160, %157, %158 : vector<8x256xi1>, vector<8x256xbf16>
    %c24_121 = arith.constant 24 : index
    %c0_122 = arith.constant 0 : index
    %162 = vector.load %arg27[%c24_121, %c0_122] : memref<144x256xbf16, #tpu.memory_space<vmem>>, vector<8x256xbf16>
    tpu.vector_store %arg27[%c24_121, %c0_122], %161 {strides = array<i32>} : memref<144x256xbf16, #tpu.memory_space<vmem>>, vector<8x256xbf16>,
    %c0_123 = arith.constant 0 : index
    %c256_124 = arith.constant 256 : index
    %163 = vector.load %arg26[%c0_123, %c256_124] : memref<16x768xbf16, #tpu.memory_space<vmem>>, vector<8x256xbf16>
    %c32_125 = arith.constant 32 : index
    %c0_126 = arith.constant 0 : index
    %164 = vector.load %arg27[%c32_125, %c0_126] : memref<144x256xbf16, #tpu.memory_space<vmem>>, vector<8x256xbf16>
    tpu.vector_store %arg27[%c32_125, %c0_126], %163 {strides = array<i32>} : memref<144x256xbf16, #tpu.memory_space<vmem>>, vector<8x256xbf16>,
    %c0_127 = arith.constant 0 : index
    %c258 = arith.constant 258 : index
    %165 = vector.load %arg26[%c0_127, %c258] : memref<16x768xbf16, #tpu.memory_space<vmem>>, vector<8x256xbf16>
    %cst_128 = arith.constant 0.000000e+00 : bf16
    %166 = vector.broadcast %cst_128 : bf16 to vector<8x256xbf16>
    %167 = vector.shape_cast %142 : vector<1x256xi1> to vector<1x256xi1>
    %168 = vector.broadcast %167 : vector<1x256xi1> to vector<8x256xi1>
    %169 = arith.select %168, %165, %166 : vector<8x256xi1>, vector<8x256xbf16>
    %c40 = arith.constant 40 : index
    %c0_129 = arith.constant 0 : index
    %170 = vector.load %arg27[%c40, %c0_129] : memref<144x256xbf16, #tpu.memory_space<vmem>>, vector<8x256xbf16>
    tpu.vector_store %arg27[%c40, %c0_129], %169 {strides = array<i32>} : memref<144x256xbf16, #tpu.memory_space<vmem>>, vector<8x256xbf16>,
    %c0_130 = arith.constant 0 : index
    %c286 = arith.constant 286 : index
    %171 = vector.load %arg26[%c0_130, %c286] : memref<16x768xbf16, #tpu.memory_space<vmem>>, vector<8x256xbf16>
    %cst_131 = arith.constant 0.000000e+00 : bf16
    %172 = vector.broadcast %cst_131 : bf16 to vector<8x256xbf16>
    %173 = vector.shape_cast %140 : vector<1x256xi1> to vector<1x256xi1>
    %174 = vector.broadcast %173 : vector<1x256xi1> to vector<8x256xi1>
    %175 = arith.select %174, %171, %172 : vector<8x256xi1>, vector<8x256xbf16>
    %c48 = arith.constant 48 : index
    %c0_132 = arith.constant 0 : index
    %176 = vector.load %arg27[%c48, %c0_132] : memref<144x256xbf16, #tpu.memory_space<vmem>>, vector<8x256xbf16>
    tpu.vector_store %arg27[%c48, %c0_132], %175 {strides = array<i32>} : memref<144x256xbf16, #tpu.memory_space<vmem>>, vector<8x256xbf16>,
    %c0_133 = arith.constant 0 : index
    %c288 = arith.constant 288 : index
    %177 = vector.load %arg26[%c0_133, %c288] : memref<16x768xbf16, #tpu.memory_space<vmem>>, vector<8x256xbf16>
    %c56 = arith.constant 56 : index
    %c0_134 = arith.constant 0 : index
    %178 = vector.load %arg27[%c56, %c0_134] : memref<144x256xbf16, #tpu.memory_space<vmem>>, vector<8x256xbf16>
    tpu.vector_store %arg27[%c56, %c0_134], %177 {strides = array<i32>} : memref<144x256xbf16, #tpu.memory_space<vmem>>, vector<8x256xbf16>,
    %c0_135 = arith.constant 0 : index
    %c290 = arith.constant 290 : index
    %179 = vector.load %arg26[%c0_135, %c290] : memref<16x768xbf16, #tpu.memory_space<vmem>>, vector<8x256xbf16>
    %cst_136 = arith.constant 0.000000e+00 : bf16
    %180 = vector.broadcast %cst_136 : bf16 to vector<8x256xbf16>
    %181 = vector.shape_cast %142 : vector<1x256xi1> to vector<1x256xi1>
    %182 = vector.broadcast %181 : vector<1x256xi1> to vector<8x256xi1>
    %183 = arith.select %182, %179, %180 : vector<8x256xi1>, vector<8x256xbf16>
    %c64 = arith.constant 64 : index
    %c0_137 = arith.constant 0 : index
    %184 = vector.load %arg27[%c64, %c0_137] : memref<144x256xbf16, #tpu.memory_space<vmem>>, vector<8x256xbf16>
    tpu.vector_store %arg27[%c64, %c0_137], %183 {strides = array<i32>} : memref<144x256xbf16, #tpu.memory_space<vmem>>, vector<8x256xbf16>,
    %c0_138 = arith.constant 0 : index
    %c0_139 = arith.constant 0 : index
    %185 = vector.load %arg6[%c0_138, %c0_139] : memref<8x72xbf16, #tpu.memory_space<vmem>>, vector<8x72xbf16>
    %c0_140 = arith.constant 0 : index
    %c0_141 = arith.constant 0 : index
    %186 = vector.load %arg27[%c0_140, %c0_141] : memref<144x256xbf16, #tpu.memory_space<vmem>>, vector<72x256xbf16>
    %cst_142 = arith.constant dense<0.000000e+00> : vector<8x256xf32>
    %187 = tpu.matmul %185, %186, %cst_142 {dimension_numbers = #tpu.dot_dimension_numbers<[1], [0], [0], [1], [0, 0, 1, 1], [], []>} : vector<8x72xbf16>, vector<72x256xbf16>, vector<8x256xf32> -> vector<8x256xf32>
    %c0_143 = arith.constant 0 : index
    %c0_144 = arith.constant 0 : index
    %188 = vector.load %arg7[%c0_143, %c0_144] : memref<8x1xf32, #tpu.memory_space<vmem>>, vector<8x1xf32>
    %189 = vector.broadcast %188 : vector<8x1xf32> to vector<8x256xf32>
    %190 = arith.addf %187, %189 : vector<8x256xf32>
    %cst_145 = arith.constant 0.000000e+00 : f32
    %191 = vector.broadcast %cst_145 : f32 to vector<8x256xf32>
    %192 = arith.maximumf %190, %191 : vector<8x256xf32>
    %193 = arith.truncf %192 : vector<8x256xf32> to vector<8x256xbf16>
    %c0_146 = arith.constant 0 : index
    %c0_147 = arith.constant 0 : index
    %194 = vector.load %arg21[%c0_146, %c0_147] : memref<8x256xbf16, #tpu.memory_space<vmem>>, vector<8x256xbf16>
    tpu.vector_store %arg21[%c0_146, %c0_147], %193 {strides = array<i32>} : memref<8x256xbf16, #tpu.memory_space<vmem>>, vector<8x256xbf16>,
    %c0_148 = arith.constant 0 : index
    %c0_149 = arith.constant 0 : index
    %195 = vector.load %arg21[%c0_148, %c0_149] : memref<8x256xbf16, #tpu.memory_space<vmem>>, vector<8x256xbf16>
    %c0_150 = arith.constant 0 : index
    %c256_151 = arith.constant 256 : index
    %196 = vector.load %arg26[%c0_150, %c256_151] : memref<16x768xbf16, #tpu.memory_space<vmem>>, vector<8x256xbf16>
    tpu.vector_store %arg26[%c0_150, %c256_151], %195 {strides = array<i32>} : memref<16x768xbf16, #tpu.memory_space<vmem>>, vector<8x256xbf16>,
    %c4_i32 = arith.constant 4 : i32
    %197 = vector.broadcast %c4_i32 : i32 to vector<1x256xi32>
    %198 = arith.cmpi sge, %19, %197 : vector<1x256xi32>
    %c12_i32 = arith.constant 12 : i32
    %199 = vector.broadcast %c12_i32 : i32 to vector<1x256xi32>
    %200 = arith.cmpi slt, %19, %199 : vector<1x256xi32>
    %c0_152 = arith.constant 0 : index
    %c188 = arith.constant 188 : index
    %201 = vector.load %arg26[%c0_152, %c188] : memref<16x768xbf16, #tpu.memory_space<vmem>>, vector<8x256xbf16>
    %cst_153 = arith.constant 0.000000e+00 : bf16
    %202 = vector.broadcast %cst_153 : bf16 to vector<8x256xbf16>
    %203 = vector.shape_cast %198 : vector<1x256xi1> to vector<1x256xi1>
    %204 = vector.broadcast %203 : vector<1x256xi1> to vector<8x256xi1>
    %205 = arith.select %204, %201, %202 : vector<8x256xi1>, vector<8x256xbf16>
    %c0_154 = arith.constant 0 : index
    %c0_155 = arith.constant 0 : index
    %206 = vector.load %arg27[%c0_154, %c0_155] : memref<144x256xbf16, #tpu.memory_space<vmem>>, vector<8x256xbf16>
    tpu.vector_store %arg27[%c0_154, %c0_155], %205 {strides = array<i32>} : memref<144x256xbf16, #tpu.memory_space<vmem>>, vector<8x256xbf16>,
    %c0_156 = arith.constant 0 : index
    %c192 = arith.constant 192 : index
    %207 = vector.load %arg26[%c0_156, %c192] : memref<16x768xbf16, #tpu.memory_space<vmem>>, vector<8x256xbf16>
    %c8_157 = arith.constant 8 : index
    %c0_158 = arith.constant 0 : index
    %208 = vector.load %arg27[%c8_157, %c0_158] : memref<144x256xbf16, #tpu.memory_space<vmem>>, vector<8x256xbf16>
    tpu.vector_store %arg27[%c8_157, %c0_158], %207 {strides = array<i32>} : memref<144x256xbf16, #tpu.memory_space<vmem>>, vector<8x256xbf16>,
    %c0_159 = arith.constant 0 : index
    %c196 = arith.constant 196 : index
    %209 = vector.load %arg26[%c0_159, %c196] : memref<16x768xbf16, #tpu.memory_space<vmem>>, vector<8x256xbf16>
    %cst_160 = arith.constant 0.000000e+00 : bf16
    %210 = vector.broadcast %cst_160 : bf16 to vector<8x256xbf16>
    %211 = vector.shape_cast %200 : vector<1x256xi1> to vector<1x256xi1>
    %212 = vector.broadcast %211 : vector<1x256xi1> to vector<8x256xi1>
    %213 = arith.select %212, %209, %210 : vector<8x256xi1>, vector<8x256xbf16>
    %c16_161 = arith.constant 16 : index
    %c0_162 = arith.constant 0 : index
    %214 = vector.load %arg27[%c16_161, %c0_162] : memref<144x256xbf16, #tpu.memory_space<vmem>>, vector<8x256xbf16>
    tpu.vector_store %arg27[%c16_161, %c0_162], %213 {strides = array<i32>} : memref<144x256xbf16, #tpu.memory_space<vmem>>, vector<8x256xbf16>,
    %c0_163 = arith.constant 0 : index
    %c252 = arith.constant 252 : index
    %215 = vector.load %arg26[%c0_163, %c252] : memref<16x768xbf16, #tpu.memory_space<vmem>>, vector<8x256xbf16>
    %cst_164 = arith.constant 0.000000e+00 : bf16
    %216 = vector.broadcast %cst_164 : bf16 to vector<8x256xbf16>
    %217 = vector.shape_cast %198 : vector<1x256xi1> to vector<1x256xi1>
    %218 = vector.broadcast %217 : vector<1x256xi1> to vector<8x256xi1>
    %219 = arith.select %218, %215, %216 : vector<8x256xi1>, vector<8x256xbf16>
    %c24_165 = arith.constant 24 : index
    %c0_166 = arith.constant 0 : index
    %220 = vector.load %arg27[%c24_165, %c0_166] : memref<144x256xbf16, #tpu.memory_space<vmem>>, vector<8x256xbf16>
    tpu.vector_store %arg27[%c24_165, %c0_166], %219 {strides = array<i32>} : memref<144x256xbf16, #tpu.memory_space<vmem>>, vector<8x256xbf16>,
    %c0_167 = arith.constant 0 : index
    %c256_168 = arith.constant 256 : index
    %221 = vector.load %arg26[%c0_167, %c256_168] : memref<16x768xbf16, #tpu.memory_space<vmem>>, vector<8x256xbf16>
    %c32_169 = arith.constant 32 : index
    %c0_170 = arith.constant 0 : index
    %222 = vector.load %arg27[%c32_169, %c0_170] : memref<144x256xbf16, #tpu.memory_space<vmem>>, vector<8x256xbf16>
    tpu.vector_store %arg27[%c32_169, %c0_170], %221 {strides = array<i32>} : memref<144x256xbf16, #tpu.memory_space<vmem>>, vector<8x256xbf16>,
    %c0_171 = arith.constant 0 : index
    %c260 = arith.constant 260 : index
    %223 = vector.load %arg26[%c0_171, %c260] : memref<16x768xbf16, #tpu.memory_space<vmem>>, vector<8x256xbf16>
    %cst_172 = arith.constant 0.000000e+00 : bf16
    %224 = vector.broadcast %cst_172 : bf16 to vector<8x256xbf16>
    %225 = vector.shape_cast %200 : vector<1x256xi1> to vector<1x256xi1>
    %226 = vector.broadcast %225 : vector<1x256xi1> to vector<8x256xi1>
    %227 = arith.select %226, %223, %224 : vector<8x256xi1>, vector<8x256xbf16>
    %c40_173 = arith.constant 40 : index
    %c0_174 = arith.constant 0 : index
    %228 = vector.load %arg27[%c40_173, %c0_174] : memref<144x256xbf16, #tpu.memory_space<vmem>>, vector<8x256xbf16>
    tpu.vector_store %arg27[%c40_173, %c0_174], %227 {strides = array<i32>} : memref<144x256xbf16, #tpu.memory_space<vmem>>, vector<8x256xbf16>,
    %c0_175 = arith.constant 0 : index
    %c316 = arith.constant 316 : index
    %229 = vector.load %arg26[%c0_175, %c316] : memref<16x768xbf16, #tpu.memory_space<vmem>>, vector<8x256xbf16>
    %cst_176 = arith.constant 0.000000e+00 : bf16
    %230 = vector.broadcast %cst_176 : bf16 to vector<8x256xbf16>
    %231 = vector.shape_cast %198 : vector<1x256xi1> to vector<1x256xi1>
    %232 = vector.broadcast %231 : vector<1x256xi1> to vector<8x256xi1>
    %233 = arith.select %232, %229, %230 : vector<8x256xi1>, vector<8x256xbf16>
    %c48_177 = arith.constant 48 : index
    %c0_178 = arith.constant 0 : index
    %234 = vector.load %arg27[%c48_177, %c0_178] : memref<144x256xbf16, #tpu.memory_space<vmem>>, vector<8x256xbf16>
    tpu.vector_store %arg27[%c48_177, %c0_178], %233 {strides = array<i32>} : memref<144x256xbf16, #tpu.memory_space<vmem>>, vector<8x256xbf16>,
    %c0_179 = arith.constant 0 : index
    %c320 = arith.constant 320 : index
    %235 = vector.load %arg26[%c0_179, %c320] : memref<16x768xbf16, #tpu.memory_space<vmem>>, vector<8x256xbf16>
    %c56_180 = arith.constant 56 : index
    %c0_181 = arith.constant 0 : index
    %236 = vector.load %arg27[%c56_180, %c0_181] : memref<144x256xbf16, #tpu.memory_space<vmem>>, vector<8x256xbf16>
    tpu.vector_store %arg27[%c56_180, %c0_181], %235 {strides = array<i32>} : memref<144x256xbf16, #tpu.memory_space<vmem>>, vector<8x256xbf16>,
    %c0_182 = arith.constant 0 : index
    %c324 = arith.constant 324 : index
    %237 = vector.load %arg26[%c0_182, %c324] : memref<16x768xbf16, #tpu.memory_space<vmem>>, vector<8x256xbf16>
    %cst_183 = arith.constant 0.000000e+00 : bf16
    %238 = vector.broadcast %cst_183 : bf16 to vector<8x256xbf16>
    %239 = vector.shape_cast %200 : vector<1x256xi1> to vector<1x256xi1>
    %240 = vector.broadcast %239 : vector<1x256xi1> to vector<8x256xi1>
    %241 = arith.select %240, %237, %238 : vector<8x256xi1>, vector<8x256xbf16>
    %c64_184 = arith.constant 64 : index
    %c0_185 = arith.constant 0 : index
    %242 = vector.load %arg27[%c64_184, %c0_185] : memref<144x256xbf16, #tpu.memory_space<vmem>>, vector<8x256xbf16>
    tpu.vector_store %arg27[%c64_184, %c0_185], %241 {strides = array<i32>} : memref<144x256xbf16, #tpu.memory_space<vmem>>, vector<8x256xbf16>,
    %c0_186 = arith.constant 0 : index
    %c0_187 = arith.constant 0 : index
    %243 = vector.load %arg8[%c0_186, %c0_187] : memref<8x72xbf16, #tpu.memory_space<vmem>>, vector<8x72xbf16>
    %c0_188 = arith.constant 0 : index
    %c0_189 = arith.constant 0 : index
    %244 = vector.load %arg27[%c0_188, %c0_189] : memref<144x256xbf16, #tpu.memory_space<vmem>>, vector<72x256xbf16>
    %cst_190 = arith.constant dense<0.000000e+00> : vector<8x256xf32>
    %245 = tpu.matmul %243, %244, %cst_190 {dimension_numbers = #tpu.dot_dimension_numbers<[1], [0], [0], [1], [0, 0, 1, 1], [], []>} : vector<8x72xbf16>, vector<72x256xbf16>, vector<8x256xf32> -> vector<8x256xf32>
    %c0_191 = arith.constant 0 : index
    %c0_192 = arith.constant 0 : index
    %246 = vector.load %arg9[%c0_191, %c0_192] : memref<8x1xf32, #tpu.memory_space<vmem>>, vector<8x1xf32>
    %247 = vector.broadcast %246 : vector<8x1xf32> to vector<8x256xf32>
    %248 = arith.addf %245, %247 : vector<8x256xf32>
    %cst_193 = arith.constant 0.000000e+00 : f32
    %249 = vector.broadcast %cst_193 : f32 to vector<8x256xf32>
    %250 = arith.maximumf %248, %249 : vector<8x256xf32>
    %251 = arith.truncf %250 : vector<8x256xf32> to vector<8x256xbf16>
    %c0_194 = arith.constant 0 : index
    %c0_195 = arith.constant 0 : index
    %252 = vector.load %arg22[%c0_194, %c0_195] : memref<8x256xbf16, #tpu.memory_space<vmem>>, vector<8x256xbf16>
    tpu.vector_store %arg22[%c0_194, %c0_195], %251 {strides = array<i32>} : memref<8x256xbf16, #tpu.memory_space<vmem>>, vector<8x256xbf16>,
    %c0_196 = arith.constant 0 : index
    %c0_197 = arith.constant 0 : index
    %253 = vector.load %arg22[%c0_196, %c0_197] : memref<8x256xbf16, #tpu.memory_space<vmem>>, vector<8x256xbf16>
    %c0_198 = arith.constant 0 : index
    %c256_199 = arith.constant 256 : index
    %254 = vector.load %arg26[%c0_198, %c256_199] : memref<16x768xbf16, #tpu.memory_space<vmem>>, vector<8x256xbf16>
    tpu.vector_store %arg26[%c0_198, %c256_199], %253 {strides = array<i32>} : memref<16x768xbf16, #tpu.memory_space<vmem>>, vector<8x256xbf16>,
    %c8_i32 = arith.constant 8 : i32
    %255 = vector.broadcast %c8_i32 : i32 to vector<1x256xi32>
    %256 = arith.cmpi sge, %19, %255 : vector<1x256xi32>
    %c8_i32_200 = arith.constant 8 : i32
    %257 = vector.broadcast %c8_i32_200 : i32 to vector<1x256xi32>
    %258 = arith.cmpi slt, %19, %257 : vector<1x256xi32>
    %c0_201 = arith.constant 0 : index
    %c120 = arith.constant 120 : index
    %259 = vector.load %arg26[%c0_201, %c120] : memref<16x768xbf16, #tpu.memory_space<vmem>>, vector<8x256xbf16>
    %cst_202 = arith.constant 0.000000e+00 : bf16
    %260 = vector.broadcast %cst_202 : bf16 to vector<8x256xbf16>
    %261 = vector.shape_cast %256 : vector<1x256xi1> to vector<1x256xi1>
    %262 = vector.broadcast %261 : vector<1x256xi1> to vector<8x256xi1>
    %263 = arith.select %262, %259, %260 : vector<8x256xi1>, vector<8x256xbf16>
    %c0_203 = arith.constant 0 : index
    %c0_204 = arith.constant 0 : index
    %264 = vector.load %arg27[%c0_203, %c0_204] : memref<144x256xbf16, #tpu.memory_space<vmem>>, vector<8x256xbf16>
    tpu.vector_store %arg27[%c0_203, %c0_204], %263 {strides = array<i32>} : memref<144x256xbf16, #tpu.memory_space<vmem>>, vector<8x256xbf16>,
    %c0_205 = arith.constant 0 : index
    %c128 = arith.constant 128 : index
    %265 = vector.load %arg26[%c0_205, %c128] : memref<16x768xbf16, #tpu.memory_space<vmem>>, vector<8x256xbf16>
    %c8_206 = arith.constant 8 : index
    %c0_207 = arith.constant 0 : index
    %266 = vector.load %arg27[%c8_206, %c0_207] : memref<144x256xbf16, #tpu.memory_space<vmem>>, vector<8x256xbf16>
    tpu.vector_store %arg27[%c8_206, %c0_207], %265 {strides = array<i32>} : memref<144x256xbf16, #tpu.memory_space<vmem>>, vector<8x256xbf16>,
    %c0_208 = arith.constant 0 : index
    %c136 = arith.constant 136 : index
    %267 = vector.load %arg26[%c0_208, %c136] : memref<16x768xbf16, #tpu.memory_space<vmem>>, vector<8x256xbf16>
    %cst_209 = arith.constant 0.000000e+00 : bf16
    %268 = vector.broadcast %cst_209 : bf16 to vector<8x256xbf16>
    %269 = vector.shape_cast %258 : vector<1x256xi1> to vector<1x256xi1>
    %270 = vector.broadcast %269 : vector<1x256xi1> to vector<8x256xi1>
    %271 = arith.select %270, %267, %268 : vector<8x256xi1>, vector<8x256xbf16>
    %c16_210 = arith.constant 16 : index
    %c0_211 = arith.constant 0 : index
    %272 = vector.load %arg27[%c16_210, %c0_211] : memref<144x256xbf16, #tpu.memory_space<vmem>>, vector<8x256xbf16>
    tpu.vector_store %arg27[%c16_210, %c0_211], %271 {strides = array<i32>} : memref<144x256xbf16, #tpu.memory_space<vmem>>, vector<8x256xbf16>,
    %c0_212 = arith.constant 0 : index
    %c248 = arith.constant 248 : index
    %273 = vector.load %arg26[%c0_212, %c248] : memref<16x768xbf16, #tpu.memory_space<vmem>>, vector<8x256xbf16>
    %cst_213 = arith.constant 0.000000e+00 : bf16
    %274 = vector.broadcast %cst_213 : bf16 to vector<8x256xbf16>
    %275 = vector.shape_cast %256 : vector<1x256xi1> to vector<1x256xi1>
    %276 = vector.broadcast %275 : vector<1x256xi1> to vector<8x256xi1>
    %277 = arith.select %276, %273, %274 : vector<8x256xi1>, vector<8x256xbf16>
    %c24_214 = arith.constant 24 : index
    %c0_215 = arith.constant 0 : index
    %278 = vector.load %arg27[%c24_214, %c0_215] : memref<144x256xbf16, #tpu.memory_space<vmem>>, vector<8x256xbf16>
    tpu.vector_store %arg27[%c24_214, %c0_215], %277 {strides = array<i32>} : memref<144x256xbf16, #tpu.memory_space<vmem>>, vector<8x256xbf16>,
    %c0_216 = arith.constant 0 : index
    %c256_217 = arith.constant 256 : index
    %279 = vector.load %arg26[%c0_216, %c256_217] : memref<16x768xbf16, #tpu.memory_space<vmem>>, vector<8x256xbf16>
    %c32_218 = arith.constant 32 : index
    %c0_219 = arith.constant 0 : index
    %280 = vector.load %arg27[%c32_218, %c0_219] : memref<144x256xbf16, #tpu.memory_space<vmem>>, vector<8x256xbf16>
    tpu.vector_store %arg27[%c32_218, %c0_219], %279 {strides = array<i32>} : memref<144x256xbf16, #tpu.memory_space<vmem>>, vector<8x256xbf16>,
    %c0_220 = arith.constant 0 : index
    %c264 = arith.constant 264 : index
    %281 = vector.load %arg26[%c0_220, %c264] : memref<16x768xbf16, #tpu.memory_space<vmem>>, vector<8x256xbf16>
    %cst_221 = arith.constant 0.000000e+00 : bf16
    %282 = vector.broadcast %cst_221 : bf16 to vector<8x256xbf16>
    %283 = vector.shape_cast %258 : vector<1x256xi1> to vector<1x256xi1>
    %284 = vector.broadcast %283 : vector<1x256xi1> to vector<8x256xi1>
    %285 = arith.select %284, %281, %282 : vector<8x256xi1>, vector<8x256xbf16>
    %c40_222 = arith.constant 40 : index
    %c0_223 = arith.constant 0 : index
    %286 = vector.load %arg27[%c40_222, %c0_223] : memref<144x256xbf16, #tpu.memory_space<vmem>>, vector<8x256xbf16>
    tpu.vector_store %arg27[%c40_222, %c0_223], %285 {strides = array<i32>} : memref<144x256xbf16, #tpu.memory_space<vmem>>, vector<8x256xbf16>,
    %c0_224 = arith.constant 0 : index
    %c376 = arith.constant 376 : index
    %287 = vector.load %arg26[%c0_224, %c376] : memref<16x768xbf16, #tpu.memory_space<vmem>>, vector<8x256xbf16>
    %cst_225 = arith.constant 0.000000e+00 : bf16
    %288 = vector.broadcast %cst_225 : bf16 to vector<8x256xbf16>
    %289 = vector.shape_cast %256 : vector<1x256xi1> to vector<1x256xi1>
    %290 = vector.broadcast %289 : vector<1x256xi1> to vector<8x256xi1>
    %291 = arith.select %290, %287, %288 : vector<8x256xi1>, vector<8x256xbf16>
    %c48_226 = arith.constant 48 : index
    %c0_227 = arith.constant 0 : index
    %292 = vector.load %arg27[%c48_226, %c0_227] : memref<144x256xbf16, #tpu.memory_space<vmem>>, vector<8x256xbf16>
    tpu.vector_store %arg27[%c48_226, %c0_227], %291 {strides = array<i32>} : memref<144x256xbf16, #tpu.memory_space<vmem>>, vector<8x256xbf16>,
    %c0_228 = arith.constant 0 : index
    %c384 = arith.constant 384 : index
    %293 = vector.load %arg26[%c0_228, %c384] : memref<16x768xbf16, #tpu.memory_space<vmem>>, vector<8x256xbf16>
    %c56_229 = arith.constant 56 : index
    %c0_230 = arith.constant 0 : index
    %294 = vector.load %arg27[%c56_229, %c0_230] : memref<144x256xbf16, #tpu.memory_space<vmem>>, vector<8x256xbf16>
    tpu.vector_store %arg27[%c56_229, %c0_230], %293 {strides = array<i32>} : memref<144x256xbf16, #tpu.memory_space<vmem>>, vector<8x256xbf16>,
    %c0_231 = arith.constant 0 : index
    %c392 = arith.constant 392 : index
    %295 = vector.load %arg26[%c0_231, %c392] : memref<16x768xbf16, #tpu.memory_space<vmem>>, vector<8x256xbf16>
    %cst_232 = arith.constant 0.000000e+00 : bf16
    %296 = vector.broadcast %cst_232 : bf16 to vector<8x256xbf16>
    %297 = vector.shape_cast %258 : vector<1x256xi1> to vector<1x256xi1>
    %298 = vector.broadcast %297 : vector<1x256xi1> to vector<8x256xi1>
    %299 = arith.select %298, %295, %296 : vector<8x256xi1>, vector<8x256xbf16>
    %c64_233 = arith.constant 64 : index
    %c0_234 = arith.constant 0 : index
    %300 = vector.load %arg27[%c64_233, %c0_234] : memref<144x256xbf16, #tpu.memory_space<vmem>>, vector<8x256xbf16>
    tpu.vector_store %arg27[%c64_233, %c0_234], %299 {strides = array<i32>} : memref<144x256xbf16, #tpu.memory_space<vmem>>, vector<8x256xbf16>,
    %c0_235 = arith.constant 0 : index
    %c0_236 = arith.constant 0 : index
    %301 = vector.load %arg10[%c0_235, %c0_236] : memref<8x72xbf16, #tpu.memory_space<vmem>>, vector<8x72xbf16>
    %c0_237 = arith.constant 0 : index
    %c0_238 = arith.constant 0 : index
    %302 = vector.load %arg27[%c0_237, %c0_238] : memref<144x256xbf16, #tpu.memory_space<vmem>>, vector<72x256xbf16>
    %cst_239 = arith.constant dense<0.000000e+00> : vector<8x256xf32>
    %303 = tpu.matmul %301, %302, %cst_239 {dimension_numbers = #tpu.dot_dimension_numbers<[1], [0], [0], [1], [0, 0, 1, 1], [], []>} : vector<8x72xbf16>, vector<72x256xbf16>, vector<8x256xf32> -> vector<8x256xf32>
    %c0_240 = arith.constant 0 : index
    %c0_241 = arith.constant 0 : index
    %304 = vector.load %arg11[%c0_240, %c0_241] : memref<8x1xf32, #tpu.memory_space<vmem>>, vector<8x1xf32>
    %305 = vector.broadcast %304 : vector<8x1xf32> to vector<8x256xf32>
    %306 = arith.addf %303, %305 : vector<8x256xf32>
    %cst_242 = arith.constant 0.000000e+00 : f32
    %307 = vector.broadcast %cst_242 : f32 to vector<8x256xf32>
    %308 = arith.maximumf %306, %307 : vector<8x256xf32>
    %309 = arith.truncf %308 : vector<8x256xf32> to vector<8x256xbf16>
    %c0_243 = arith.constant 0 : index
    %c0_244 = arith.constant 0 : index
    %310 = vector.load %arg23[%c0_243, %c0_244] : memref<8x256xbf16, #tpu.memory_space<vmem>>, vector<8x256xbf16>
    tpu.vector_store %arg23[%c0_243, %c0_244], %309 {strides = array<i32>} : memref<8x256xbf16, #tpu.memory_space<vmem>>, vector<8x256xbf16>,
    %c0_245 = arith.constant 0 : index
    %c0_246 = arith.constant 0 : index
    %311 = vector.load %arg23[%c0_245, %c0_246] : memref<8x256xbf16, #tpu.memory_space<vmem>>, vector<8x256xbf16>
    %c0_247 = arith.constant 0 : index
    %c0_248 = arith.constant 0 : index
    %312 = vector.load %arg22[%c0_247, %c0_248] : memref<8x256xbf16, #tpu.memory_space<vmem>>, vector<8x256xbf16>
    %c0_249 = arith.constant 0 : index
    %c256_250 = arith.constant 256 : index
    %313 = vector.load %arg26[%c0_249, %c256_250] : memref<16x768xbf16, #tpu.memory_space<vmem>>, vector<8x256xbf16>
    tpu.vector_store %arg26[%c0_249, %c256_250], %311 {strides = array<i32>} : memref<16x768xbf16, #tpu.memory_space<vmem>>, vector<8x256xbf16>,
    %c8_251 = arith.constant 8 : index
    %c256_252 = arith.constant 256 : index
    %314 = vector.load %arg26[%c8_251, %c256_252] : memref<16x768xbf16, #tpu.memory_space<vmem>>, vector<8x256xbf16>
    tpu.vector_store %arg26[%c8_251, %c256_252], %312 {strides = array<i32>} : memref<16x768xbf16, #tpu.memory_space<vmem>>, vector<8x256xbf16>,
    %c4_i32_253 = arith.constant 4 : i32
    %315 = vector.broadcast %c4_i32_253 : i32 to vector<1x256xi32>
    %316 = arith.cmpi sge, %19, %315 : vector<1x256xi32>
    %c12_i32_254 = arith.constant 12 : i32
    %317 = vector.broadcast %c12_i32_254 : i32 to vector<1x256xi32>
    %318 = arith.cmpi slt, %19, %317 : vector<1x256xi32>
    %c0_255 = arith.constant 0 : index
    %c188_256 = arith.constant 188 : index
    %319 = vector.load %arg26[%c0_255, %c188_256] : memref<16x768xbf16, #tpu.memory_space<vmem>>, vector<16x256xbf16>
    %cst_257 = arith.constant 0.000000e+00 : bf16
    %320 = vector.broadcast %cst_257 : bf16 to vector<16x256xbf16>
    %321 = vector.shape_cast %316 : vector<1x256xi1> to vector<1x256xi1>
    %322 = vector.broadcast %321 : vector<1x256xi1> to vector<16x256xi1>
    %323 = arith.select %322, %319, %320 : vector<16x256xi1>, vector<16x256xbf16>
    %c0_258 = arith.constant 0 : index
    %c0_259 = arith.constant 0 : index
    %324 = vector.load %arg27[%c0_258, %c0_259] : memref<144x256xbf16, #tpu.memory_space<vmem>>, vector<16x256xbf16>
    tpu.vector_store %arg27[%c0_258, %c0_259], %323 {strides = array<i32>} : memref<144x256xbf16, #tpu.memory_space<vmem>>, vector<16x256xbf16>,
    %c0_260 = arith.constant 0 : index
    %c192_261 = arith.constant 192 : index
    %325 = vector.load %arg26[%c0_260, %c192_261] : memref<16x768xbf16, #tpu.memory_space<vmem>>, vector<16x256xbf16>
    %c16_262 = arith.constant 16 : index
    %c0_263 = arith.constant 0 : index
    %326 = vector.load %arg27[%c16_262, %c0_263] : memref<144x256xbf16, #tpu.memory_space<vmem>>, vector<16x256xbf16>
    tpu.vector_store %arg27[%c16_262, %c0_263], %325 {strides = array<i32>} : memref<144x256xbf16, #tpu.memory_space<vmem>>, vector<16x256xbf16>,
    %c0_264 = arith.constant 0 : index
    %c196_265 = arith.constant 196 : index
    %327 = vector.load %arg26[%c0_264, %c196_265] : memref<16x768xbf16, #tpu.memory_space<vmem>>, vector<16x256xbf16>
    %cst_266 = arith.constant 0.000000e+00 : bf16
    %328 = vector.broadcast %cst_266 : bf16 to vector<16x256xbf16>
    %329 = vector.shape_cast %318 : vector<1x256xi1> to vector<1x256xi1>
    %330 = vector.broadcast %329 : vector<1x256xi1> to vector<16x256xi1>
    %331 = arith.select %330, %327, %328 : vector<16x256xi1>, vector<16x256xbf16>
    %c32_267 = arith.constant 32 : index
    %c0_268 = arith.constant 0 : index
    %332 = vector.load %arg27[%c32_267, %c0_268] : memref<144x256xbf16, #tpu.memory_space<vmem>>, vector<16x256xbf16>
    tpu.vector_store %arg27[%c32_267, %c0_268], %331 {strides = array<i32>} : memref<144x256xbf16, #tpu.memory_space<vmem>>, vector<16x256xbf16>,
    %c0_269 = arith.constant 0 : index
    %c252_270 = arith.constant 252 : index
    %333 = vector.load %arg26[%c0_269, %c252_270] : memref<16x768xbf16, #tpu.memory_space<vmem>>, vector<16x256xbf16>
    %cst_271 = arith.constant 0.000000e+00 : bf16
    %334 = vector.broadcast %cst_271 : bf16 to vector<16x256xbf16>
    %335 = vector.shape_cast %316 : vector<1x256xi1> to vector<1x256xi1>
    %336 = vector.broadcast %335 : vector<1x256xi1> to vector<16x256xi1>
    %337 = arith.select %336, %333, %334 : vector<16x256xi1>, vector<16x256xbf16>
    %c48_272 = arith.constant 48 : index
    %c0_273 = arith.constant 0 : index
    %338 = vector.load %arg27[%c48_272, %c0_273] : memref<144x256xbf16, #tpu.memory_space<vmem>>, vector<16x256xbf16>
    tpu.vector_store %arg27[%c48_272, %c0_273], %337 {strides = array<i32>} : memref<144x256xbf16, #tpu.memory_space<vmem>>, vector<16x256xbf16>,
    %c0_274 = arith.constant 0 : index
    %c256_275 = arith.constant 256 : index
    %339 = vector.load %arg26[%c0_274, %c256_275] : memref<16x768xbf16, #tpu.memory_space<vmem>>, vector<16x256xbf16>
    %c64_276 = arith.constant 64 : index
    %c0_277 = arith.constant 0 : index
    %340 = vector.load %arg27[%c64_276, %c0_277] : memref<144x256xbf16, #tpu.memory_space<vmem>>, vector<16x256xbf16>
    tpu.vector_store %arg27[%c64_276, %c0_277], %339 {strides = array<i32>} : memref<144x256xbf16, #tpu.memory_space<vmem>>, vector<16x256xbf16>,
    %c0_278 = arith.constant 0 : index
    %c260_279 = arith.constant 260 : index
    %341 = vector.load %arg26[%c0_278, %c260_279] : memref<16x768xbf16, #tpu.memory_space<vmem>>, vector<16x256xbf16>
    %cst_280 = arith.constant 0.000000e+00 : bf16
    %342 = vector.broadcast %cst_280 : bf16 to vector<16x256xbf16>
    %343 = vector.shape_cast %318 : vector<1x256xi1> to vector<1x256xi1>
    %344 = vector.broadcast %343 : vector<1x256xi1> to vector<16x256xi1>
    %345 = arith.select %344, %341, %342 : vector<16x256xi1>, vector<16x256xbf16>
    %c80 = arith.constant 80 : index
    %c0_281 = arith.constant 0 : index
    %346 = vector.load %arg27[%c80, %c0_281] : memref<144x256xbf16, #tpu.memory_space<vmem>>, vector<16x256xbf16>
    tpu.vector_store %arg27[%c80, %c0_281], %345 {strides = array<i32>} : memref<144x256xbf16, #tpu.memory_space<vmem>>, vector<16x256xbf16>,
    %c0_282 = arith.constant 0 : index
    %c316_283 = arith.constant 316 : index
    %347 = vector.load %arg26[%c0_282, %c316_283] : memref<16x768xbf16, #tpu.memory_space<vmem>>, vector<16x256xbf16>
    %cst_284 = arith.constant 0.000000e+00 : bf16
    %348 = vector.broadcast %cst_284 : bf16 to vector<16x256xbf16>
    %349 = vector.shape_cast %316 : vector<1x256xi1> to vector<1x256xi1>
    %350 = vector.broadcast %349 : vector<1x256xi1> to vector<16x256xi1>
    %351 = arith.select %350, %347, %348 : vector<16x256xi1>, vector<16x256xbf16>
    %c96 = arith.constant 96 : index
    %c0_285 = arith.constant 0 : index
    %352 = vector.load %arg27[%c96, %c0_285] : memref<144x256xbf16, #tpu.memory_space<vmem>>, vector<16x256xbf16>
    tpu.vector_store %arg27[%c96, %c0_285], %351 {strides = array<i32>} : memref<144x256xbf16, #tpu.memory_space<vmem>>, vector<16x256xbf16>,
    %c0_286 = arith.constant 0 : index
    %c320_287 = arith.constant 320 : index
    %353 = vector.load %arg26[%c0_286, %c320_287] : memref<16x768xbf16, #tpu.memory_space<vmem>>, vector<16x256xbf16>
    %c112 = arith.constant 112 : index
    %c0_288 = arith.constant 0 : index
    %354 = vector.load %arg27[%c112, %c0_288] : memref<144x256xbf16, #tpu.memory_space<vmem>>, vector<16x256xbf16>
    tpu.vector_store %arg27[%c112, %c0_288], %353 {strides = array<i32>} : memref<144x256xbf16, #tpu.memory_space<vmem>>, vector<16x256xbf16>,
    %c0_289 = arith.constant 0 : index
    %c324_290 = arith.constant 324 : index
    %355 = vector.load %arg26[%c0_289, %c324_290] : memref<16x768xbf16, #tpu.memory_space<vmem>>, vector<16x256xbf16>
    %cst_291 = arith.constant 0.000000e+00 : bf16
    %356 = vector.broadcast %cst_291 : bf16 to vector<16x256xbf16>
    %357 = vector.shape_cast %318 : vector<1x256xi1> to vector<1x256xi1>
    %358 = vector.broadcast %357 : vector<1x256xi1> to vector<16x256xi1>
    %359 = arith.select %358, %355, %356 : vector<16x256xi1>, vector<16x256xbf16>
    %c128_292 = arith.constant 128 : index
    %c0_293 = arith.constant 0 : index
    %360 = vector.load %arg27[%c128_292, %c0_293] : memref<144x256xbf16, #tpu.memory_space<vmem>>, vector<16x256xbf16>
    tpu.vector_store %arg27[%c128_292, %c0_293], %359 {strides = array<i32>} : memref<144x256xbf16, #tpu.memory_space<vmem>>, vector<16x256xbf16>,
    %c0_294 = arith.constant 0 : index
    %c0_295 = arith.constant 0 : index
    %361 = vector.load %arg12[%c0_294, %c0_295] : memref<8x144xbf16, #tpu.memory_space<vmem>>, vector<8x144xbf16>
    %c0_296 = arith.constant 0 : index
    %c0_297 = arith.constant 0 : index
    %362 = vector.load %arg27[%c0_296, %c0_297] : memref<144x256xbf16, #tpu.memory_space<vmem>>, vector<144x256xbf16>
    %cst_298 = arith.constant dense<0.000000e+00> : vector<8x256xf32>
    %363 = tpu.matmul %361, %362, %cst_298 {dimension_numbers = #tpu.dot_dimension_numbers<[1], [0], [0], [1], [0, 0, 1, 1], [], []>} : vector<8x144xbf16>, vector<144x256xbf16>, vector<8x256xf32> -> vector<8x256xf32>
    %c0_299 = arith.constant 0 : index
    %c0_300 = arith.constant 0 : index
    %364 = vector.load %arg13[%c0_299, %c0_300] : memref<8x1xf32, #tpu.memory_space<vmem>>, vector<8x1xf32>
    %365 = vector.broadcast %364 : vector<8x1xf32> to vector<8x256xf32>
    %366 = arith.addf %363, %365 : vector<8x256xf32>
    %cst_301 = arith.constant 0.000000e+00 : f32
    %367 = vector.broadcast %cst_301 : f32 to vector<8x256xf32>
    %368 = arith.maximumf %366, %367 : vector<8x256xf32>
    %369 = arith.truncf %368 : vector<8x256xf32> to vector<8x256xbf16>
    %c0_302 = arith.constant 0 : index
    %c0_303 = arith.constant 0 : index
    %370 = vector.load %arg24[%c0_302, %c0_303] : memref<8x256xbf16, #tpu.memory_space<vmem>>, vector<8x256xbf16>
    tpu.vector_store %arg24[%c0_302, %c0_303], %369 {strides = array<i32>} : memref<8x256xbf16, #tpu.memory_space<vmem>>, vector<8x256xbf16>,
    %c0_304 = arith.constant 0 : index
    %c0_305 = arith.constant 0 : index
    %371 = vector.load %arg24[%c0_304, %c0_305] : memref<8x256xbf16, #tpu.memory_space<vmem>>, vector<8x256xbf16>
    %c0_306 = arith.constant 0 : index
    %c0_307 = arith.constant 0 : index
    %372 = vector.load %arg21[%c0_306, %c0_307] : memref<8x256xbf16, #tpu.memory_space<vmem>>, vector<8x256xbf16>
    %c0_308 = arith.constant 0 : index
    %c256_309 = arith.constant 256 : index
    %373 = vector.load %arg26[%c0_308, %c256_309] : memref<16x768xbf16, #tpu.memory_space<vmem>>, vector<8x256xbf16>
    tpu.vector_store %arg26[%c0_308, %c256_309], %371 {strides = array<i32>} : memref<16x768xbf16, #tpu.memory_space<vmem>>, vector<8x256xbf16>,
    %c8_310 = arith.constant 8 : index
    %c256_311 = arith.constant 256 : index
    %374 = vector.load %arg26[%c8_310, %c256_311] : memref<16x768xbf16, #tpu.memory_space<vmem>>, vector<8x256xbf16>
    tpu.vector_store %arg26[%c8_310, %c256_311], %372 {strides = array<i32>} : memref<16x768xbf16, #tpu.memory_space<vmem>>, vector<8x256xbf16>,
    %c2_i32_312 = arith.constant 2 : i32
    %375 = vector.broadcast %c2_i32_312 : i32 to vector<1x256xi32>
    %376 = arith.cmpi sge, %19, %375 : vector<1x256xi32>
    %c14_i32_313 = arith.constant 14 : i32
    %377 = vector.broadcast %c14_i32_313 : i32 to vector<1x256xi32>
    %378 = arith.cmpi slt, %19, %377 : vector<1x256xi32>
    %c0_314 = arith.constant 0 : index
    %c222_315 = arith.constant 222 : index
    %379 = vector.load %arg26[%c0_314, %c222_315] : memref<16x768xbf16, #tpu.memory_space<vmem>>, vector<16x256xbf16>
    %cst_316 = arith.constant 0.000000e+00 : bf16
    %380 = vector.broadcast %cst_316 : bf16 to vector<16x256xbf16>
    %381 = vector.shape_cast %376 : vector<1x256xi1> to vector<1x256xi1>
    %382 = vector.broadcast %381 : vector<1x256xi1> to vector<16x256xi1>
    %383 = arith.select %382, %379, %380 : vector<16x256xi1>, vector<16x256xbf16>
    %c0_317 = arith.constant 0 : index
    %c0_318 = arith.constant 0 : index
    %384 = vector.load %arg27[%c0_317, %c0_318] : memref<144x256xbf16, #tpu.memory_space<vmem>>, vector<16x256xbf16>
    tpu.vector_store %arg27[%c0_317, %c0_318], %383 {strides = array<i32>} : memref<144x256xbf16, #tpu.memory_space<vmem>>, vector<16x256xbf16>,
    %c0_319 = arith.constant 0 : index
    %c224_320 = arith.constant 224 : index
    %385 = vector.load %arg26[%c0_319, %c224_320] : memref<16x768xbf16, #tpu.memory_space<vmem>>, vector<16x256xbf16>
    %c16_321 = arith.constant 16 : index
    %c0_322 = arith.constant 0 : index
    %386 = vector.load %arg27[%c16_321, %c0_322] : memref<144x256xbf16, #tpu.memory_space<vmem>>, vector<16x256xbf16>
    tpu.vector_store %arg27[%c16_321, %c0_322], %385 {strides = array<i32>} : memref<144x256xbf16, #tpu.memory_space<vmem>>, vector<16x256xbf16>,
    %c0_323 = arith.constant 0 : index
    %c226_324 = arith.constant 226 : index
    %387 = vector.load %arg26[%c0_323, %c226_324] : memref<16x768xbf16, #tpu.memory_space<vmem>>, vector<16x256xbf16>
    %cst_325 = arith.constant 0.000000e+00 : bf16
    %388 = vector.broadcast %cst_325 : bf16 to vector<16x256xbf16>
    %389 = vector.shape_cast %378 : vector<1x256xi1> to vector<1x256xi1>
    %390 = vector.broadcast %389 : vector<1x256xi1> to vector<16x256xi1>
    %391 = arith.select %390, %387, %388 : vector<16x256xi1>, vector<16x256xbf16>
    %c32_326 = arith.constant 32 : index
    %c0_327 = arith.constant 0 : index
    %392 = vector.load %arg27[%c32_326, %c0_327] : memref<144x256xbf16, #tpu.memory_space<vmem>>, vector<16x256xbf16>
    tpu.vector_store %arg27[%c32_326, %c0_327], %391 {strides = array<i32>} : memref<144x256xbf16, #tpu.memory_space<vmem>>, vector<16x256xbf16>,
    %c0_328 = arith.constant 0 : index
    %c254_329 = arith.constant 254 : index
    %393 = vector.load %arg26[%c0_328, %c254_329] : memref<16x768xbf16, #tpu.memory_space<vmem>>, vector<16x256xbf16>
    %cst_330 = arith.constant 0.000000e+00 : bf16
    %394 = vector.broadcast %cst_330 : bf16 to vector<16x256xbf16>
    %395 = vector.shape_cast %376 : vector<1x256xi1> to vector<1x256xi1>
    %396 = vector.broadcast %395 : vector<1x256xi1> to vector<16x256xi1>
    %397 = arith.select %396, %393, %394 : vector<16x256xi1>, vector<16x256xbf16>
    %c48_331 = arith.constant 48 : index
    %c0_332 = arith.constant 0 : index
    %398 = vector.load %arg27[%c48_331, %c0_332] : memref<144x256xbf16, #tpu.memory_space<vmem>>, vector<16x256xbf16>
    tpu.vector_store %arg27[%c48_331, %c0_332], %397 {strides = array<i32>} : memref<144x256xbf16, #tpu.memory_space<vmem>>, vector<16x256xbf16>,
    %c0_333 = arith.constant 0 : index
    %c256_334 = arith.constant 256 : index
    %399 = vector.load %arg26[%c0_333, %c256_334] : memref<16x768xbf16, #tpu.memory_space<vmem>>, vector<16x256xbf16>
    %c64_335 = arith.constant 64 : index
    %c0_336 = arith.constant 0 : index
    %400 = vector.load %arg27[%c64_335, %c0_336] : memref<144x256xbf16, #tpu.memory_space<vmem>>, vector<16x256xbf16>
    tpu.vector_store %arg27[%c64_335, %c0_336], %399 {strides = array<i32>} : memref<144x256xbf16, #tpu.memory_space<vmem>>, vector<16x256xbf16>,
    %c0_337 = arith.constant 0 : index
    %c258_338 = arith.constant 258 : index
    %401 = vector.load %arg26[%c0_337, %c258_338] : memref<16x768xbf16, #tpu.memory_space<vmem>>, vector<16x256xbf16>
    %cst_339 = arith.constant 0.000000e+00 : bf16
    %402 = vector.broadcast %cst_339 : bf16 to vector<16x256xbf16>
    %403 = vector.shape_cast %378 : vector<1x256xi1> to vector<1x256xi1>
    %404 = vector.broadcast %403 : vector<1x256xi1> to vector<16x256xi1>
    %405 = arith.select %404, %401, %402 : vector<16x256xi1>, vector<16x256xbf16>
    %c80_340 = arith.constant 80 : index
    %c0_341 = arith.constant 0 : index
    %406 = vector.load %arg27[%c80_340, %c0_341] : memref<144x256xbf16, #tpu.memory_space<vmem>>, vector<16x256xbf16>
    tpu.vector_store %arg27[%c80_340, %c0_341], %405 {strides = array<i32>} : memref<144x256xbf16, #tpu.memory_space<vmem>>, vector<16x256xbf16>,
    %c0_342 = arith.constant 0 : index
    %c286_343 = arith.constant 286 : index
    %407 = vector.load %arg26[%c0_342, %c286_343] : memref<16x768xbf16, #tpu.memory_space<vmem>>, vector<16x256xbf16>
    %cst_344 = arith.constant 0.000000e+00 : bf16
    %408 = vector.broadcast %cst_344 : bf16 to vector<16x256xbf16>
    %409 = vector.shape_cast %376 : vector<1x256xi1> to vector<1x256xi1>
    %410 = vector.broadcast %409 : vector<1x256xi1> to vector<16x256xi1>
    %411 = arith.select %410, %407, %408 : vector<16x256xi1>, vector<16x256xbf16>
    %c96_345 = arith.constant 96 : index
    %c0_346 = arith.constant 0 : index
    %412 = vector.load %arg27[%c96_345, %c0_346] : memref<144x256xbf16, #tpu.memory_space<vmem>>, vector<16x256xbf16>
    tpu.vector_store %arg27[%c96_345, %c0_346], %411 {strides = array<i32>} : memref<144x256xbf16, #tpu.memory_space<vmem>>, vector<16x256xbf16>,
    %c0_347 = arith.constant 0 : index
    %c288_348 = arith.constant 288 : index
    %413 = vector.load %arg26[%c0_347, %c288_348] : memref<16x768xbf16, #tpu.memory_space<vmem>>, vector<16x256xbf16>
    %c112_349 = arith.constant 112 : index
    %c0_350 = arith.constant 0 : index
    %414 = vector.load %arg27[%c112_349, %c0_350] : memref<144x256xbf16, #tpu.memory_space<vmem>>, vector<16x256xbf16>
    tpu.vector_store %arg27[%c112_349, %c0_350], %413 {strides = array<i32>} : memref<144x256xbf16, #tpu.memory_space<vmem>>, vector<16x256xbf16>,
    %c0_351 = arith.constant 0 : index
    %c290_352 = arith.constant 290 : index
    %415 = vector.load %arg26[%c0_351, %c290_352] : memref<16x768xbf16, #tpu.memory_space<vmem>>, vector<16x256xbf16>
    %cst_353 = arith.constant 0.000000e+00 : bf16
    %416 = vector.broadcast %cst_353 : bf16 to vector<16x256xbf16>
    %417 = vector.shape_cast %378 : vector<1x256xi1> to vector<1x256xi1>
    %418 = vector.broadcast %417 : vector<1x256xi1> to vector<16x256xi1>
    %419 = arith.select %418, %415, %416 : vector<16x256xi1>, vector<16x256xbf16>
    %c128_354 = arith.constant 128 : index
    %c0_355 = arith.constant 0 : index
    %420 = vector.load %arg27[%c128_354, %c0_355] : memref<144x256xbf16, #tpu.memory_space<vmem>>, vector<16x256xbf16>
    tpu.vector_store %arg27[%c128_354, %c0_355], %419 {strides = array<i32>} : memref<144x256xbf16, #tpu.memory_space<vmem>>, vector<16x256xbf16>,
    %c0_356 = arith.constant 0 : index
    %c0_357 = arith.constant 0 : index
    %421 = vector.load %arg14[%c0_356, %c0_357] : memref<8x144xbf16, #tpu.memory_space<vmem>>, vector<8x144xbf16>
    %c0_358 = arith.constant 0 : index
    %c0_359 = arith.constant 0 : index
    %422 = vector.load %arg27[%c0_358, %c0_359] : memref<144x256xbf16, #tpu.memory_space<vmem>>, vector<144x256xbf16>
    %cst_360 = arith.constant dense<0.000000e+00> : vector<8x256xf32>
    %423 = tpu.matmul %421, %422, %cst_360 {dimension_numbers = #tpu.dot_dimension_numbers<[1], [0], [0], [1], [0, 0, 1, 1], [], []>} : vector<8x144xbf16>, vector<144x256xbf16>, vector<8x256xf32> -> vector<8x256xf32>
    %c0_361 = arith.constant 0 : index
    %c0_362 = arith.constant 0 : index
    %424 = vector.load %arg15[%c0_361, %c0_362] : memref<8x1xf32, #tpu.memory_space<vmem>>, vector<8x1xf32>
    %425 = vector.broadcast %424 : vector<8x1xf32> to vector<8x256xf32>
    %426 = arith.addf %423, %425 : vector<8x256xf32>
    %cst_363 = arith.constant 0.000000e+00 : f32
    %427 = vector.broadcast %cst_363 : f32 to vector<8x256xf32>
    %428 = arith.maximumf %426, %427 : vector<8x256xf32>
    %429 = arith.truncf %428 : vector<8x256xf32> to vector<8x256xbf16>
    %c0_364 = arith.constant 0 : index
    %c0_365 = arith.constant 0 : index
    %430 = vector.load %arg25[%c0_364, %c0_365] : memref<8x256xbf16, #tpu.memory_space<vmem>>, vector<8x256xbf16>
    tpu.vector_store %arg25[%c0_364, %c0_365], %429 {strides = array<i32>} : memref<8x256xbf16, #tpu.memory_space<vmem>>, vector<8x256xbf16>,
    %c0_366 = arith.constant 0 : index
    %c0_367 = arith.constant 0 : index
    %431 = vector.load %arg25[%c0_366, %c0_367] : memref<8x256xbf16, #tpu.memory_space<vmem>>, vector<8x256xbf16>
    %c0_368 = arith.constant 0 : index
    %c0_369 = arith.constant 0 : index
    %432 = vector.load %arg20[%c0_368, %c0_369] : memref<8x256xbf16, #tpu.memory_space<vmem>>, vector<8x256xbf16>
    %c0_370 = arith.constant 0 : index
    %c256_371 = arith.constant 256 : index
    %433 = vector.load %arg26[%c0_370, %c256_371] : memref<16x768xbf16, #tpu.memory_space<vmem>>, vector<8x256xbf16>
    tpu.vector_store %arg26[%c0_370, %c256_371], %431 {strides = array<i32>} : memref<16x768xbf16, #tpu.memory_space<vmem>>, vector<8x256xbf16>,
    %c8_372 = arith.constant 8 : index
    %c256_373 = arith.constant 256 : index
    %434 = vector.load %arg26[%c8_372, %c256_373] : memref<16x768xbf16, #tpu.memory_space<vmem>>, vector<8x256xbf16>
    tpu.vector_store %arg26[%c8_372, %c256_373], %432 {strides = array<i32>} : memref<16x768xbf16, #tpu.memory_space<vmem>>, vector<8x256xbf16>,
    %c1_i32_374 = arith.constant 1 : i32
    %435 = vector.broadcast %c1_i32_374 : i32 to vector<1x256xi32>
    %436 = arith.cmpi sge, %19, %435 : vector<1x256xi32>
    %c15_i32_375 = arith.constant 15 : i32
    %437 = vector.broadcast %c15_i32_375 : i32 to vector<1x256xi32>
    %438 = arith.cmpi slt, %19, %437 : vector<1x256xi32>
    %c0_376 = arith.constant 0 : index
    %c239_377 = arith.constant 239 : index
    %439 = vector.load %arg26[%c0_376, %c239_377] : memref<16x768xbf16, #tpu.memory_space<vmem>>, vector<16x256xbf16>
    %cst_378 = arith.constant 0.000000e+00 : bf16
    %440 = vector.broadcast %cst_378 : bf16 to vector<16x256xbf16>
    %441 = vector.shape_cast %436 : vector<1x256xi1> to vector<1x256xi1>
    %442 = vector.broadcast %441 : vector<1x256xi1> to vector<16x256xi1>
    %443 = arith.select %442, %439, %440 : vector<16x256xi1>, vector<16x256xbf16>
    %c0_379 = arith.constant 0 : index
    %c0_380 = arith.constant 0 : index
    %444 = vector.load %arg27[%c0_379, %c0_380] : memref<144x256xbf16, #tpu.memory_space<vmem>>, vector<16x256xbf16>
    tpu.vector_store %arg27[%c0_379, %c0_380], %443 {strides = array<i32>} : memref<144x256xbf16, #tpu.memory_space<vmem>>, vector<16x256xbf16>,
    %c0_381 = arith.constant 0 : index
    %c240_382 = arith.constant 240 : index
    %445 = vector.load %arg26[%c0_381, %c240_382] : memref<16x768xbf16, #tpu.memory_space<vmem>>, vector<16x256xbf16>
    %c16_383 = arith.constant 16 : index
    %c0_384 = arith.constant 0 : index
    %446 = vector.load %arg27[%c16_383, %c0_384] : memref<144x256xbf16, #tpu.memory_space<vmem>>, vector<16x256xbf16>
    tpu.vector_store %arg27[%c16_383, %c0_384], %445 {strides = array<i32>} : memref<144x256xbf16, #tpu.memory_space<vmem>>, vector<16x256xbf16>,
    %c0_385 = arith.constant 0 : index
    %c241_386 = arith.constant 241 : index
    %447 = vector.load %arg26[%c0_385, %c241_386] : memref<16x768xbf16, #tpu.memory_space<vmem>>, vector<16x256xbf16>
    %cst_387 = arith.constant 0.000000e+00 : bf16
    %448 = vector.broadcast %cst_387 : bf16 to vector<16x256xbf16>
    %449 = vector.shape_cast %438 : vector<1x256xi1> to vector<1x256xi1>
    %450 = vector.broadcast %449 : vector<1x256xi1> to vector<16x256xi1>
    %451 = arith.select %450, %447, %448 : vector<16x256xi1>, vector<16x256xbf16>
    %c32_388 = arith.constant 32 : index
    %c0_389 = arith.constant 0 : index
    %452 = vector.load %arg27[%c32_388, %c0_389] : memref<144x256xbf16, #tpu.memory_space<vmem>>, vector<16x256xbf16>
    tpu.vector_store %arg27[%c32_388, %c0_389], %451 {strides = array<i32>} : memref<144x256xbf16, #tpu.memory_space<vmem>>, vector<16x256xbf16>,
    %c0_390 = arith.constant 0 : index
    %c255_391 = arith.constant 255 : index
    %453 = vector.load %arg26[%c0_390, %c255_391] : memref<16x768xbf16, #tpu.memory_space<vmem>>, vector<16x256xbf16>
    %cst_392 = arith.constant 0.000000e+00 : bf16
    %454 = vector.broadcast %cst_392 : bf16 to vector<16x256xbf16>
    %455 = vector.shape_cast %436 : vector<1x256xi1> to vector<1x256xi1>
    %456 = vector.broadcast %455 : vector<1x256xi1> to vector<16x256xi1>
    %457 = arith.select %456, %453, %454 : vector<16x256xi1>, vector<16x256xbf16>
    %c48_393 = arith.constant 48 : index
    %c0_394 = arith.constant 0 : index
    %458 = vector.load %arg27[%c48_393, %c0_394] : memref<144x256xbf16, #tpu.memory_space<vmem>>, vector<16x256xbf16>
    tpu.vector_store %arg27[%c48_393, %c0_394], %457 {strides = array<i32>} : memref<144x256xbf16, #tpu.memory_space<vmem>>, vector<16x256xbf16>,
    %c0_395 = arith.constant 0 : index
    %c256_396 = arith.constant 256 : index
    %459 = vector.load %arg26[%c0_395, %c256_396] : memref<16x768xbf16, #tpu.memory_space<vmem>>, vector<16x256xbf16>
    %c64_397 = arith.constant 64 : index
    %c0_398 = arith.constant 0 : index
    %460 = vector.load %arg27[%c64_397, %c0_398] : memref<144x256xbf16, #tpu.memory_space<vmem>>, vector<16x256xbf16>
    tpu.vector_store %arg27[%c64_397, %c0_398], %459 {strides = array<i32>} : memref<144x256xbf16, #tpu.memory_space<vmem>>, vector<16x256xbf16>,
    %c0_399 = arith.constant 0 : index
    %c257_400 = arith.constant 257 : index
    %461 = vector.load %arg26[%c0_399, %c257_400] : memref<16x768xbf16, #tpu.memory_space<vmem>>, vector<16x256xbf16>
    %cst_401 = arith.constant 0.000000e+00 : bf16
    %462 = vector.broadcast %cst_401 : bf16 to vector<16x256xbf16>
    %463 = vector.shape_cast %438 : vector<1x256xi1> to vector<1x256xi1>
    %464 = vector.broadcast %463 : vector<1x256xi1> to vector<16x256xi1>
    %465 = arith.select %464, %461, %462 : vector<16x256xi1>, vector<16x256xbf16>
    %c80_402 = arith.constant 80 : index
    %c0_403 = arith.constant 0 : index
    %466 = vector.load %arg27[%c80_402, %c0_403] : memref<144x256xbf16, #tpu.memory_space<vmem>>, vector<16x256xbf16>
    tpu.vector_store %arg27[%c80_402, %c0_403], %465 {strides = array<i32>} : memref<144x256xbf16, #tpu.memory_space<vmem>>, vector<16x256xbf16>,
    %c0_404 = arith.constant 0 : index
    %c271_405 = arith.constant 271 : index
    %467 = vector.load %arg26[%c0_404, %c271_405] : memref<16x768xbf16, #tpu.memory_space<vmem>>, vector<16x256xbf16>
    %cst_406 = arith.constant 0.000000e+00 : bf16
    %468 = vector.broadcast %cst_406 : bf16 to vector<16x256xbf16>
    %469 = vector.shape_cast %436 : vector<1x256xi1> to vector<1x256xi1>
    %470 = vector.broadcast %469 : vector<1x256xi1> to vector<16x256xi1>
    %471 = arith.select %470, %467, %468 : vector<16x256xi1>, vector<16x256xbf16>
    %c96_407 = arith.constant 96 : index
    %c0_408 = arith.constant 0 : index
    %472 = vector.load %arg27[%c96_407, %c0_408] : memref<144x256xbf16, #tpu.memory_space<vmem>>, vector<16x256xbf16>
    tpu.vector_store %arg27[%c96_407, %c0_408], %471 {strides = array<i32>} : memref<144x256xbf16, #tpu.memory_space<vmem>>, vector<16x256xbf16>,
    %c0_409 = arith.constant 0 : index
    %c272_410 = arith.constant 272 : index
    %473 = vector.load %arg26[%c0_409, %c272_410] : memref<16x768xbf16, #tpu.memory_space<vmem>>, vector<16x256xbf16>
    %c112_411 = arith.constant 112 : index
    %c0_412 = arith.constant 0 : index
    %474 = vector.load %arg27[%c112_411, %c0_412] : memref<144x256xbf16, #tpu.memory_space<vmem>>, vector<16x256xbf16>
    tpu.vector_store %arg27[%c112_411, %c0_412], %473 {strides = array<i32>} : memref<144x256xbf16, #tpu.memory_space<vmem>>, vector<16x256xbf16>,
    %c0_413 = arith.constant 0 : index
    %c273_414 = arith.constant 273 : index
    %475 = vector.load %arg26[%c0_413, %c273_414] : memref<16x768xbf16, #tpu.memory_space<vmem>>, vector<16x256xbf16>
    %cst_415 = arith.constant 0.000000e+00 : bf16
    %476 = vector.broadcast %cst_415 : bf16 to vector<16x256xbf16>
    %477 = vector.shape_cast %438 : vector<1x256xi1> to vector<1x256xi1>
    %478 = vector.broadcast %477 : vector<1x256xi1> to vector<16x256xi1>
    %479 = arith.select %478, %475, %476 : vector<16x256xi1>, vector<16x256xbf16>
    %c128_416 = arith.constant 128 : index
    %c0_417 = arith.constant 0 : index
    %480 = vector.load %arg27[%c128_416, %c0_417] : memref<144x256xbf16, #tpu.memory_space<vmem>>, vector<16x256xbf16>
    tpu.vector_store %arg27[%c128_416, %c0_417], %479 {strides = array<i32>} : memref<144x256xbf16, #tpu.memory_space<vmem>>, vector<16x256xbf16>,
    %c0_418 = arith.constant 0 : index
    %c0_419 = arith.constant 0 : index
    %481 = vector.load %arg16[%c0_418, %c0_419] : memref<4x144xbf16, #tpu.memory_space<vmem>>, vector<4x144xbf16>
    %c0_420 = arith.constant 0 : index
    %c0_421 = arith.constant 0 : index
    %482 = vector.load %arg27[%c0_420, %c0_421] : memref<144x256xbf16, #tpu.memory_space<vmem>>, vector<144x256xbf16>
    %cst_422 = arith.constant dense<0.000000e+00> : vector<4x256xf32>
    %483 = tpu.matmul %481, %482, %cst_422 {dimension_numbers = #tpu.dot_dimension_numbers<[1], [0], [0], [1], [0, 0, 1, 1], [], []>} : vector<4x144xbf16>, vector<144x256xbf16>, vector<4x256xf32> -> vector<4x256xf32>
    %c0_423 = arith.constant 0 : index
    %c0_424 = arith.constant 0 : index
    %484 = vector.load %arg17[%c0_423, %c0_424] : memref<4x1xf32, #tpu.memory_space<vmem>>, vector<4x1xf32>
    %485 = vector.broadcast %484 : vector<4x1xf32> to vector<4x256xf32>
    %486 = arith.addf %483, %485 : vector<4x256xf32>
    %cst_425 = arith.constant 0.000000e+00 : f32
    %487 = vector.broadcast %cst_425 : f32 to vector<4x256xf32>
    %488 = arith.maximumf %486, %487 : vector<4x256xf32>
    %c0_426 = arith.constant 0 : index
    %c0_427 = arith.constant 0 : index
    %489 = vector.load %arg19[%c0_426, %c0_427] : memref<4x256xbf16, #tpu.memory_space<vmem>>, vector<4x256xbf16>
    %490 = arith.extf %489 : vector<4x256xbf16> to vector<4x256xf32>
    %491 = arith.addf %488, %490 : vector<4x256xf32>
    %c0_428 = arith.constant 0 : index
    %c0_429 = arith.constant 0 : index
    %c0_430 = arith.constant 0 : index
    %492 = vector.load %arg18[%c0_428, %c0_429, %c0_430] : memref<1x4x256xf32, #tpu.memory_space<vmem>>, vector<1x4x256xf32>
    %493 = vector.shape_cast %492 : vector<1x4x256xf32> to vector<4x256xf32>
    %494 = vector.shape_cast %491 : vector<4x256xf32> to vector<1x4x256xf32>
    tpu.vector_store %arg18[%c0_428, %c0_429, %c0_430], %494 {strides = array<i32>} : memref<1x4x256xf32, #tpu.memory_space<vmem>>, vector<1x4x256xf32>,
    return
  }
  func.func @transform_0(%arg0: i32) -> (i32, i32, i32) {
    %c0_i32 = arith.constant 0 : i32
    %c0_i32_0 = arith.constant 0 : i32
    %c0_i32_1 = arith.constant 0 : i32
    return %arg0, %c0_i32, %c0_i32_0 : i32, i32, i32
  }
  func.func @transform_1(%arg0: i32) -> (i32, i32) {
    %c0_i32 = arith.constant 0 : i32
    %c0_i32_0 = arith.constant 0 : i32
    %c0_i32_1 = arith.constant 0 : i32
    return %c0_i32, %c0_i32_0 : i32, i32
  }
  func.func @transform_2(%arg0: i32) -> (i32, i32) {
    %c0_i32 = arith.constant 0 : i32
    %c0_i32_0 = arith.constant 0 : i32
    %c0_i32_1 = arith.constant 0 : i32
    return %c0_i32, %c0_i32_0 : i32, i32
  }
  func.func @transform_3(%arg0: i32) -> (i32, i32) {
    %c0_i32 = arith.constant 0 : i32
    %c0_i32_0 = arith.constant 0 : i32
    %c0_i32_1 = arith.constant 0 : i32
    return %c0_i32, %c0_i32_0 : i32, i32
  }
  func.func @transform_4(%arg0: i32) -> (i32, i32) {
    %c0_i32 = arith.constant 0 : i32
    %c0_i32_0 = arith.constant 0 : i32
    %c0_i32_1 = arith.constant 0 : i32
    return %c0_i32, %c0_i32_0 : i32, i32
  }
  func.func @transform_5(%arg0: i32) -> (i32, i32) {
    %c0_i32 = arith.constant 0 : i32
    %c0_i32_0 = arith.constant 0 : i32
    %c0_i32_1 = arith.constant 0 : i32
    return %c0_i32, %c0_i32_0 : i32, i32
  }
  func.func @transform_6(%arg0: i32) -> (i32, i32) {
    %c0_i32 = arith.constant 0 : i32
    %c0_i32_0 = arith.constant 0 : i32
    %c0_i32_1 = arith.constant 0 : i32
    return %c0_i32, %c0_i32_0 : i32, i32
  }
  func.func @transform_7(%arg0: i32) -> (i32, i32) {
    %c0_i32 = arith.constant 0 : i32
    %c0_i32_0 = arith.constant 0 : i32
    %c0_i32_1 = arith.constant 0 : i32
    return %c0_i32, %c0_i32_0 : i32, i32
  }
  func.func @transform_8(%arg0: i32) -> (i32, i32) {
    %c0_i32 = arith.constant 0 : i32
    %c0_i32_0 = arith.constant 0 : i32
    %c0_i32_1 = arith.constant 0 : i32
    return %c0_i32, %c0_i32_0 : i32, i32
  }
  func.func @transform_9(%arg0: i32) -> (i32, i32) {
    %c0_i32 = arith.constant 0 : i32
    %c0_i32_0 = arith.constant 0 : i32
    %c0_i32_1 = arith.constant 0 : i32
    return %c0_i32, %c0_i32_0 : i32, i32
  }
  func.func @transform_10(%arg0: i32) -> (i32, i32) {
    %c0_i32 = arith.constant 0 : i32
    %c0_i32_0 = arith.constant 0 : i32
    %c0_i32_1 = arith.constant 0 : i32
    return %c0_i32, %c0_i32_0 : i32, i32
  }
  func.func @transform_11(%arg0: i32) -> (i32, i32) {
    %c0_i32 = arith.constant 0 : i32
    %c0_i32_0 = arith.constant 0 : i32
    %c0_i32_1 = arith.constant 0 : i32
    return %c0_i32, %c0_i32_0 : i32, i32
  }
  func.func @transform_12(%arg0: i32) -> (i32, i32) {
    %c0_i32 = arith.constant 0 : i32
    %c0_i32_0 = arith.constant 0 : i32
    %c0_i32_1 = arith.constant 0 : i32
    return %c0_i32, %c0_i32_0 : i32, i32
  }
  func.func @transform_13(%arg0: i32) -> (i32, i32) {
    %c0_i32 = arith.constant 0 : i32
    %c0_i32_0 = arith.constant 0 : i32
    %c0_i32_1 = arith.constant 0 : i32
    return %c0_i32, %c0_i32_0 : i32, i32
  }
  func.func @transform_14(%arg0: i32) -> (i32, i32) {
    %c0_i32 = arith.constant 0 : i32
    %c0_i32_0 = arith.constant 0 : i32
    %c0_i32_1 = arith.constant 0 : i32
    return %c0_i32, %c0_i32_0 : i32, i32
  }
  func.func @transform_15(%arg0: i32) -> (i32, i32) {
    %c0_i32 = arith.constant 0 : i32
    %c0_i32_0 = arith.constant 0 : i32
    %c0_i32_1 = arith.constant 0 : i32
    return %c0_i32, %c0_i32_0 : i32, i32
  }
  func.func @transform_16(%arg0: i32) -> (i32, i32) {
    %c0_i32 = arith.constant 0 : i32
    %c0_i32_0 = arith.constant 0 : i32
    %c0_i32_1 = arith.constant 0 : i32
    return %c0_i32, %c0_i32_0 : i32, i32
  }
  func.func @transform_17(%arg0: i32) -> (i32, i32, i32) {
    %c0_i32 = arith.constant 0 : i32
    %c0_i32_0 = arith.constant 0 : i32
    %c0_i32_1 = arith.constant 0 : i32
    return %arg0, %c0_i32, %c0_i32_0 : i32, i32, i32
  }
}

</mosaic_0001>

<llo_original>
// kernel: rsu4f_forward.1
$region0: #{rsu4f_forward.1}
  #allocation0 [shape = 'u32[]', space=smem, size = 0x4, offset = 0x4, fixed_abs, tag = 'smem constant byte address 0x4 - core index']
  #allocation1 [shape = 'u32[72,128]{1,0:T(1,128)}', space=vmem, size = 0x9000, scoped, tag = 'internal scratch']
  #allocation2 [shape = 'bf16[4,256]{1,0:T(4,128)(2,1)}', space=vmem, size = 0x800, scoped, tag = 'scratch operand']
  #allocation3 [shape = 'bf16[8,256]{1,0:T(8,128)(2,1)}', space=vmem, size = 0x1000, scoped, tag = 'scratch operand']
  #allocation4 [shape = 'bf16[8,256]{1,0:T(8,128)(2,1)}', space=vmem, size = 0x1000, scoped, tag = 'scratch operand']
  #allocation5 [shape = 'bf16[8,256]{1,0:T(8,128)(2,1)}', space=vmem, size = 0x1000, scoped, tag = 'scratch operand']
  #allocation6 [shape = 'bf16[8,256]{1,0:T(8,128)(2,1)}', space=vmem, size = 0x1000, scoped, tag = 'scratch operand']
  #allocation7 [shape = 'bf16[8,256]{1,0:T(8,128)(2,1)}', space=vmem, size = 0x1000, scoped, tag = 'scratch operand']
  #allocation8 [shape = 'bf16[8,256]{1,0:T(8,128)(2,1)}', space=vmem, size = 0x1000, scoped, tag = 'scratch operand']
  #allocation9 [shape = 'bf16[16,768]{1,0:T(8,128)(2,1)}', space=vmem, size = 0x6000, scoped, tag = 'scratch operand']
  #allocation10 [shape = 'bf16[144,256]{1,0:T(8,128)(2,1)}', space=vmem, size = 0x12000, scoped, tag = 'scratch operand']
  %s0 = inlined_call_operand.vmem [shape: bf16[2,4,256], index: 0, kind: input, shape index: {}]
  %s1 = inlined_call_operand.vmem [shape: bf16[4,36], index: 1, kind: input, shape index: {}]
  %s2 = inlined_call_operand.vmem [shape: f32[4,1], index: 2, kind: input, shape index: {}]
  %s3 = inlined_call_operand.vmem [shape: bf16[8,36], index: 3, kind: input, shape index: {}]
  %s4 = inlined_call_operand.vmem [shape: f32[8,1], index: 4, kind: input, shape index: {}]
  %s5 = inlined_call_operand.vmem [shape: bf16[8,72], index: 5, kind: input, shape index: {}]
  %s6 = inlined_call_operand.vmem [shape: f32[8,1], index: 6, kind: input, shape index: {}]
  %s7 = inlined_call_operand.vmem [shape: bf16[8,72], index: 7, kind: input, shape index: {}]
  %s8 = inlined_call_operand.vmem [shape: f32[8,1], index: 8, kind: input, shape index: {}]
  %s9 = inlined_call_operand.vmem [shape: bf16[8,72], index: 9, kind: input, shape index: {}]
  %s10 = inlined_call_operand.vmem [shape: f32[8,1], index: 10, kind: input, shape index: {}]
  %s11 = inlined_call_operand.vmem [shape: bf16[8,144], index: 11, kind: input, shape index: {}]
  %s12 = inlined_call_operand.vmem [shape: f32[8,1], index: 12, kind: input, shape index: {}]
  %s13 = inlined_call_operand.vmem [shape: bf16[8,144], index: 13, kind: input, shape index: {}]
  %s14 = inlined_call_operand.vmem [shape: f32[8,1], index: 14, kind: input, shape index: {}]
  %s15 = inlined_call_operand.vmem [shape: bf16[4,144], index: 15, kind: input, shape index: {}]
  %s16 = inlined_call_operand.vmem [shape: f32[4,1], index: 16, kind: input, shape index: {}]
  %s17 = inlined_call_operand.vmem [shape: f32[2,4,256], index: 17, kind: output, shape index: {}]
  %s18 = sld [smem:[#allocation0]]
  $region101: #{rsu4f_forward.1} parent=0
    _
  %s20 = ssub.s32 1, %s18
  %s21 = scalar_select 0, %s20, %s18
  loop: start=0, step=1, limit=4
  $region2: #{rsu4f_forward.1} parent=0 // loop_pre_header
    _
  $region3: #{rsu4f_forward.1} parent=0 // loop_header
    %s23 = sphi 0, %s27
    %p24 = scmp.ge.s32.totalorder %s23, 4
    %s33 = sphi 0, %s35
    %s36 = sphi 0, %s33
    %s37 = sphi 0, %s36
    %s53 = sphi 0, %s37
    %s57 = sphi 0, %s57
    %s59 = sphi 0, %s57
    %s60 = sphi 0, %s59
    %s74 = sphi 0, %s60
    %s78 = sphi 0, %s78
    %s80 = sphi 0, %s78
    %s81 = sphi 0, %s80
    %s95 = sphi 0, %s81
    %s99 = sphi 0, %s99
    %s101 = sphi 0, %s99
    %s102 = sphi 0, %s101
    %s116 = sphi 0, %s102
    %s120 = sphi 0, %s120
    %s122 = sphi 0, %s120
    %s123 = sphi 0, %s122
    %s137 = sphi 0, %s123
    %s141 = sphi 0, %s141
    %s143 = sphi 0, %s141
    %s144 = sphi 0, %s143
    %s158 = sphi 0, %s144
    %s162 = sphi 0, %s162
    %s164 = sphi 0, %s162
    %s165 = sphi 0, %s164
    %s179 = sphi 0, %s165
    %s183 = sphi 0, %s183
    %s185 = sphi 0, %s183
    %s186 = sphi 0, %s185
    %s200 = sphi 0, %s186
    %s204 = sphi 0, %s204
    %s206 = sphi 0, %s204
    %s207 = sphi 0, %s206
    %s221 = sphi 0, %s207
    %s225 = sphi 0, %s225
    %s227 = sphi 0, %s225
    %s228 = sphi 0, %s227
    %s242 = sphi 0, %s228
    %s246 = sphi 0, %s246
    %s248 = sphi 0, %s246
    %s249 = sphi 0, %s248
    %s263 = sphi 0, %s249
    %s267 = sphi 0, %s267
    %s269 = sphi 0, %s267
    %s270 = sphi 0, %s269
    %s284 = sphi 0, %s270
    %s288 = sphi 0, %s288
    %s290 = sphi 0, %s288
    %s291 = sphi 0, %s290
    %s305 = sphi 0, %s291
    %s309 = sphi 0, %s309
    %s311 = sphi 0, %s309
    %s312 = sphi 0, %s311
    %s326 = sphi 0, %s312
    %s330 = sphi 0, %s330
    %s332 = sphi 0, %s330
    %s333 = sphi 0, %s332
    %s347 = sphi 0, %s333
    %s351 = sphi 0, %s351
    %s353 = sphi 0, %s351
    %s354 = sphi 0, %s353
    %s368 = sphi 0, %s354
    %s372 = sphi 0, %s372
    %s374 = sphi 0, %s372
    %s375 = sphi 0, %s374
    %s389 = sphi 0, %s375
    %s395 = sphi 0, %s397
    %s398 = sphi 0, %s395
    %s399 = sphi 0, %s398
    %s415 = sphi 0, %s399
  $region4: #{rsu4f_forward.1} parent=0 // loop_header_branch
    %26 = sbr.rel (%p24) target = $region8
  $region5: #{rsu4f_forward.1} parent=0 // loop_body
    %s28 = ssub.s32 %s23, 1
    %s29 = ssub.s32 %s23, 2
    %s30 = sadd.s32 %s23, 1
    %s31 = ssub.s32 %s23, %s30
    %p32 = scmp.eq.s32.totalorder %s31, 0
    %s34 = sadd.s32 %s33, 1
    %s35 = scalar_select %p32, %s33, %s34
    %p38 = pneg %p32
    %p39 = scmp.eq.s32.totalorder %s23, 1
    %p40 = por %p38, %p39
    %p41 = scmp.ne.s32.totalorder %s33, %s36
    %p42 = scmp.eq.s32.totalorder %s23, 0
    %p43 = por %p41, %p42
    %p44 = scmp.ne.s32.totalorder %s33, %s36
    %p45 = scmp.eq.s32.totalorder %s28, 1
    %p46 = por %p44, %p45
    %p47 = scmp.ne.s32.totalorder %s36, %s37
    %p48 = scmp.eq.s32.totalorder %s28, 0
    %p49 = por %p47, %p48
    %p50 = scmp.ne.s32.totalorder %s36, %s37
    %p51 = scmp.eq.s32.totalorder %s29, 1
    %p52 = por %p50, %p51
    %p54 = scmp.ne.s32.totalorder %s37, %s53
    %p55 = scmp.eq.s32.totalorder %s29, 0
    %p56 = por %p54, %p55
    %s58 = sadd.s32 %s57, 1
    %p61 = scmp.eq.s32.totalorder %s23, 1
    %p62 = scmp.ne.s32.totalorder %s57, %s59
    %p63 = scmp.eq.s32.totalorder %s23, 0
    %p64 = por %p62, %p63
    %p65 = scmp.ne.s32.totalorder %s57, %s59
    %p66 = scmp.eq.s32.totalorder %s28, 1
    %p67 = por %p65, %p66
    %p68 = scmp.ne.s32.totalorder %s59, %s60
    %p69 = scmp.eq.s32.totalorder %s28, 0
    %p70 = por %p68, %p69
    %p71 = scmp.ne.s32.totalorder %s59, %s60
    %p72 = scmp.eq.s32.totalorder %s29, 1
    %p73 = por %p71, %p72
    %p75 = scmp.ne.s32.totalorder %s60, %s74
    %p76 = scmp.eq.s32.totalorder %s29, 0
    %p77 = por %p75, %p76
    %s79 = sadd.s32 %s78, 1
    %p82 = scmp.eq.s32.totalorder %s23, 1
    %p83 = scmp.ne.s32.totalorder %s78, %s80
    %p84 = scmp.eq.s32.totalorder %s23, 0
    %p85 = por %p83, %p84
    %p86 = scmp.ne.s32.totalorder %s78, %s80
    %p87 = scmp.eq.s32.totalorder %s28, 1
    %p88 = por %p86, %p87
    %p89 = scmp.ne.s32.totalorder %s80, %s81
    %p90 = scmp.eq.s32.totalorder %s28, 0
    %p91 = por %p89, %p90
    %p92 = scmp.ne.s32.totalorder %s80, %s81
    %p93 = scmp.eq.s32.totalorder %s29, 1
    %p94 = por %p92, %p93
    %p96 = scmp.ne.s32.totalorder %s81, %s95
    %p97 = scmp.eq.s32.totalorder %s29, 0
    %p98 = por %p96, %p97
    %s100 = sadd.s32 %s99, 1
    %p103 = scmp.eq.s32.totalorder %s23, 1
    %p104 = scmp.ne.s32.totalorder %s99, %s101
    %p105 = scmp.eq.s32.totalorder %s23, 0
    %p106 = por %p104, %p105
    %p107 = scmp.ne.s32.totalorder %s99, %s101
    %p108 = scmp.eq.s32.totalorder %s28, 1
    %p109 = por %p107, %p108
    %p110 = scmp.ne.s32.totalorder %s101, %s102
    %p111 = scmp.eq.s32.totalorder %s28, 0
    %p112 = por %p110, %p111
    %p113 = scmp.ne.s32.totalorder %s101, %s102
    %p114 = scmp.eq.s32.totalorder %s29, 1
    %p115 = por %p113, %p114
    %p117 = scmp.ne.s32.totalorder %s102, %s116
    %p118 = scmp.eq.s32.totalorder %s29, 0
    %p119 = por %p117, %p118
    %s121 = sadd.s32 %s120, 1
    %p124 = scmp.eq.s32.totalorder %s23, 1
    %p125 = scmp.ne.s32.totalorder %s120, %s122
    %p126 = scmp.eq.s32.totalorder %s23, 0
    %p127 = por %p125, %p126
    %p128 = scmp.ne.s32.totalorder %s120, %s122
    %p129 = scmp.eq.s32.totalorder %s28, 1
    %p130 = por %p128, %p129
    %p131 = scmp.ne.s32.totalorder %s122, %s123
    %p132 = scmp.eq.s32.totalorder %s28, 0
    %p133 = por %p131, %p132
    %p134 = scmp.ne.s32.totalorder %s122, %s123
    %p135 = scmp.eq.s32.totalorder %s29, 1
    %p136 = por %p134, %p135
    %p138 = scmp.ne.s32.totalorder %s123, %s137
    %p139 = scmp.eq.s32.totalorder %s29, 0
    %p140 = por %p138, %p139
    %s142 = sadd.s32 %s141, 1
    %p145 = scmp.eq.s32.totalorder %s23, 1
    %p146 = scmp.ne.s32.totalorder %s141, %s143
    %p147 = scmp.eq.s32.totalorder %s23, 0
    %p148 = por %p146, %p147
    %p149 = scmp.ne.s32.totalorder %s141, %s143
    %p150 = scmp.eq.s32.totalorder %s28, 1
    %p151 = por %p149, %p150
    %p152 = scmp.ne.s32.totalorder %s143, %s144
    %p153 = scmp.eq.s32.totalorder %s28, 0
    %p154 = por %p152, %p153
    %p155 = scmp.ne.s32.totalorder %s143, %s144
    %p156 = scmp.eq.s32.totalorder %s29, 1
    %p157 = por %p155, %p156
    %p159 = scmp.ne.s32.totalorder %s144, %s158
    %p160 = scmp.eq.s32.totalorder %s29, 0
    %p161 = por %p159, %p160
    %s163 = sadd.s32 %s162, 1
    %p166 = scmp.eq.s32.totalorder %s23, 1
    %p167 = scmp.ne.s32.totalorder %s162, %s164
    %p168 = scmp.eq.s32.totalorder %s23, 0
    %p169 = por %p167, %p168
    %p170 = scmp.ne.s32.totalorder %s162, %s164
    %p171 = scmp.eq.s32.totalorder %s28, 1
    %p172 = por %p170, %p171
    %p173 = scmp.ne.s32.totalorder %s164, %s165
    %p174 = scmp.eq.s32.totalorder %s28, 0
    %p175 = por %p173, %p174
    %p176 = scmp.ne.s32.totalorder %s164, %s165
    %p177 = scmp.eq.s32.totalorder %s29, 1
    %p178 = por %p176, %p177
    %p180 = scmp.ne.s32.totalorder %s165, %s179
    %p181 = scmp.eq.s32.totalorder %s29, 0
    %p182 = por %p180, %p181
    %s184 = sadd.s32 %s183, 1
    %p187 = scmp.eq.s32.totalorder %s23, 1
    %p188 = scmp.ne.s32.totalorder %s183, %s185
    %p189 = scmp.eq.s32.totalorder %s23, 0
    %p190 = por %p188, %p189
    %p191 = scmp.ne.s32.totalorder %s183, %s185
    %p192 = scmp.eq.s32.totalorder %s28, 1
    %p193 = por %p191, %p192
    %p194 = scmp.ne.s32.totalorder %s185, %s186
    %p195 = scmp.eq.s32.totalorder %s28, 0
    %p196 = por %p194, %p195
    %p197 = scmp.ne.s32.totalorder %s185, %s186
    %p198 = scmp.eq.s32.totalorder %s29, 1
    %p199 = por %p197, %p198
    %p201 = scmp.ne.s32.totalorder %s186, %s200
    %p202 = scmp.eq.s32.totalorder %s29, 0
    %p203 = por %p201, %p202
    %s205 = sadd.s32 %s204, 1
    %p208 = scmp.eq.s32.totalorder %s23, 1
    %p209 = scmp.ne.s32.totalorder %s204, %s206
    %p210 = scmp.eq.s32.totalorder %s23, 0
    %p211 = por %p209, %p210
    %p212 = scmp.ne.s32.totalorder %s204, %s206
    %p213 = scmp.eq.s32.totalorder %s28, 1
    %p214 = por %p212, %p213
    %p215 = scmp.ne.s32.totalorder %s206, %s207
    %p216 = scmp.eq.s32.totalorder %s28, 0
    %p217 = por %p215, %p216
    %p218 = scmp.ne.s32.totalorder %s206, %s207
    %p219 = scmp.eq.s32.totalorder %s29, 1
    %p220 = por %p218, %p219
    %p222 = scmp.ne.s32.totalorder %s207, %s221
    %p223 = scmp.eq.s32.totalorder %s29, 0
    %p224 = por %p222, %p223
    %s226 = sadd.s32 %s225, 1
    %p229 = scmp.eq.s32.totalorder %s23, 1
    %p230 = scmp.ne.s32.totalorder %s225, %s227
    %p231 = scmp.eq.s32.totalorder %s23, 0
    %p232 = por %p230, %p231
    %p233 = scmp.ne.s32.totalorder %s225, %s227
    %p234 = scmp.eq.s32.totalorder %s28, 1
    %p235 = por %p233, %p234
    %p236 = scmp.ne.s32.totalorder %s227, %s228
    %p237 = scmp.eq.s32.totalorder %s28, 0
    %p238 = por %p236, %p237
    %p239 = scmp.ne.s32.totalorder %s227, %s228
    %p240 = scmp.eq.s32.totalorder %s29, 1
    %p241 = por %p239, %p240
    %p243 = scmp.ne.s32.totalorder %s228, %s242
    %p244 = scmp.eq.s32.totalorder %s29, 0
    %p245 = por %p243, %p244
    %s247 = sadd.s32 %s246, 1
    %p250 = scmp.eq.s32.totalorder %s23, 1
    %p251 = scmp.ne.s32.totalorder %s246, %s248
    %p252 = scmp.eq.s32.totalorder %s23, 0
    %p253 = por %p251, %p252
    %p254 = scmp.ne.s32.totalorder %s246, %s248
    %p255 = scmp.eq.s32.totalorder %s28, 1
    %p256 = por %p254, %p255
    %p257 = scmp.ne.s32.totalorder %s248, %s249
    %p258 = scmp.eq.s32.totalorder %s28, 0
    %p259 = por %p257, %p258
    %p260 = scmp.ne.s32.totalorder %s248, %s249
    %p261 = scmp.eq.s32.totalorder %s29, 1
    %p262 = por %p260, %p261
    %p264 = scmp.ne.s32.totalorder %s249, %s263
    %p265 = scmp.eq.s32.totalorder %s29, 0
    %p266 = por %p264, %p265
    %s268 = sadd.s32 %s267, 1
    %p271 = scmp.eq.s32.totalorder %s23, 1
    %p272 = scmp.ne.s32.totalorder %s267, %s269
    %p273 = scmp.eq.s32.totalorder %s23, 0
    %p274 = por %p272, %p273
    %p275 = scmp.ne.s32.totalorder %s267, %s269
    %p276 = scmp.eq.s32.totalorder %s28, 1
    %p277 = por %p275, %p276
    %p278 = scmp.ne.s32.totalorder %s269, %s270
    %p279 = scmp.eq.s32.totalorder %s28, 0
    %p280 = por %p278, %p279
    %p281 = scmp.ne.s32.totalorder %s269, %s270
    %p282 = scmp.eq.s32.totalorder %s29, 1
    %p283 = por %p281, %p282
    %p285 = scmp.ne.s32.totalorder %s270, %s284
    %p286 = scmp.eq.s32.totalorder %s29, 0
    %p287 = por %p285, %p286
    %s289 = sadd.s32 %s288, 1
    %p292 = scmp.eq.s32.totalorder %s23, 1
    %p293 = scmp.ne.s32.totalorder %s288, %s290
    %p294 = scmp.eq.s32.totalorder %s23, 0
    %p295 = por %p293, %p294
    %p296 = scmp.ne.s32.totalorder %s288, %s290
    %p297 = scmp.eq.s32.totalorder %s28, 1
    %p298 = por %p296, %p297
    %p299 = scmp.ne.s32.totalorder %s290, %s291
    %p300 = scmp.eq.s32.totalorder %s28, 0
    %p301 = por %p299, %p300
    %p302 = scmp.ne.s32.totalorder %s290, %s291
    %p303 = scmp.eq.s32.totalorder %s29, 1
    %p304 = por %p302, %p303
    %p306 = scmp.ne.s32.totalorder %s291, %s305
    %p307 = scmp.eq.s32.totalorder %s29, 0
    %p308 = por %p306, %p307
    %s310 = sadd.s32 %s309, 1
    %p313 = scmp.eq.s32.totalorder %s23, 1
    %p314 = scmp.ne.s32.totalorder %s309, %s311
    %p315 = scmp.eq.s32.totalorder %s23, 0
    %p316 = por %p314, %p315
    %p317 = scmp.ne.s32.totalorder %s309, %s311
    %p318 = scmp.eq.s32.totalorder %s28, 1
    %p319 = por %p317, %p318
    %p320 = scmp.ne.s32.totalorder %s311, %s312
    %p321 = scmp.eq.s32.totalorder %s28, 0
    %p322 = por %p320, %p321
    %p323 = scmp.ne.s32.totalorder %s311, %s312
    %p324 = scmp.eq.s32.totalorder %s29, 1
    %p325 = por %p323, %p324
    %p327 = scmp.ne.s32.totalorder %s312, %s326
    %p328 = scmp.eq.s32.totalorder %s29, 0
    %p329 = por %p327, %p328
    %s331 = sadd.s32 %s330, 1
    %p334 = scmp.eq.s32.totalorder %s23, 1
    %p335 = scmp.ne.s32.totalorder %s330, %s332
    %p336 = scmp.eq.s32.totalorder %s23, 0
    %p337 = por %p335, %p336
    %p338 = scmp.ne.s32.totalorder %s330, %s332
    %p339 = scmp.eq.s32.totalorder %s28, 1
    %p340 = por %p338, %p339
    %p341 = scmp.ne.s32.totalorder %s332, %s333
    %p342 = scmp.eq.s32.totalorder %s28, 0
    %p343 = por %p341, %p342
    %p344 = scmp.ne.s32.totalorder %s332, %s333
    %p345 = scmp.eq.s32.totalorder %s29, 1
    %p346 = por %p344, %p345
    %p348 = scmp.ne.s32.totalorder %s333, %s347
    %p349 = scmp.eq.s32.totalorder %s29, 0
    %p350 = por %p348, %p349
    %s352 = sadd.s32 %s351, 1
    %p355 = scmp.eq.s32.totalorder %s23, 1
    %p356 = scmp.ne.s32.totalorder %s351, %s353
    %p357 = scmp.eq.s32.totalorder %s23, 0
    %p358 = por %p356, %p357
    %p359 = scmp.ne.s32.totalorder %s351, %s353
    %p360 = scmp.eq.s32.totalorder %s28, 1
    %p361 = por %p359, %p360
    %p362 = scmp.ne.s32.totalorder %s353, %s354
    %p363 = scmp.eq.s32.totalorder %s28, 0
    %p364 = por %p362, %p363
    %p365 = scmp.ne.s32.totalorder %s353, %s354
    %p366 = scmp.eq.s32.totalorder %s29, 1
    %p367 = por %p365, %p366
    %p369 = scmp.ne.s32.totalorder %s354, %s368
    %p370 = scmp.eq.s32.totalorder %s29, 0
    %p371 = por %p369, %p370
    %s373 = sadd.s32 %s372, 1
    %p376 = scmp.eq.s32.totalorder %s23, 1
    %p377 = scmp.ne.s32.totalorder %s372, %s374
    %p378 = scmp.eq.s32.totalorder %s23, 0
    %p379 = por %p377, %p378
    %p380 = scmp.ne.s32.totalorder %s372, %s374
    %p381 = scmp.eq.s32.totalorder %s28, 1
    %p382 = por %p380, %p381
    %p383 = scmp.ne.s32.totalorder %s374, %s375
    %p384 = scmp.eq.s32.totalorder %s28, 0
    %p385 = por %p383, %p384
    %p386 = scmp.ne.s32.totalorder %s374, %s375
    %p387 = scmp.eq.s32.totalorder %s29, 1
    %p388 = por %p386, %p387
    %p390 = scmp.ne.s32.totalorder %s375, %s389
    %p391 = scmp.eq.s32.totalorder %s29, 0
    %p392 = por %p390, %p391
    %s393 = ssub.s32 %s23, %s30
    %p394 = scmp.eq.s32.totalorder %s393, 0
    %s396 = sadd.s32 %s395, 1
    %s397 = scalar_select %p394, %s395, %s396
    %p400 = pneg %p394
    %p401 = scmp.eq.s32.totalorder %s23, 1
    %p402 = por %p400, %p401
    %p403 = scmp.ne.s32.totalorder %s395, %s398
    %p404 = scmp.eq.s32.totalorder %s23, 0
    %p405 = por %p403, %p404
    %p406 = scmp.ne.s32.totalorder %s395, %s398
    %p407 = scmp.eq.s32.totalorder %s28, 1
    %p408 = por %p406, %p407
    %p409 = scmp.ne.s32.totalorder %s398, %s399
    %p410 = scmp.eq.s32.totalorder %s28, 0
    %p411 = por %p409, %p410
    %p412 = scmp.ne.s32.totalorder %s398, %s399
    %p413 = scmp.eq.s32.totalorder %s29, 1
    %p414 = por %p412, %p413
    %p416 = scmp.ne.s32.totalorder %s399, %s415
    %p417 = scmp.eq.s32.totalorder %s29, 0
    %p418 = por %p416, %p417
    %p419 = scmp.le.s32.totalorder 1, %s23
    %p420 = scmp.lt.s32.totalorder %s23, 3
    %p421 = pnand %p419, %p420
    %p422 = pneg %p421
    // Predicated region
    $region9: #{rsu4f_forward.1} parent=5 // pred_check
      _
    $region10: #{rsu4f_forward.1} parent=5 // pred_check_branch
      %424 = sbr.rel (%p421) target = $region12
    $region11: #{rsu4f_forward.1} parent=5 // pred_region
      %s425 = ssub.s32 %s23, 1
      // Predicated region
      $region13: #{rsu4f_forward.1} parent=11 // pred_check
        %p426 = pneg %p70
      $region14: #{rsu4f_forward.1} parent=11 // pred_check_branch
        %428 = sbr.rel (%p426) target = $region16
      $region15: #{rsu4f_forward.1} parent=11 // pred_region
        _
      $region16: #{rsu4f_forward.1} parent=11 // pred_fallthru
        _
      // Predicated region
      $region17: #{rsu4f_forward.1} parent=11 // pred_check
        %p429 = pneg %p91
      $region18: #{rsu4f_forward.1} parent=11 // pred_check_branch
        %431 = sbr.rel (%p429) target = $region20
      $region19: #{rsu4f_forward.1} parent=11 // pred_region
        _
      $region20: #{rsu4f_forward.1} parent=11 // pred_fallthru
        _
      // Predicated region
      $region21: #{rsu4f_forward.1} parent=11 // pred_check
        %p432 = pneg %p112
      $region22: #{rsu4f_forward.1} parent=11 // pred_check_branch
        %434 = sbr.rel (%p432) target = $region24
      $region23: #{rsu4f_forward.1} parent=11 // pred_region
        _
      $region24: #{rsu4f_forward.1} parent=11 // pred_fallthru
        _
      // Predicated region
      $region25: #{rsu4f_forward.1} parent=11 // pred_check
        %p435 = pneg %p133
      $region26: #{rsu4f_forward.1} parent=11 // pred_check_branch
        %437 = sbr.rel (%p435) target = $region28
      $region27: #{rsu4f_forward.1} parent=11 // pred_region
        _
      $region28: #{rsu4f_forward.1} parent=11 // pred_fallthru
        _
      // Predicated region
      $region29: #{rsu4f_forward.1} parent=11 // pred_check
        %p438 = pneg %p154
      $region30: #{rsu4f_forward.1} parent=11 // pred_check_branch
        %440 = sbr.rel (%p438) target = $region32
      $region31: #{rsu4f_forward.1} parent=11 // pred_region
        _
      $region32: #{rsu4f_forward.1} parent=11 // pred_fallthru
        _
      // Predicated region
      $region33: #{rsu4f_forward.1} parent=11 // pred_check
        %p441 = pneg %p175
      $region34: #{rsu4f_forward.1} parent=11 // pred_check_branch
        %443 = sbr.rel (%p441) target = $region36
      $region35: #{rsu4f_forward.1} parent=11 // pred_region
        _
      $region36: #{rsu4f_forward.1} parent=11 // pred_fallthru
        _
      // Predicated region
      $region37: #{rsu4f_forward.1} parent=11 // pred_check
        %p444 = pneg %p196
      $region38: #{rsu4f_forward.1} parent=11 // pred_check_branch
        %446 = sbr.rel (%p444) target = $region40
      $region39: #{rsu4f_forward.1} parent=11 // pred_region
        _
      $region40: #{rsu4f_forward.1} parent=11 // pred_fallthru
        _
      // Predicated region
      $region41: #{rsu4f_forward.1} parent=11 // pred_check
        %p447 = pneg %p217
      $region42: #{rsu4f_forward.1} parent=11 // pred_check_branch
        %449 = sbr.rel (%p447) target = $region44
      $region43: #{rsu4f_forward.1} parent=11 // pred_region
        _
      $region44: #{rsu4f_forward.1} parent=11 // pred_fallthru
        _
      // Predicated region
      $region45: #{rsu4f_forward.1} parent=11 // pred_check
        %p450 = pneg %p238
      $region46: #{rsu4f_forward.1} parent=11 // pred_check_branch
        %452 = sbr.rel (%p450) target = $region48
      $region47: #{rsu4f_forward.1} parent=11 // pred_region
        _
      $region48: #{rsu4f_forward.1} parent=11 // pred_fallthru
        _
      // Predicated region
      $region49: #{rsu4f_forward.1} parent=11 // pred_check
        %p453 = pneg %p259
      $region50: #{rsu4f_forward.1} parent=11 // pred_check_branch
        %455 = sbr.rel (%p453) target = $region52
      $region51: #{rsu4f_forward.1} parent=11 // pred_region
        _
      $region52: #{rsu4f_forward.1} parent=11 // pred_fallthru
        _
      // Predicated region
      $region53: #{rsu4f_forward.1} parent=11 // pred_check
        %p456 = pneg %p280
      $region54: #{rsu4f_forward.1} parent=11 // pred_check_branch
        %458 = sbr.rel (%p456) target = $region56
      $region55: #{rsu4f_forward.1} parent=11 // pred_region
        _
      $region56: #{rsu4f_forward.1} parent=11 // pred_fallthru
        _
      // Predicated region
      $region57: #{rsu4f_forward.1} parent=11 // pred_check
        %p459 = pneg %p301
      $region58: #{rsu4f_forward.1} parent=11 // pred_check_branch
        %461 = sbr.rel (%p459) target = $region60
      $region59: #{rsu4f_forward.1} parent=11 // pred_region
        _
      $region60: #{rsu4f_forward.1} parent=11 // pred_fallthru
        _
      // Predicated region
      $region61: #{rsu4f_forward.1} parent=11 // pred_check
        %p462 = pneg %p322
      $region62: #{rsu4f_forward.1} parent=11 // pred_check_branch
        %464 = sbr.rel (%p462) target = $region64
      $region63: #{rsu4f_forward.1} parent=11 // pred_region
        _
      $region64: #{rsu4f_forward.1} parent=11 // pred_fallthru
        _
      // Predicated region
      $region65: #{rsu4f_forward.1} parent=11 // pred_check
        %p465 = pneg %p343
      $region66: #{rsu4f_forward.1} parent=11 // pred_check_branch
        %467 = sbr.rel (%p465) target = $region68
      $region67: #{rsu4f_forward.1} parent=11 // pred_region
        _
      $region68: #{rsu4f_forward.1} parent=11 // pred_fallthru
        _
      // Predicated region
      $region69: #{rsu4f_forward.1} parent=11 // pred_check
        %p468 = pneg %p364
      $region70: #{rsu4f_forward.1} parent=11 // pred_check_branch
        %470 = sbr.rel (%p468) target = $region72
      $region71: #{rsu4f_forward.1} parent=11 // pred_region
        _
      $region72: #{rsu4f_forward.1} parent=11 // pred_fallthru
        _
      // Predicated region
      $region73: #{rsu4f_forward.1} parent=11 // pred_check
        %p471 = pneg %p385
      $region74: #{rsu4f_forward.1} parent=11 // pred_check_branch
        %473 = sbr.rel (%p471) target = $region76
      $region75: #{rsu4f_forward.1} parent=11 // pred_region
        _
      $region76: #{rsu4f_forward.1} parent=11 // pred_fallthru
        _
    $region12: #{rsu4f_forward.1} parent=5 // pred_fallthru
      _
    %p474 = scmp.lt.s32.totalorder %s23, 2
    // Predicated region
    $region77: #{rsu4f_forward.1} parent=5 // pred_check
      %p475 = pneg %p474
    $region78: #{rsu4f_forward.1} parent=5 // pred_check_branch
      %477 = sbr.rel (%p475) target = $region80
    $region79: #{rsu4f_forward.1} parent=5 // pred_region
      // Predicated region
      $region81: #{rsu4f_forward.1} parent=79 // pred_check
        %p478 = pneg %p43
      $region82: #{rsu4f_forward.1} parent=79 // pred_check_branch
        %480 = sbr.rel (%p478) target = $region84
      $region83: #{rsu4f_forward.1} parent=79 // pred_region
        %p481 = scmp.lt.s32.totalorder %s23, 1
        %s482 = scalar_select %p481, %s23, 1
        %s483 = smul.addr %s482, 2
        %s484 = smul.addr %s483, 2
        %s485 = scalar_lea.vmem %s0, %s484
      $region84: #{rsu4f_forward.1} parent=79 // pred_fallthru
        _
    $region80: #{rsu4f_forward.1} parent=5 // pred_fallthru
      _
    %p486 = scmp.le.s32.totalorder 1, %s23
    %p487 = scmp.lt.s32.totalorder %s23, 3
    %p488 = pnand %p486, %p487
    %p489 = pneg %p488
    // Predicated region
    $region85: #{rsu4f_forward.1} parent=5 // pred_check
      _
    $region86: #{rsu4f_forward.1} parent=5 // pred_check_branch
      %491 = sbr.rel (%p488) target = $region88
    $region87: #{rsu4f_forward.1} parent=5 // pred_region
      %s492 = ssub.s32 %s23, 1
      %p493 = scmp.lt.s32.totalorder %s28, 1
      %s494 = scalar_select %p493, %s28, 1
      %s495 = smul.addr %s494, 2
      %s496 = smul.addr %s495, 2
      %s497 = scalar_lea.vmem %s0, %s496
      %p498 = pneg %p49
      %p499 = pneg %p46
      %p500 = pneg %p70
      %p501 = pneg %p67
      %p502 = pneg %p91
      %p503 = pneg %p88
      %p504 = pneg %p112
      %p505 = pneg %p109
      %p506 = pneg %p133
      %p507 = pneg %p130
      %p508 = pneg %p154
      %p509 = pneg %p151
      %p510 = pneg %p175
      %p511 = pneg %p172
      %p512 = pneg %p196
      %p513 = pneg %p193
      %p514 = pneg %p217
      %p515 = pneg %p214
      %p516 = pneg %p238
      %p517 = pneg %p235
      %p518 = pneg %p259
      %p519 = pneg %p256
      %p520 = pneg %p280
      %p521 = pneg %p277
      %p522 = pneg %p301
      %p523 = pneg %p298
      %p524 = pneg %p322
      %p525 = pneg %p319
      %p526 = pneg %p343
      %p527 = pneg %p340
      %p528 = pneg %p364
      %p529 = pneg %p361
      %p530 = pneg %p385
      %p531 = pneg %p382
      %p532 = pneg %p411
      %p533 = pneg %p408
      %p534 = scmp.lt.s32.totalorder %s28, 1
      %s535 = scalar_select %p534, %s28, 1
      %s536 = smul.addr %s535, 2
      %s537 = smul.addr %s536, 4
      %s538 = scalar_lea.vmem %s17, %s537
      %p539 = scmp.lt.s32.totalorder %s28, 1
      %s540 = scalar_select %p539, %s28, 1
      %s541 = smul.addr %s540, 2
      %s542 = smul.addr %s541, 2
      %s543 = scalar_lea.vmem %s0, %s542
      %p544 = scmp.lt.s32.totalorder %s28, 1
      %s545 = scalar_select %p544, %s28, 1
      %s546 = smul.addr %s545, 2
      %s547 = smul.addr %s546, 4
      %s548 = scalar_lea.vmem %s17, %s547
      %552 = vst [vmem:[#allocation9] sm:$0xff] 0
      %553 = vst [vmem:[#allocation9 + $0x18] sm:$0xff] 0
      %554 = vst [vmem:[#allocation9 + $0x10] sm:$0xff] 0
      %555 = vst [vmem:[#allocation9 + $0x28] sm:$0xff] 0
      %v556 = vlaneseq
      %v557 = vand.u32 %v556, 127
      %v558 = vadd.s32 %v557, 128
      %vm559 = vcmp.lt.s32.totalorder %v557, 0
      %v560 = vsub.s32 0, %v557
      %v561 = vsel %vm559, %v560, %v557
      %v562 = vshrl.u32 %v561, 4
      %v563 = vand.u32 %v561, 15
      %v564 = vsub.s32 0, %v563
      %v565 = vsel %vm559, %v564, %v563
      %vm566 = vcmp.lt.s32.totalorder %v558, 0
      %v567 = vsub.s32 0, %v558
      %v568 = vsel %vm566, %v567, %v558
      %v569 = vshrl.u32 %v568, 4
      %v570 = vand.u32 %v568, 15
      %v571 = vsub.s32 0, %v570
      %v572 = vsel %vm566, %v571, %v570
      %vm573 = vcmp.ne.s32.totalorder %v565, 0
      %vm574 = vcmp.ne.s32.totalorder %v572, 0
      %vm575 = vcmp.lt.s32.totalorder %v565, 0
      %vm576 = vcmp.lt.s32.totalorder %v572, 0
      %vm577 = vmand %vm575, %vm573
      %vm578 = vmand %vm576, %vm574
      %v579 = vadd.s32 %v565, 16
      %v580 = vadd.s32 %v572, 16
      %v581 = vsel %vm577, %v579, %v565
      %v582 = vsel %vm578, %v580, %v572
      %v583 = vld [vmem:[%s543] sm:$0xf]
      %585 = vst [vmem:[#allocation1] ss:$2 sm:$0xff] %v583
      %v586 = vld.sshfl [vmem:[#allocation1] sm:$0xff pattern:$0x75643120]
      %588 = vst [vmem:[#allocation9 + $0x8] sm:$0x33] %v586
      %vm589 = vcmp.ge.s32.totalorder %v581, 1
      %vm590 = vcmp.ge.s32.totalorder %v582, 1
      %vm591 = vcmp.lt.s32.totalorder %v581, 15
      %vm592 = vcmp.lt.s32.totalorder %v582, 15
      %v593 = vld [vmem:[#allocation9 + $0x4] sm:$0x33]
      %v594 = vld [vmem:[#allocation9 + $0xc] sm:$0x3]
      %v595 = vsel %vm589, 1, 0
      %v596 = vsel %vm590, 1, 0
      %vm597 = vcmp.eq.s32.totalorder %v595, 1
      %vm598 = vcmp.eq.s32.totalorder %v596, 1
      %vm599 = vmpackc.low %vm598, %vm597
      %v600 = vsel %vm599, 65537, 0
      %601 = vrot.lane.b32.xlu0 %v600, 111
      %v602 = vpop.permute.xlu0 %601
      %v603 = vrot.slane %v602, 4
      %vm604 = vcmask 908288
      %v605 = vsel %vm604, %v603, %v602
      %v606 = vunpack.c.l.b16 %v605
      %v607 = vunpack.c.h.b16 %v605
      %v608 = vunpack.c.l.b16 0
      %v609 = vunpack.c.h.b16 0
      %vm610 = vcmp.ne.s32.totalorder %v606, %v608
      %vm611 = vcmp.ne.s32.totalorder %v607, %v609
      %vm612 = vmpackc.low %vm611, %vm610
      %v613 = vunpack.c.l.b16 %v603
      %v614 = vunpack.c.h.b16 %v603
      %v615 = vunpack.c.l.b16 0
      %v616 = vunpack.c.h.b16 0
      %vm617 = vcmp.ne.s32.totalorder %v613, %v615
      %vm618 = vcmp.ne.s32.totalorder %v614, %v616
      %vm619 = vmpackc.low %vm618, %vm617
      %v620 = vsel %vm612, %v593, 0
      %v621 = vsel %vm619, %v594, 0
      %624 = vrot.lane.b32.xlu0 %v620, 17
      %v625 = vpop.permute.xlu0 %624
      %626 = vrot.lane.b32.xlu0 %v621, 17
      %v627 = vpop.permute.xlu0 %626
      %v628 = vrot.slane %v625, 4
      %v629 = vrot.slane %v627, 4
      %vm630 = vcmask 1043456
      %v631 = vsel %vm630, %v628, %v629
      %vm632 = vcmask 138240
      %v633 = vsel %vm632, %v625, %v631
      %635 = vst [vmem:[#allocation10] sm:$0x33] %v633
      %v636 = vld [vmem:[#allocation9 + $0x4] sm:$0x33]
      %v637 = vld [vmem:[#allocation9 + $0xc] sm:$0x3]
      %v640 = vrot.slane %v636, 6
      %v641 = vrot.slane %v637, 6
      %642 = vrot.lane.b32.xlu0 %v640, 16
      %v643 = vpop.permute.xlu0 %642
      %644 = vrot.lane.b32.xlu0 %v641, 16
      %v645 = vpop.permute.xlu0 %644
      %v646 = vrot.slane %v643, 4
      %v647 = vrot.slane %v645, 4
      %v648 = vsel %vm630, %v646, %v647
      %vm649 = vcmask 130048
      %v650 = vsel %vm649, %v643, %v648
      %652 = vst [vmem:[#allocation10] sm:$0xcc] %v650
      %v653 = vld [vmem:[#allocation9 + $0x4] sm:$0x33]
      %v654 = vld [vmem:[#allocation9 + $0xc] sm:$0x3]
      %v655 = vsel %vm591, 1, 0
      %v656 = vsel %vm592, 1, 0
      %vm657 = vcmp.eq.s32.totalorder %v655, 1
      %vm658 = vcmp.eq.s32.totalorder %v656, 1
      %vm659 = vmpackc.low %vm658, %vm657
      %v660 = vsel %vm659, 65537, 0
      %661 = vrot.lane.b32.xlu0 %v660, 113
      %v662 = vpop.permute.xlu0 %661
      %v663 = vrot.slane %v662, 4
      %vm664 = vcmask 924672
      %v665 = vsel %vm664, %v663, %v662
      %v666 = vunpack.c.l.b16 %v665
      %v667 = vunpack.c.h.b16 %v665
      %v668 = vunpack.c.l.b16 0
      %v669 = vunpack.c.h.b16 0
      %vm670 = vcmp.ne.s32.totalorder %v666, %v668
      %vm671 = vcmp.ne.s32.totalorder %v667, %v669
      %vm672 = vmpackc.low %vm671, %vm670
      %v673 = vunpack.c.l.b16 %v663
      %v674 = vunpack.c.h.b16 %v663
      %v675 = vunpack.c.l.b16 0
      %v676 = vunpack.c.h.b16 0
      %vm677 = vcmp.ne.s32.totalorder %v673, %v675
      %vm678 = vcmp.ne.s32.totalorder %v674, %v676
      %vm679 = vmpackc.low %vm678, %vm677
      %v680 = vsel %vm672, %v653, 0
      %v681 = vsel %vm679, %v654, 0
      %684 = vrot.lane.b32.xlu0 %v680, 15
      %v685 = vpop.permute.xlu0 %684
      %686 = vrot.lane.b32.xlu0 %v681, 15
      %v687 = vpop.permute.xlu0 %686
      %v688 = vrot.slane %v685, 4
      %v689 = vrot.slane %v687, 4
      %v690 = vsel %vm630, %v688, %v689
      %vm691 = vcmask 121856
      %v692 = vsel %vm691, %v685, %v690
      %694 = vst [vmem:[#allocation10 + $0x8] sm:$0x33] %v692
      %v695 = vld [vmem:[#allocation9 + $0x4] sm:$0x33]
      %v696 = vld [vmem:[#allocation9 + $0xc] sm:$0x3]
      %697 = vrot.lane.b32.xlu0 %v600, 127
      %v698 = vpop.permute.xlu0 %697
      %v699 = vrot.slane %v698, 4
      %vm700 = vcmask 1039360
      %v701 = vsel %vm700, %v699, %v698
      %v702 = vunpack.c.l.b16 %v701
      %v703 = vunpack.c.h.b16 %v701
      %v704 = vunpack.c.l.b16 0
      %v705 = vunpack.c.h.b16 0
      %vm706 = vcmp.ne.s32.totalorder %v702, %v704
      %vm707 = vcmp.ne.s32.totalorder %v703, %v705
      %vm708 = vmpackc.low %vm707, %vm706
      %v709 = vunpack.c.l.b16 %v699
      %v710 = vunpack.c.h.b16 %v699
      %v711 = vunpack.c.l.b16 0
      %v712 = vunpack.c.h.b16 0
      %vm713 = vcmp.ne.s32.totalorder %v709, %v711
      %vm714 = vcmp.ne.s32.totalorder %v710, %v712
      %vm715 = vmpackc.low %vm714, %vm713
      %v716 = vsel %vm708, %v695, 0
      %v717 = vsel %vm715, %v696, 0
      %v720 = vrot.slane %v716, 6
      %v721 = vrot.slane %v717, 6
      %722 = vrot.lane.b32.xlu0 %v720, 1
      %v723 = vpop.permute.xlu0 %722
      %724 = vrot.lane.b32.xlu0 %v721, 1
      %v725 = vpop.permute.xlu0 %724
      %v726 = vrot.slane %v723, 4
      %v727 = vrot.slane %v725, 4
      %v728 = vsel %vm630, %v726, %v727
      %vm729 = vcmask 7168
      %v730 = vsel %vm729, %v723, %v728
      %732 = vst [vmem:[#allocation10 + $0x8] sm:$0xcc] %v730
      %v733 = vld [vmem:[#allocation9 + $0x8] sm:$0x33]
      %734 = vst [vmem:[#allocation10 + $0x10] sm:$0x33] %v733
      %v735 = vld [vmem:[#allocation9 + $0x8] sm:$0x33]
      %v736 = vld [vmem:[#allocation9 + $0x10] sm:$0x3]
      %737 = vrot.lane.b32.xlu0 %v660, 1
      %v738 = vpop.permute.xlu0 %737
      %v739 = vrot.slane %v738, 4
      %v740 = vsel %vm729, %v739, %v738
      %v741 = vunpack.c.l.b16 %v740
      %v742 = vunpack.c.h.b16 %v740
      %v743 = vunpack.c.l.b16 0
      %v744 = vunpack.c.h.b16 0
      %vm745 = vcmp.ne.s32.totalorder %v741, %v743
      %vm746 = vcmp.ne.s32.totalorder %v742, %v744
      %vm747 = vmpackc.low %vm746, %vm745
      %v748 = vunpack.c.l.b16 %v739
      %v749 = vunpack.c.h.b16 %v739
      %v750 = vunpack.c.l.b16 0
      %v751 = vunpack.c.h.b16 0
      %vm752 = vcmp.ne.s32.totalorder %v748, %v750
      %vm753 = vcmp.ne.s32.totalorder %v749, %v751
      %vm754 = vmpackc.low %vm753, %vm752
      %v755 = vsel %vm747, %v735, 0
      %v756 = vsel %vm754, %v736, 0
      %v759 = vrot.slane %v755, 6
      %v760 = vrot.slane %v756, 6
      %761 = vrot.lane.b32.xlu0 %v759, 127
      %v762 = vpop.permute.xlu0 %761
      %763 = vrot.lane.b32.xlu0 %v760, 127
      %v764 = vpop.permute.xlu0 %763
      %v765 = vrot.slane %v762, 4
      %v766 = vrot.slane %v764, 4
      %v767 = vsel %vm630, %v765, %v766
      %v768 = vsel %vm700, %v762, %v767
      %770 = vst [vmem:[#allocation10 + $0x10] sm:$0xcc] %v768
      %v771 = vld [vmem:[#allocation9 + $0x8] sm:$0x33]
      %v772 = vld [vmem:[#allocation9 + $0x10] sm:$0x3]
      %773 = vrot.lane.b32.xlu0 %v600, 15
      %v774 = vpop.permute.xlu0 %773
      %v775 = vrot.slane %v774, 4
      %v776 = vsel %vm691, %v775, %v774
      %v777 = vunpack.c.l.b16 %v776
      %v778 = vunpack.c.h.b16 %v776
      %v779 = vunpack.c.l.b16 0
      %v780 = vunpack.c.h.b16 0
      %vm781 = vcmp.ne.s32.totalorder %v777, %v779
      %vm782 = vcmp.ne.s32.totalorder %v778, %v780
      %vm783 = vmpackc.low %vm782, %vm781
      %v784 = vunpack.c.l.b16 %v775
      %v785 = vunpack.c.h.b16 %v775
      %v786 = vunpack.c.l.b16 0
      %v787 = vunpack.c.h.b16 0
      %vm788 = vcmp.ne.s32.totalorder %v784, %v786
      %vm789 = vcmp.ne.s32.totalorder %v785, %v787
      %vm790 = vmpackc.low %vm789, %vm788
      %v791 = vsel %vm783, %v771, 0
      %v792 = vsel %vm790, %v772, 0
      %795 = vrot.lane.b32.xlu0 %v791, 113
      %v796 = vpop.permute.xlu0 %795
      %797 = vrot.lane.b32.xlu0 %v792, 113
      %v798 = vpop.permute.xlu0 %797
      %v799 = vrot.slane %v796, 4
      %v800 = vrot.slane %v798, 4
      %v801 = vsel %vm630, %v799, %v800
      %v802 = vsel %vm664, %v796, %v801
      %804 = vst [vmem:[#allocation10 + $0x18] sm:$0x33] %v802
      %v805 = vld [vmem:[#allocation9 + $0x8] sm:$0x33]
      %v806 = vld [vmem:[#allocation9 + $0x10] sm:$0x3]
      %v809 = vrot.slane %v805, 6
      %v810 = vrot.slane %v806, 6
      %811 = vrot.lane.b32.xlu0 %v809, 112
      %v812 = vpop.permute.xlu0 %811
      %813 = vrot.lane.b32.xlu0 %v810, 112
      %v814 = vpop.permute.xlu0 %813
      %v815 = vrot.slane %v812, 4
      %v816 = vrot.slane %v814, 4
      %v817 = vsel %vm630, %v815, %v816
      %vm818 = vcmask 916480
      %v819 = vsel %vm818, %v812, %v817
      %821 = vst [vmem:[#allocation10 + $0x18] sm:$0xcc] %v819
      %v822 = vld [vmem:[#allocation9 + $0x8] sm:$0x33]
      %v823 = vld [vmem:[#allocation9 + $0x10] sm:$0x3]
      %824 = vrot.lane.b32.xlu0 %v660, 17
      %v825 = vpop.permute.xlu0 %824
      %v826 = vrot.slane %v825, 4
      %v827 = vsel %vm632, %v826, %v825
      %v828 = vunpack.c.l.b16 %v827
      %v829 = vunpack.c.h.b16 %v827
      %v830 = vunpack.c.l.b16 0
      %v831 = vunpack.c.h.b16 0
      %vm832 = vcmp.ne.s32.totalorder %v828, %v830
      %vm833 = vcmp.ne.s32.totalorder %v829, %v831
      %vm834 = vmpackc.low %vm833, %vm832
      %v835 = vunpack.c.l.b16 %v826
      %v836 = vunpack.c.h.b16 %v826
      %v837 = vunpack.c.l.b16 0
      %v838 = vunpack.c.h.b16 0
      %vm839 = vcmp.ne.s32.totalorder %v835, %v837
      %vm840 = vcmp.ne.s32.totalorder %v836, %v838
      %vm841 = vmpackc.low %vm840, %vm839
      %v842 = vsel %vm834, %v822, 0
      %v843 = vsel %vm841, %v823, 0
      %846 = vrot.lane.b32.xlu0 %v842, 111
      %v847 = vpop.permute.xlu0 %846
      %848 = vrot.lane.b32.xlu0 %v843, 111
      %v849 = vpop.permute.xlu0 %848
      %v850 = vrot.slane %v847, 4
      %v851 = vrot.slane %v849, 4
      %v852 = vsel %vm630, %v850, %v851
      %v853 = vsel %vm604, %v847, %v852
      %855 = vst [vmem:[#allocation10 + $0x20] sm:$0x33] %v853
      %v856 = vld [vmem:[%s1] sm:$0x3]
      %v857 = vld [vmem:[#allocation10] sm:$0xff]
      %v858 = vld [vmem:[#allocation10 + $0x8] sm:$0xff]
      %v859 = vld [vmem:[#allocation10 + $0x10] sm:$0xff]
      %v860 = vld [vmem:[#allocation10 + $0x18] sm:$0xff]
      %v861 = vld [vmem:[#allocation10 + $0x20] sm:$0x33]
      %v862 = vld [vmem:[%s2] sm:$0xf]
      %864 = vset.pattern.permute.xlu0 0
      %865 = vperm.xlu0 %864, %v862
      %v866 = vpop.permute.xlu0 %865
      %v873 = vunpack.c.l.b16 %v857
      %v874 = vunpack.c.h.b16 %v857
      %v875 = vunpack.c.l.b16 %v858
      %v876 = vunpack.c.h.b16 %v858
      %v877 = vunpack.c.l.b16 %v859
      %v878 = vunpack.c.h.b16 %v859
      %v879 = vunpack.c.l.b16 %v860
      %v880 = vunpack.c.h.b16 %v860
      %v881 = vunpack.c.l.b16 %v861
      %v882 = vunpack.c.h.b16 %v861
      %v883 = vpack.c.b16 %v875, %v873
      %v884 = vpack.c.b16 %v876, %v874
      %v885 = vpack.c.b16 %v879, %v877
      %v886 = vpack.c.b16 %v880, %v878
      %v887 = vpack.c.b16 %v881, %v881
      %v888 = vpack.c.b16 %v882, %v882
      %vm893 = vcmask 293888
      %v895 = vsel %vm893, %v856, 0
      %vm897 = vcmask 1041408
      %v899 = vsel %vm897, %v887, 0
      %v902 = vsel %vm897, %v888, 0
      %904 = vmatpush.bf16.msra.mxu0 0
      %905 = vmatpush.bf16.msra.mxu0 0
      %906 = vmatpush.bf16.msra.mxu0 0
      %907 = vmatpush.bf16.msra.mxu0 0
      %908 = vmatpush.bf16.msra.mxu0 0
      %909 = vmatpush.bf16.msra.mxu0 %v899
      %910 = vmatpush.bf16.msra.mxu0 %v885
      %911 = vmatpush.bf16.msra.mxu0 %v883
      %912 = vmatmul.bf16.gmra.mxu0 %v895
      %v913 = vpop.f32.mrf.mxu0
      %v914 = vadd.f32 %v866, %v913
      %v915 = vpop.f32.mrf.mxu0
      %916 = vdwg.mxu0
      %917 = vmatpush.bf16.msra.mxu0 0
      %918 = vmatpush.bf16.msra.mxu0 0
      %919 = vmatpush.bf16.msra.mxu0 0
      %920 = vmatpush.bf16.msra.mxu0 0
      %921 = vmatpush.bf16.msra.mxu0 0
      %922 = vmatpush.bf16.msra.mxu0 %v902
      %923 = vmatpush.bf16.msra.mxu0 %v886
      %924 = vmatpush.bf16.msra.mxu0 %v884
      %925 = vmatmul.bf16.gmra.mxu0 %v895
      %v926 = vpop.f32.mrf.mxu0
      %v927 = vadd.f32 %v866, %v926
      %v928 = vpop.f32.mrf.mxu0
      %929 = vdwg.mxu0
      %v930 = vmax.f32 %v914, 0.0
      %v931 = vmax.f32 %v927, 0.0
      %v932 = vpack.c.bf16 %v931, %v930
      %v934 = vrot.slane %v932, 2
      %v937 = vsel %vm897, %v932, %v934
      %939 = vst [vmem:[#allocation2] sm:$0xf] %v937
      %v940 = vld [vmem:[#allocation2] sm:$0xf]
      %942 = vst [vmem:[#allocation1] ss:$2 sm:$0xff] %v940
      %v943 = vld.sshfl [vmem:[#allocation1] sm:$0xff pattern:$0x75643120]
      %945 = vst [vmem:[#allocation9 + $0x8] sm:$0x33] %v943
      %v946 = vld [vmem:[#allocation9 + $0x4] sm:$0x33]
      %v947 = vld [vmem:[#allocation9 + $0xc] sm:$0x3]
      %v948 = vsel %vm612, %v946, 0
      %v949 = vsel %vm619, %v947, 0
      %952 = vrot.lane.b32.xlu0 %v948, 17
      %v953 = vpop.permute.xlu0 %952
      %954 = vrot.lane.b32.xlu0 %v949, 17
      %v955 = vpop.permute.xlu0 %954
      %v956 = vrot.slane %v953, 4
      %v957 = vrot.slane %v955, 4
      %v958 = vsel %vm630, %v956, %v957
      %v959 = vsel %vm632, %v953, %v958
      %961 = vst [vmem:[#allocation10] sm:$0x33] %v959
      %v962 = vld [vmem:[#allocation9 + $0x4] sm:$0x33]
      %v963 = vld [vmem:[#allocation9 + $0xc] sm:$0x3]
      %v966 = vrot.slane %v962, 6
      %v967 = vrot.slane %v963, 6
      %968 = vrot.lane.b32.xlu0 %v966, 16
      %v969 = vpop.permute.xlu0 %968
      %970 = vrot.lane.b32.xlu0 %v967, 16
      %v971 = vpop.permute.xlu0 %970
      %v972 = vrot.slane %v969, 4
      %v973 = vrot.slane %v971, 4
      %v974 = vsel %vm630, %v972, %v973
      %v975 = vsel %vm649, %v969, %v974
      %977 = vst [vmem:[#allocation10] sm:$0xcc] %v975
      %v978 = vld [vmem:[#allocation9 + $0x4] sm:$0x33]
      %v979 = vld [vmem:[#allocation9 + $0xc] sm:$0x3]
      %v980 = vsel %vm672, %v978, 0
      %v981 = vsel %vm679, %v979, 0
      %984 = vrot.lane.b32.xlu0 %v980, 15
      %v985 = vpop.permute.xlu0 %984
      %986 = vrot.lane.b32.xlu0 %v981, 15
      %v987 = vpop.permute.xlu0 %986
      %v988 = vrot.slane %v985, 4
      %v989 = vrot.slane %v987, 4
      %v990 = vsel %vm630, %v988, %v989
      %v991 = vsel %vm691, %v985, %v990
      %993 = vst [vmem:[#allocation10 + $0x8] sm:$0x33] %v991
      %v994 = vld [vmem:[#allocation9 + $0x4] sm:$0x33]
      %v995 = vld [vmem:[#allocation9 + $0xc] sm:$0x3]
      %v996 = vsel %vm708, %v994, 0
      %v997 = vsel %vm715, %v995, 0
      %v1000 = vrot.slane %v996, 6
      %v1001 = vrot.slane %v997, 6
      %1002 = vrot.lane.b32.xlu0 %v1000, 1
      %v1003 = vpop.permute.xlu0 %1002
      %1004 = vrot.lane.b32.xlu0 %v1001, 1
      %v1005 = vpop.permute.xlu0 %1004
      %v1006 = vrot.slane %v1003, 4
      %v1007 = vrot.slane %v1005, 4
      %v1008 = vsel %vm630, %v1006, %v1007
      %v1009 = vsel %vm729, %v1003, %v1008
      %1011 = vst [vmem:[#allocation10 + $0x8] sm:$0xcc] %v1009
      %v1012 = vld [vmem:[#allocation9 + $0x8] sm:$0x33]
      %1013 = vst [vmem:[#allocation10 + $0x10] sm:$0x33] %v1012
      %v1014 = vld [vmem:[#allocation9 + $0x8] sm:$0x33]
      %v1015 = vld [vmem:[#allocation9 + $0x10] sm:$0x3]
      %v1016 = vsel %vm747, %v1014, 0
      %v1017 = vsel %vm754, %v1015, 0
      %v1020 = vrot.slane %v1016, 6
      %v1021 = vrot.slane %v1017, 6
      %1022 = vrot.lane.b32.xlu0 %v1020, 127
      %v1023 = vpop.permute.xlu0 %1022
      %1024 = vrot.lane.b32.xlu0 %v1021, 127
      %v1025 = vpop.permute.xlu0 %1024
      %v1026 = vrot.slane %v1023, 4
      %v1027 = vrot.slane %v1025, 4
      %v1028 = vsel %vm630, %v1026, %v1027
      %v1029 = vsel %vm700, %v1023, %v1028
      %1031 = vst [vmem:[#allocation10 + $0x10] sm:$0xcc] %v1029
      %v1032 = vld [vmem:[#allocation9 + $0x8] sm:$0x33]
      %v1033 = vld [vmem:[#allocation9 + $0x10] sm:$0x3]
      %v1034 = vsel %vm783, %v1032, 0
      %v1035 = vsel %vm790, %v1033, 0
      %1038 = vrot.lane.b32.xlu0 %v1034, 113
      %v1039 = vpop.permute.xlu0 %1038
      %1040 = vrot.lane.b32.xlu0 %v1035, 113
      %v1041 = vpop.permute.xlu0 %1040
      %v1042 = vrot.slane %v1039, 4
      %v1043 = vrot.slane %v1041, 4
      %v1044 = vsel %vm630, %v1042, %v1043
      %v1045 = vsel %vm664, %v1039, %v1044
      %1047 = vst [vmem:[#allocation10 + $0x18] sm:$0x33] %v1045
      %v1048 = vld [vmem:[#allocation9 + $0x8] sm:$0x33]
      %v1049 = vld [vmem:[#allocation9 + $0x10] sm:$0x3]
      %v1052 = vrot.slane %v1048, 6
      %v1053 = vrot.slane %v1049, 6
      %1054 = vrot.lane.b32.xlu0 %v1052, 112
      %v1055 = vpop.permute.xlu0 %1054
      %1056 = vrot.lane.b32.xlu0 %v1053, 112
      %v1057 = vpop.permute.xlu0 %1056
      %v1058 = vrot.slane %v1055, 4
      %v1059 = vrot.slane %v1057, 4
      %v1060 = vsel %vm630, %v1058, %v1059
      %v1061 = vsel %vm818, %v1055, %v1060
      %1063 = vst [vmem:[#allocation10 + $0x18] sm:$0xcc] %v1061
      %v1064 = vld [vmem:[#allocation9 + $0x8] sm:$0x33]
      %v1065 = vld [vmem:[#allocation9 + $0x10] sm:$0x3]
      %v1066 = vsel %vm834, %v1064, 0
      %v1067 = vsel %vm841, %v1065, 0
      %1070 = vrot.lane.b32.xlu0 %v1066, 111
      %v1071 = vpop.permute.xlu0 %1070
      %1072 = vrot.lane.b32.xlu0 %v1067, 111
      %v1073 = vpop.permute.xlu0 %1072
      %v1074 = vrot.slane %v1071, 4
      %v1075 = vrot.slane %v1073, 4
      %v1076 = vsel %vm630, %v1074, %v1075
      %v1077 = vsel %vm604, %v1071, %v1076
      %1079 = vst [vmem:[#allocation10 + $0x20] sm:$0x33] %v1077
      %v1080 = vld [vmem:[%s3] sm:$0xf]
      %v1081 = vld [vmem:[#allocation10] sm:$0xff]
      %v1082 = vld [vmem:[#allocation10 + $0x8] sm:$0xff]
      %v1083 = vld [vmem:[#allocation10 + $0x10] sm:$0xff]
      %v1084 = vld [vmem:[#allocation10 + $0x18] sm:$0xff]
      %v1085 = vld [vmem:[#allocation10 + $0x20] sm:$0x33]
      %v1086 = vld [vmem:[%s4] sm:$0xff]
      %1088 = vset.pattern.permute.xlu0 0
      %1089 = vperm.xlu0 %1088, %v1086
      %v1090 = vpop.permute.xlu0 %1089
      %v1097 = vunpack.c.l.b16 %v1081
      %v1098 = vunpack.c.h.b16 %v1081
      %v1099 = vunpack.c.l.b16 %v1082
      %v1100 = vunpack.c.h.b16 %v1082
      %v1101 = vunpack.c.l.b16 %v1083
      %v1102 = vunpack.c.h.b16 %v1083
      %v1103 = vunpack.c.l.b16 %v1084
      %v1104 = vunpack.c.h.b16 %v1084
      %v1105 = vunpack.c.l.b16 %v1085
      %v1106 = vunpack.c.h.b16 %v1085
      %v1107 = vpack.c.b16 %v1099, %v1097
      %v1108 = vpack.c.b16 %v1100, %v1098
      %v1109 = vpack.c.b16 %v1103, %v1101
      %v1110 = vpack.c.b16 %v1104, %v1102
      %v1111 = vpack.c.b16 %v1105, %v1105
      %v1112 = vpack.c.b16 %v1106, %v1106
      %v1118 = vsel %vm893, %v1080, 0
      %v1121 = vsel %vm897, %v1111, 0
      %v1124 = vsel %vm897, %v1112, 0
      %1126 = vmatpush.bf16.msra.mxu0 0
      %1127 = vmatpush.bf16.msra.mxu0 0
      %1128 = vmatpush.bf16.msra.mxu0 0
      %1129 = vmatpush.bf16.msra.mxu0 0
      %1130 = vmatpush.bf16.msra.mxu0 0
      %1131 = vmatpush.bf16.msra.mxu0 %v1121
      %1132 = vmatpush.bf16.msra.mxu0 %v1109
      %1133 = vmatpush.bf16.msra.mxu0 %v1107
      %1134 = vmatmul.bf16.gmra.mxu0 %v1118
      %v1135 = vpop.f32.mrf.mxu0
      %v1136 = vadd.f32 %v1090, %v1135
      %v1137 = vpop.f32.mrf.mxu0
      %1138 = vdwg.mxu0
      %1139 = vmatpush.bf16.msra.mxu0 0
      %1140 = vmatpush.bf16.msra.mxu0 0
      %1141 = vmatpush.bf16.msra.mxu0 0
      %1142 = vmatpush.bf16.msra.mxu0 0
      %1143 = vmatpush.bf16.msra.mxu0 0
      %1144 = vmatpush.bf16.msra.mxu0 %v1124
      %1145 = vmatpush.bf16.msra.mxu0 %v1110
      %1146 = vmatpush.bf16.msra.mxu0 %v1108
      %1147 = vmatmul.bf16.gmra.mxu0 %v1118
      %v1148 = vpop.f32.mrf.mxu0
      %v1149 = vadd.f32 %v1090, %v1148
      %v1150 = vpop.f32.mrf.mxu0
      %1151 = vdwg.mxu0
      %v1152 = vmax.f32 %v1136, 0.0
      %v1153 = vmax.f32 %v1149, 0.0
      %v1154 = vpack.c.bf16 %v1153, %v1152
      %1155 = vst [vmem:[#allocation3] sm:$0xff] %v1154
      %v1156 = vld [vmem:[#allocation3] sm:$0xff]
      %1157 = vst [vmem:[#allocation9 + $0x8] sm:$0xff] %v1156
      %vm1158 = vcmp.ge.s32.totalorder %v581, 2
      %vm1159 = vcmp.ge.s32.totalorder %v582, 2
      %vm1160 = vcmp.lt.s32.totalorder %v581, 14
      %vm1161 = vcmp.lt.s32.totalorder %v582, 14
      %v1162 = vld [vmem:[#allocation9 + $0x4] sm:$0xff]
      %v1163 = vld [vmem:[#allocation9 + $0xc] sm:$0xf]
      %v1164 = vsel %vm1158, 1, 0
      %v1165 = vsel %vm1159, 1, 0
      %vm1166 = vcmp.eq.s32.totalorder %v1164, 1
      %vm1167 = vcmp.eq.s32.totalorder %v1165, 1
      %vm1168 = vmpackc.low %vm1167, %vm1166
      %v1169 = vsel %vm1168, 65537, 0
      %1170 = vrot.lane.b32.xlu0 %v1169, 94
      %v1171 = vpop.permute.xlu0 %1170
      %v1172 = vrot.slane %v1171, 4
      %vm1173 = vcmask 769024
      %v1174 = vsel %vm1173, %v1172, %v1171
      %v1175 = vunpack.c.l.b16 %v1174
      %v1176 = vunpack.c.h.b16 %v1174
      %v1177 = vunpack.c.l.b16 0
      %v1178 = vunpack.c.h.b16 0
      %vm1179 = vcmp.ne.s32.totalorder %v1175, %v1177
      %vm1180 = vcmp.ne.s32.totalorder %v1176, %v1178
      %vm1181 = vmpackc.low %vm1180, %vm1179
      %v1182 = vunpack.c.l.b16 %v1172
      %v1183 = vunpack.c.h.b16 %v1172
      %v1184 = vunpack.c.l.b16 0
      %v1185 = vunpack.c.h.b16 0
      %vm1186 = vcmp.ne.s32.totalorder %v1182, %v1184
      %vm1187 = vcmp.ne.s32.totalorder %v1183, %v1185
      %vm1188 = vmpackc.low %vm1187, %vm1186
      %v1189 = vsel %vm1181, %v1162, 0
      %v1190 = vsel %vm1188, %v1163, 0
      %1193 = vrot.lane.b32.xlu0 %v1189, 34
      %v1194 = vpop.permute.xlu0 %1193
      %1195 = vrot.lane.b32.xlu0 %v1190, 34
      %v1196 = vpop.permute.xlu0 %1195
      %v1197 = vrot.slane %v1194, 4
      %v1198 = vrot.slane %v1196, 4
      %v1199 = vsel %vm630, %v1197, %v1198
      %vm1200 = vcmask 277504
      %v1201 = vsel %vm1200, %v1194, %v1199
      %1203 = vst [vmem:[#allocation10] sm:$0xff] %v1201
      %v1204 = vld [vmem:[#allocation9 + $0x4] sm:$0xff]
      %v1205 = vld [vmem:[#allocation9 + $0xc] sm:$0xf]
      %1208 = vrot.lane.b32.xlu0 %v1204, 32
      %v1209 = vpop.permute.xlu0 %1208
      %1210 = vrot.lane.b32.xlu0 %v1205, 32
      %v1211 = vpop.permute.xlu0 %1210
      %v1212 = vrot.slane %v1209, 4
      %v1213 = vrot.slane %v1211, 4
      %v1214 = vsel %vm630, %v1212, %v1213
      %vm1215 = vcmask 261120
      %v1216 = vsel %vm1215, %v1209, %v1214
      %1218 = vst [vmem:[#allocation10 + $0x8] sm:$0xff] %v1216
      %v1219 = vld [vmem:[#allocation9 + $0x4] sm:$0xff]
      %v1220 = vld [vmem:[#allocation9 + $0xc] sm:$0xf]
      %v1221 = vsel %vm1160, 1, 0
      %v1222 = vsel %vm1161, 1, 0
      %vm1223 = vcmp.eq.s32.totalorder %v1221, 1
      %vm1224 = vcmp.eq.s32.totalorder %v1222, 1
      %vm1225 = vmpackc.low %vm1224, %vm1223
      %v1226 = vsel %vm1225, 65537, 0
      %1227 = vrot.lane.b32.xlu0 %v1226, 98
      %v1228 = vpop.permute.xlu0 %1227
      %v1229 = vrot.slane %v1228, 4
      %vm1230 = vcmask 801792
      %v1231 = vsel %vm1230, %v1229, %v1228
      %v1232 = vunpack.c.l.b16 %v1231
      %v1233 = vunpack.c.h.b16 %v1231
      %v1234 = vunpack.c.l.b16 0
      %v1235 = vunpack.c.h.b16 0
      %vm1236 = vcmp.ne.s32.totalorder %v1232, %v1234
      %vm1237 = vcmp.ne.s32.totalorder %v1233, %v1235
      %vm1238 = vmpackc.low %vm1237, %vm1236
      %v1239 = vunpack.c.l.b16 %v1229
      %v1240 = vunpack.c.h.b16 %v1229
      %v1241 = vunpack.c.l.b16 0
      %v1242 = vunpack.c.h.b16 0
      %vm1243 = vcmp.ne.s32.totalorder %v1239, %v1241
      %vm1244 = vcmp.ne.s32.totalorder %v1240, %v1242
      %vm1245 = vmpackc.low %vm1244, %vm1243
      %v1246 = vsel %vm1238, %v1219, 0
      %v1247 = vsel %vm1245, %v1220, 0
      %1250 = vrot.lane.b32.xlu0 %v1246, 30
      %v1251 = vpop.permute.xlu0 %1250
      %1252 = vrot.lane.b32.xlu0 %v1247, 30
      %v1253 = vpop.permute.xlu0 %1252
      %v1254 = vrot.slane %v1251, 4
      %v1255 = vrot.slane %v1253, 4
      %v1256 = vsel %vm630, %v1254, %v1255
      %vm1257 = vcmask 244736
      %v1258 = vsel %vm1257, %v1251, %v1256
      %1260 = vst [vmem:[#allocation10 + $0x10] sm:$0xff] %v1258
      %v1261 = vld [vmem:[#allocation9 + $0x4] sm:$0xff]
      %v1262 = vld [vmem:[#allocation9 + $0xc] sm:$0xf]
      %1263 = vrot.lane.b32.xlu0 %v1169, 126
      %v1264 = vpop.permute.xlu0 %1263
      %v1265 = vrot.slane %v1264, 4
      %vm1266 = vcmask 1031168
      %v1267 = vsel %vm1266, %v1265, %v1264
      %v1268 = vunpack.c.l.b16 %v1267
      %v1269 = vunpack.c.h.b16 %v1267
      %v1270 = vunpack.c.l.b16 0
      %v1271 = vunpack.c.h.b16 0
      %vm1272 = vcmp.ne.s32.totalorder %v1268, %v1270
      %vm1273 = vcmp.ne.s32.totalorder %v1269, %v1271
      %vm1274 = vmpackc.low %vm1273, %vm1272
      %v1275 = vunpack.c.l.b16 %v1265
      %v1276 = vunpack.c.h.b16 %v1265
      %v1277 = vunpack.c.l.b16 0
      %v1278 = vunpack.c.h.b16 0
      %vm1279 = vcmp.ne.s32.totalorder %v1275, %v1277
      %vm1280 = vcmp.ne.s32.totalorder %v1276, %v1278
      %vm1281 = vmpackc.low %vm1280, %vm1279
      %v1282 = vsel %vm1274, %v1261, 0
      %v1283 = vsel %vm1281, %v1262, 0
      %1286 = vrot.lane.b32.xlu0 %v1282, 2
      %v1287 = vpop.permute.xlu0 %1286
      %1288 = vrot.lane.b32.xlu0 %v1283, 2
      %v1289 = vpop.permute.xlu0 %1288
      %v1290 = vrot.slane %v1287, 4
      %v1291 = vrot.slane %v1289, 4
      %v1292 = vsel %vm630, %v1290, %v1291
      %vm1293 = vcmask 15360
      %v1294 = vsel %vm1293, %v1287, %v1292
      %1296 = vst [vmem:[#allocation10 + $0x18] sm:$0xff] %v1294
      %v1297 = vld [vmem:[#allocation9 + $0x8] sm:$0xff]
      %1298 = vst [vmem:[#allocation10 + $0x20] sm:$0xff] %v1297
      %v1299 = vld [vmem:[#allocation9 + $0x8] sm:$0xff]
      %v1300 = vld [vmem:[#allocation9 + $0x10] sm:$0xf]
      %1301 = vrot.lane.b32.xlu0 %v1226, 2
      %v1302 = vpop.permute.xlu0 %1301
      %v1303 = vrot.slane %v1302, 4
      %v1304 = vsel %vm1293, %v1303, %v1302
      %v1305 = vunpack.c.l.b16 %v1304
      %v1306 = vunpack.c.h.b16 %v1304
      %v1307 = vunpack.c.l.b16 0
      %v1308 = vunpack.c.h.b16 0
      %vm1309 = vcmp.ne.s32.totalorder %v1305, %v1307
      %vm1310 = vcmp.ne.s32.totalorder %v1306, %v1308
      %vm1311 = vmpackc.low %vm1310, %vm1309
      %v1312 = vunpack.c.l.b16 %v1303
      %v1313 = vunpack.c.h.b16 %v1303
      %v1314 = vunpack.c.l.b16 0
      %v1315 = vunpack.c.h.b16 0
      %vm1316 = vcmp.ne.s32.totalorder %v1312, %v1314
      %vm1317 = vcmp.ne.s32.totalorder %v1313, %v1315
      %vm1318 = vmpackc.low %vm1317, %vm1316
      %v1319 = vsel %vm1311, %v1299, 0
      %v1320 = vsel %vm1318, %v1300, 0
      %1323 = vrot.lane.b32.xlu0 %v1319, 126
      %v1324 = vpop.permute.xlu0 %1323
      %1325 = vrot.lane.b32.xlu0 %v1320, 126
      %v1326 = vpop.permute.xlu0 %1325
      %v1327 = vrot.slane %v1324, 4
      %v1328 = vrot.slane %v1326, 4
      %v1329 = vsel %vm630, %v1327, %v1328
      %v1330 = vsel %vm1266, %v1324, %v1329
      %1332 = vst [vmem:[#allocation10 + $0x28] sm:$0xff] %v1330
      %v1333 = vld [vmem:[#allocation9 + $0x8] sm:$0xff]
      %v1334 = vld [vmem:[#allocation9 + $0x10] sm:$0xf]
      %1335 = vrot.lane.b32.xlu0 %v1169, 30
      %v1336 = vpop.permute.xlu0 %1335
      %v1337 = vrot.slane %v1336, 4
      %v1338 = vsel %vm1257, %v1337, %v1336
      %v1339 = vunpack.c.l.b16 %v1338
      %v1340 = vunpack.c.h.b16 %v1338
      %v1341 = vunpack.c.l.b16 0
      %v1342 = vunpack.c.h.b16 0
      %vm1343 = vcmp.ne.s32.totalorder %v1339, %v1341
      %vm1344 = vcmp.ne.s32.totalorder %v1340, %v1342
      %vm1345 = vmpackc.low %vm1344, %vm1343
      %v1346 = vunpack.c.l.b16 %v1337
      %v1347 = vunpack.c.h.b16 %v1337
      %v1348 = vunpack.c.l.b16 0
      %v1349 = vunpack.c.h.b16 0
      %vm1350 = vcmp.ne.s32.totalorder %v1346, %v1348
      %vm1351 = vcmp.ne.s32.totalorder %v1347, %v1349
      %vm1352 = vmpackc.low %vm1351, %vm1350
      %v1353 = vsel %vm1345, %v1333, 0
      %v1354 = vsel %vm1352, %v1334, 0
      %1357 = vrot.lane.b32.xlu0 %v1353, 98
      %v1358 = vpop.permute.xlu0 %1357
      %1359 = vrot.lane.b32.xlu0 %v1354, 98
      %v1360 = vpop.permute.xlu0 %1359
      %v1361 = vrot.slane %v1358, 4
      %v1362 = vrot.slane %v1360, 4
      %v1363 = vsel %vm630, %v1361, %v1362
      %v1364 = vsel %vm1230, %v1358, %v1363
      %1366 = vst [vmem:[#allocation10 + $0x30] sm:$0xff] %v1364
      %v1367 = vld [vmem:[#allocation9 + $0x8] sm:$0xff]
      %v1368 = vld [vmem:[#allocation9 + $0x10] sm:$0xf]
      %1371 = vrot.lane.b32.xlu0 %v1367, 96
      %v1372 = vpop.permute.xlu0 %1371
      %1373 = vrot.lane.b32.xlu0 %v1368, 96
      %v1374 = vpop.permute.xlu0 %1373
      %v1375 = vrot.slane %v1372, 4
      %v1376 = vrot.slane %v1374, 4
      %v1377 = vsel %vm630, %v1375, %v1376
      %vm1378 = vcmask 785408
      %v1379 = vsel %vm1378, %v1372, %v1377
      %1381 = vst [vmem:[#allocation10 + $0x38] sm:$0xff] %v1379
      %v1382 = vld [vmem:[#allocation9 + $0x8] sm:$0xff]
      %v1383 = vld [vmem:[#allocation9 + $0x10] sm:$0xf]
      %1384 = vrot.lane.b32.xlu0 %v1226, 34
      %v1385 = vpop.permute.xlu0 %1384
      %v1386 = vrot.slane %v1385, 4
      %v1387 = vsel %vm1200, %v1386, %v1385
      %v1388 = vunpack.c.l.b16 %v1387
      %v1389 = vunpack.c.h.b16 %v1387
      %v1390 = vunpack.c.l.b16 0
      %v1391 = vunpack.c.h.b16 0
      %vm1392 = vcmp.ne.s32.totalorder %v1388, %v1390
      %vm1393 = vcmp.ne.s32.totalorder %v1389, %v1391
      %vm1394 = vmpackc.low %vm1393, %vm1392
      %v1395 = vunpack.c.l.b16 %v1386
      %v1396 = vunpack.c.h.b16 %v1386
      %v1397 = vunpack.c.l.b16 0
      %v1398 = vunpack.c.h.b16 0
      %vm1399 = vcmp.ne.s32.totalorder %v1395, %v1397
      %vm1400 = vcmp.ne.s32.totalorder %v1396, %v1398
      %vm1401 = vmpackc.low %vm1400, %vm1399
      %v1402 = vsel %vm1394, %v1382, 0
      %v1403 = vsel %vm1401, %v1383, 0
      %1406 = vrot.lane.b32.xlu0 %v1402, 94
      %v1407 = vpop.permute.xlu0 %1406
      %1408 = vrot.lane.b32.xlu0 %v1403, 94
      %v1409 = vpop.permute.xlu0 %1408
      %v1410 = vrot.slane %v1407, 4
      %v1411 = vrot.slane %v1409, 4
      %v1412 = vsel %vm630, %v1410, %v1411
      %v1413 = vsel %vm1173, %v1407, %v1412
      %1415 = vst [vmem:[#allocation10 + $0x40] sm:$0xff] %v1413
      %v1416 = vld [vmem:[%s5] sm:$0xf]
      %v1417 = vld [vmem:[#allocation10] sm:$0xff]
      %v1418 = vld [vmem:[#allocation10 + $0x8] sm:$0xff]
      %v1419 = vld [vmem:[#allocation10 + $0x10] sm:$0xff]
      %v1420 = vld [vmem:[#allocation10 + $0x18] sm:$0xff]
      %v1421 = vld [vmem:[#allocation10 + $0x20] sm:$0xff]
      %v1422 = vld [vmem:[#allocation10 + $0x28] sm:$0xff]
      %v1423 = vld [vmem:[#allocation10 + $0x30] sm:$0xff]
      %v1424 = vld [vmem:[#allocation10 + $0x38] sm:$0xff]
      %v1425 = vld [vmem:[#allocation10 + $0x40] sm:$0xff]
      %v1426 = vld [vmem:[%s6] sm:$0xff]
      %1428 = vset.pattern.permute.xlu0 0
      %1429 = vperm.xlu0 %1428, %v1426
      %v1430 = vpop.permute.xlu0 %1429
      %v1441 = vunpack.c.l.b16 %v1417
      %v1442 = vunpack.c.h.b16 %v1417
      %v1443 = vunpack.c.l.b16 %v1418
      %v1444 = vunpack.c.h.b16 %v1418
      %v1445 = vunpack.c.l.b16 %v1419
      %v1446 = vunpack.c.h.b16 %v1419
      %v1447 = vunpack.c.l.b16 %v1420
      %v1448 = vunpack.c.h.b16 %v1420
      %v1449 = vunpack.c.l.b16 %v1421
      %v1450 = vunpack.c.h.b16 %v1421
      %v1451 = vunpack.c.l.b16 %v1422
      %v1452 = vunpack.c.h.b16 %v1422
      %v1453 = vunpack.c.l.b16 %v1423
      %v1454 = vunpack.c.h.b16 %v1423
      %v1455 = vunpack.c.l.b16 %v1424
      %v1456 = vunpack.c.h.b16 %v1424
      %v1457 = vunpack.c.l.b16 %v1425
      %v1458 = vunpack.c.h.b16 %v1425
      %v1459 = vpack.c.b16 %v1443, %v1441
      %v1460 = vpack.c.b16 %v1444, %v1442
      %v1461 = vpack.c.b16 %v1447, %v1445
      %v1462 = vpack.c.b16 %v1448, %v1446
      %v1463 = vpack.c.b16 %v1451, %v1449
      %v1464 = vpack.c.b16 %v1452, %v1450
      %v1465 = vpack.c.b16 %v1455, %v1453
      %v1466 = vpack.c.b16 %v1456, %v1454
      %v1467 = vpack.c.b16 %v1457, %v1457
      %v1468 = vpack.c.b16 %v1458, %v1458
      %vm1477 = vcmask 588800
      %v1479 = vsel %vm1477, %v1416, 0
      %vm1481 = vcmask 1043456
      %v1483 = vsel %vm1481, %v1467, 0
      %v1486 = vsel %vm1481, %v1468, 0
      %1488 = vmatpush.bf16.msra.mxu0 0
      %1489 = vmatpush.bf16.msra.mxu0 0
      %1490 = vmatpush.bf16.msra.mxu0 0
      %1491 = vmatpush.bf16.msra.mxu0 %v1483
      %1492 = vmatpush.bf16.msra.mxu0 %v1465
      %1493 = vmatpush.bf16.msra.mxu0 %v1463
      %1494 = vmatpush.bf16.msra.mxu0 %v1461
      %1495 = vmatpush.bf16.msra.mxu0 %v1459
      %1496 = vmatmul.bf16.gmra.mxu0 %v1479
      %v1497 = vpop.f32.mrf.mxu0
      %v1498 = vadd.f32 %v1430, %v1497
      %v1499 = vpop.f32.mrf.mxu0
      %1500 = vdwg.mxu0
      %1501 = vmatpush.bf16.msra.mxu0 0
      %1502 = vmatpush.bf16.msra.mxu0 0
      %1503 = vmatpush.bf16.msra.mxu0 0
      %1504 = vmatpush.bf16.msra.mxu0 %v1486
      %1505 = vmatpush.bf16.msra.mxu0 %v1466
      %1506 = vmatpush.bf16.msra.mxu0 %v1464
      %1507 = vmatpush.bf16.msra.mxu0 %v1462
      %1508 = vmatpush.bf16.msra.mxu0 %v1460
      %1509 = vmatmul.bf16.gmra.mxu0 %v1479
      %v1510 = vpop.f32.mrf.mxu0
      %v1511 = vadd.f32 %v1430, %v1510
      %v1512 = vpop.f32.mrf.mxu0
      %1513 = vdwg.mxu0
      %v1514 = vmax.f32 %v1498, 0.0
      %v1515 = vmax.f32 %v1511, 0.0
      %v1516 = vpack.c.bf16 %v1515, %v1514
      %1517 = vst [vmem:[#allocation4] sm:$0xff] %v1516
      %v1518 = vld [vmem:[#allocation4] sm:$0xff]
      %1519 = vst [vmem:[#allocation9 + $0x8] sm:$0xff] %v1518
      %vm1520 = vcmp.ge.s32.totalorder %v581, 4
      %vm1521 = vcmp.ge.s32.totalorder %v582, 4
      %vm1522 = vcmp.lt.s32.totalorder %v581, 12
      %vm1523 = vcmp.lt.s32.totalorder %v582, 12
      %v1524 = vld [vmem:[#allocation9 + $0x4] sm:$0xff]
      %v1525 = vld [vmem:[#allocation9 + $0xc] sm:$0xf]
      %v1526 = vsel %vm1520, 1, 0
      %v1527 = vsel %vm1521, 1, 0
      %vm1528 = vcmp.eq.s32.totalorder %v1526, 1
      %vm1529 = vcmp.eq.s32.totalorder %v1527, 1
      %vm1530 = vmpackc.low %vm1529, %vm1528
      %v1531 = vsel %vm1530, 65537, 0
      %1532 = vrot.lane.b32.xlu0 %v1531, 60
      %v1533 = vpop.permute.xlu0 %1532
      %v1534 = vrot.slane %v1533, 4
      %vm1535 = vcmask 490496
      %v1536 = vsel %vm1535, %v1534, %v1533
      %v1537 = vunpack.c.l.b16 %v1536
      %v1538 = vunpack.c.h.b16 %v1536
      %v1539 = vunpack.c.l.b16 0
      %v1540 = vunpack.c.h.b16 0
      %vm1541 = vcmp.ne.s32.totalorder %v1537, %v1539
      %vm1542 = vcmp.ne.s32.totalorder %v1538, %v1540
      %vm1543 = vmpackc.low %vm1542, %vm1541
      %v1544 = vunpack.c.l.b16 %v1534
      %v1545 = vunpack.c.h.b16 %v1534
      %v1546 = vunpack.c.l.b16 0
      %v1547 = vunpack.c.h.b16 0
      %vm1548 = vcmp.ne.s32.totalorder %v1544, %v1546
      %vm1549 = vcmp.ne.s32.totalorder %v1545, %v1547
      %vm1550 = vmpackc.low %vm1549, %vm1548
      %v1551 = vsel %vm1543, %v1524, 0
      %v1552 = vsel %vm1550, %v1525, 0
      %1555 = vrot.lane.b32.xlu0 %v1551, 68
      %v1556 = vpop.permute.xlu0 %1555
      %1557 = vrot.lane.b32.xlu0 %v1552, 68
      %v1558 = vpop.permute.xlu0 %1557
      %v1559 = vrot.slane %v1556, 4
      %v1560 = vrot.slane %v1558, 4
      %v1561 = vsel %vm630, %v1559, %v1560
      %vm1562 = vcmask 556032
      %v1563 = vsel %vm1562, %v1556, %v1561
      %1565 = vst [vmem:[#allocation10] sm:$0xff] %v1563
      %v1566 = vld [vmem:[#allocation9 + $0x4] sm:$0xff]
      %v1567 = vld [vmem:[#allocation9 + $0xc] sm:$0xf]
      %1570 = vrot.lane.b32.xlu0 %v1566, 64
      %v1571 = vpop.permute.xlu0 %1570
      %1572 = vrot.lane.b32.xlu0 %v1567, 64
      %v1573 = vpop.permute.xlu0 %1572
      %v1574 = vrot.slane %v1571, 4
      %v1575 = vrot.slane %v1573, 4
      %v1576 = vsel %vm630, %v1574, %v1575
      %vm1577 = vcmask 523264
      %v1578 = vsel %vm1577, %v1571, %v1576
      %1580 = vst [vmem:[#allocation10 + $0x8] sm:$0xff] %v1578
      %v1581 = vld [vmem:[#allocation9 + $0x4] sm:$0xff]
      %v1582 = vld [vmem:[#allocation9 + $0xc] sm:$0xf]
      %v1583 = vsel %vm1522, 1, 0
      %v1584 = vsel %vm1523, 1, 0
      %vm1585 = vcmp.eq.s32.totalorder %v1583, 1
      %vm1586 = vcmp.eq.s32.totalorder %v1584, 1
      %vm1587 = vmpackc.low %vm1586, %vm1585
      %v1588 = vsel %vm1587, 65537, 0
      %1589 = vrot.lane.b32.xlu0 %v1588, 68
      %v1590 = vpop.permute.xlu0 %1589
      %v1591 = vrot.slane %v1590, 4
      %v1592 = vsel %vm1562, %v1591, %v1590
      %v1593 = vunpack.c.l.b16 %v1592
      %v1594 = vunpack.c.h.b16 %v1592
      %v1595 = vunpack.c.l.b16 0
      %v1596 = vunpack.c.h.b16 0
      %vm1597 = vcmp.ne.s32.totalorder %v1593, %v1595
      %vm1598 = vcmp.ne.s32.totalorder %v1594, %v1596
      %vm1599 = vmpackc.low %vm1598, %vm1597
      %v1600 = vunpack.c.l.b16 %v1591
      %v1601 = vunpack.c.h.b16 %v1591
      %v1602 = vunpack.c.l.b16 0
      %v1603 = vunpack.c.h.b16 0
      %vm1604 = vcmp.ne.s32.totalorder %v1600, %v1602
      %vm1605 = vcmp.ne.s32.totalorder %v1601, %v1603
      %vm1606 = vmpackc.low %vm1605, %vm1604
      %v1607 = vsel %vm1599, %v1581, 0
      %v1608 = vsel %vm1606, %v1582, 0
      %1611 = vrot.lane.b32.xlu0 %v1607, 60
      %v1612 = vpop.permute.xlu0 %1611
      %1613 = vrot.lane.b32.xlu0 %v1608, 60
      %v1614 = vpop.permute.xlu0 %1613
      %v1615 = vrot.slane %v1612, 4
      %v1616 = vrot.slane %v1614, 4
      %v1617 = vsel %vm630, %v1615, %v1616
      %v1618 = vsel %vm1535, %v1612, %v1617
      %1620 = vst [vmem:[#allocation10 + $0x10] sm:$0xff] %v1618
      %v1621 = vld [vmem:[#allocation9 + $0x4] sm:$0xff]
      %v1622 = vld [vmem:[#allocation9 + $0xc] sm:$0xf]
      %1623 = vrot.lane.b32.xlu0 %v1531, 124
      %v1624 = vpop.permute.xlu0 %1623
      %v1625 = vrot.slane %v1624, 4
      %vm1626 = vcmask 1014784
      %v1627 = vsel %vm1626, %v1625, %v1624
      %v1628 = vunpack.c.l.b16 %v1627
      %v1629 = vunpack.c.h.b16 %v1627
      %v1630 = vunpack.c.l.b16 0
      %v1631 = vunpack.c.h.b16 0
      %vm1632 = vcmp.ne.s32.totalorder %v1628, %v1630
      %vm1633 = vcmp.ne.s32.totalorder %v1629, %v1631
      %vm1634 = vmpackc.low %vm1633, %vm1632
      %v1635 = vunpack.c.l.b16 %v1625
      %v1636 = vunpack.c.h.b16 %v1625
      %v1637 = vunpack.c.l.b16 0
      %v1638 = vunpack.c.h.b16 0
      %vm1639 = vcmp.ne.s32.totalorder %v1635, %v1637
      %vm1640 = vcmp.ne.s32.totalorder %v1636, %v1638
      %vm1641 = vmpackc.low %vm1640, %vm1639
      %v1642 = vsel %vm1634, %v1621, 0
      %v1643 = vsel %vm1641, %v1622, 0
      %1646 = vrot.lane.b32.xlu0 %v1642, 4
      %v1647 = vpop.permute.xlu0 %1646
      %1648 = vrot.lane.b32.xlu0 %v1643, 4
      %v1649 = vpop.permute.xlu0 %1648
      %v1650 = vrot.slane %v1647, 4
      %v1651 = vrot.slane %v1649, 4
      %v1652 = vsel %vm630, %v1650, %v1651
      %vm1653 = vcmask 31744
      %v1654 = vsel %vm1653, %v1647, %v1652
      %1656 = vst [vmem:[#allocation10 + $0x18] sm:$0xff] %v1654
      %v1657 = vld [vmem:[#allocation9 + $0x8] sm:$0xff]
      %1658 = vst [vmem:[#allocation10 + $0x20] sm:$0xff] %v1657
      %v1659 = vld [vmem:[#allocation9 + $0x8] sm:$0xff]
      %v1660 = vld [vmem:[#allocation9 + $0x10] sm:$0xf]
      %1661 = vrot.lane.b32.xlu0 %v1588, 4
      %v1662 = vpop.permute.xlu0 %1661
      %v1663 = vrot.slane %v1662, 4
      %v1664 = vsel %vm1653, %v1663, %v1662
      %v1665 = vunpack.c.l.b16 %v1664
      %v1666 = vunpack.c.h.b16 %v1664
      %v1667 = vunpack.c.l.b16 0
      %v1668 = vunpack.c.h.b16 0
      %vm1669 = vcmp.ne.s32.totalorder %v1665, %v1667
      %vm1670 = vcmp.ne.s32.totalorder %v1666, %v1668
      %vm1671 = vmpackc.low %vm1670, %vm1669
      %v1672 = vunpack.c.l.b16 %v1663
      %v1673 = vunpack.c.h.b16 %v1663
      %v1674 = vunpack.c.l.b16 0
      %v1675 = vunpack.c.h.b16 0
      %vm1676 = vcmp.ne.s32.totalorder %v1672, %v1674
      %vm1677 = vcmp.ne.s32.totalorder %v1673, %v1675
      %vm1678 = vmpackc.low %vm1677, %vm1676
      %v1679 = vsel %vm1671, %v1659, 0
      %v1680 = vsel %vm1678, %v1660, 0
      %1683 = vrot.lane.b32.xlu0 %v1679, 124
      %v1684 = vpop.permute.xlu0 %1683
      %1685 = vrot.lane.b32.xlu0 %v1680, 124
      %v1686 = vpop.permute.xlu0 %1685
      %v1687 = vrot.slane %v1684, 4
      %v1688 = vrot.slane %v1686, 4
      %v1689 = vsel %vm630, %v1687, %v1688
      %v1690 = vsel %vm1626, %v1684, %v1689
      %1692 = vst [vmem:[#allocation10 + $0x28] sm:$0xff] %v1690
      %v1693 = vld [vmem:[#allocation9 + $0x8] sm:$0xff]
      %v1694 = vld [vmem:[#allocation9 + $0x10] sm:$0xf]
      %v1695 = vsel %vm1543, %v1693, 0
      %v1696 = vsel %vm1550, %v1694, 0
      %1699 = vrot.lane.b32.xlu0 %v1695, 68
      %v1700 = vpop.permute.xlu0 %1699
      %1701 = vrot.lane.b32.xlu0 %v1696, 68
      %v1702 = vpop.permute.xlu0 %1701
      %v1703 = vrot.slane %v1700, 4
      %v1704 = vrot.slane %v1702, 4
      %v1705 = vsel %vm630, %v1703, %v1704
      %v1706 = vsel %vm1562, %v1700, %v1705
      %1708 = vst [vmem:[#allocation10 + $0x30] sm:$0xff] %v1706
      %v1709 = vld [vmem:[#allocation9 + $0x8] sm:$0xff]
      %v1710 = vld [vmem:[#allocation9 + $0x10] sm:$0xf]
      %1713 = vrot.lane.b32.xlu0 %v1709, 64
      %v1714 = vpop.permute.xlu0 %1713
      %1715 = vrot.lane.b32.xlu0 %v1710, 64
      %v1716 = vpop.permute.xlu0 %1715
      %v1717 = vrot.slane %v1714, 4
      %v1718 = vrot.slane %v1716, 4
      %v1719 = vsel %vm630, %v1717, %v1718
      %v1720 = vsel %vm1577, %v1714, %v1719
      %1722 = vst [vmem:[#allocation10 + $0x38] sm:$0xff] %v1720
      %v1723 = vld [vmem:[#allocation9 + $0x8] sm:$0xff]
      %v1724 = vld [vmem:[#allocation9 + $0x10] sm:$0xf]
      %v1725 = vsel %vm1599, %v1723, 0
      %v1726 = vsel %vm1606, %v1724, 0
      %1729 = vrot.lane.b32.xlu0 %v1725, 60
      %v1730 = vpop.permute.xlu0 %1729
      %1731 = vrot.lane.b32.xlu0 %v1726, 60
      %v1732 = vpop.permute.xlu0 %1731
      %v1733 = vrot.slane %v1730, 4
      %v1734 = vrot.slane %v1732, 4
      %v1735 = vsel %vm630, %v1733, %v1734
      %v1736 = vsel %vm1535, %v1730, %v1735
      %1738 = vst [vmem:[#allocation10 + $0x40] sm:$0xff] %v1736
      %v1739 = vld [vmem:[%s7] sm:$0xf]
      %v1740 = vld [vmem:[#allocation10] sm:$0xff]
      %v1741 = vld [vmem:[#allocation10 + $0x8] sm:$0xff]
      %v1742 = vld [vmem:[#allocation10 + $0x10] sm:$0xff]
      %v1743 = vld [vmem:[#allocation10 + $0x18] sm:$0xff]
      %v1744 = vld [vmem:[#allocation10 + $0x20] sm:$0xff]
      %v1745 = vld [vmem:[#allocation10 + $0x28] sm:$0xff]
      %v1746 = vld [vmem:[#allocation10 + $0x30] sm:$0xff]
      %v1747 = vld [vmem:[#allocation10 + $0x38] sm:$0xff]
      %v1748 = vld [vmem:[#allocation10 + $0x40] sm:$0xff]
      %v1749 = vld [vmem:[%s8] sm:$0xff]
      %1751 = vset.pattern.permute.xlu0 0
      %1752 = vperm.xlu0 %1751, %v1749
      %v1753 = vpop.permute.xlu0 %1752
      %v1764 = vunpack.c.l.b16 %v1740
      %v1765 = vunpack.c.h.b16 %v1740
      %v1766 = vunpack.c.l.b16 %v1741
      %v1767 = vunpack.c.h.b16 %v1741
      %v1768 = vunpack.c.l.b16 %v1742
      %v1769 = vunpack.c.h.b16 %v1742
      %v1770 = vunpack.c.l.b16 %v1743
      %v1771 = vunpack.c.h.b16 %v1743
      %v1772 = vunpack.c.l.b16 %v1744
      %v1773 = vunpack.c.h.b16 %v1744
      %v1774 = vunpack.c.l.b16 %v1745
      %v1775 = vunpack.c.h.b16 %v1745
      %v1776 = vunpack.c.l.b16 %v1746
      %v1777 = vunpack.c.h.b16 %v1746
      %v1778 = vunpack.c.l.b16 %v1747
      %v1779 = vunpack.c.h.b16 %v1747
      %v1780 = vunpack.c.l.b16 %v1748
      %v1781 = vunpack.c.h.b16 %v1748
      %v1782 = vpack.c.b16 %v1766, %v1764
      %v1783 = vpack.c.b16 %v1767, %v1765
      %v1784 = vpack.c.b16 %v1770, %v1768
      %v1785 = vpack.c.b16 %v1771, %v1769
      %v1786 = vpack.c.b16 %v1774, %v1772
      %v1787 = vpack.c.b16 %v1775, %v1773
      %v1788 = vpack.c.b16 %v1778, %v1776
      %v1789 = vpack.c.b16 %v1779, %v1777
      %v1790 = vpack.c.b16 %v1780, %v1780
      %v1791 = vpack.c.b16 %v1781, %v1781
      %v1801 = vsel %vm1477, %v1739, 0
      %v1804 = vsel %vm1481, %v1790, 0
      %v1807 = vsel %vm1481, %v1791, 0
      %1809 = vmatpush.bf16.msra.mxu0 0
      %1810 = vmatpush.bf16.msra.mxu0 0
      %1811 = vmatpush.bf16.msra.mxu0 0
      %1812 = vmatpush.bf16.msra.mxu0 %v1804
      %1813 = vmatpush.bf16.msra.mxu0 %v1788
      %1814 = vmatpush.bf16.msra.mxu0 %v1786
      %1815 = vmatpush.bf16.msra.mxu0 %v1784
      %1816 = vmatpush.bf16.msra.mxu0 %v1782
      %1817 = vmatmul.bf16.gmra.mxu0 %v1801
      %v1818 = vpop.f32.mrf.mxu0
      %v1819 = vadd.f32 %v1753, %v1818
      %v1820 = vpop.f32.mrf.mxu0
      %1821 = vdwg.mxu0
      %1822 = vmatpush.bf16.msra.mxu0 0
      %1823 = vmatpush.bf16.msra.mxu0 0
      %1824 = vmatpush.bf16.msra.mxu0 0
      %1825 = vmatpush.bf16.msra.mxu0 %v1807
      %1826 = vmatpush.bf16.msra.mxu0 %v1789
      %1827 = vmatpush.bf16.msra.mxu0 %v1787
      %1828 = vmatpush.bf16.msra.mxu0 %v1785
      %1829 = vmatpush.bf16.msra.mxu0 %v1783
      %1830 = vmatmul.bf16.gmra.mxu0 %v1801
      %v1831 = vpop.f32.mrf.mxu0
      %v1832 = vadd.f32 %v1753, %v1831
      %v1833 = vpop.f32.mrf.mxu0
      %1834 = vdwg.mxu0
      %v1835 = vmax.f32 %v1819, 0.0
      %v1836 = vmax.f32 %v1832, 0.0
      %v1837 = vpack.c.bf16 %v1836, %v1835
      %1838 = vst [vmem:[#allocation5] sm:$0xff] %v1837
      %v1839 = vld [vmem:[#allocation5] sm:$0xff]
      %1840 = vst [vmem:[#allocation9 + $0x8] sm:$0xff] %v1839
      %vm1841 = vcmp.ge.s32.totalorder %v581, 8
      %vm1842 = vcmp.ge.s32.totalorder %v582, 8
      %vm1843 = vcmp.lt.s32.totalorder %v581, 8
      %vm1844 = vcmp.lt.s32.totalorder %v582, 8
      %v1845 = vld [vmem:[#allocation9] sm:$0xff]
      %v1846 = vld [vmem:[#allocation9 + $0x8] sm:$0xf]
      %v1847 = vsel %vm1841, 1, 0
      %v1848 = vsel %vm1842, 1, 0
      %vm1849 = vcmp.eq.s32.totalorder %v1847, 1
      %vm1850 = vcmp.eq.s32.totalorder %v1848, 1
      %vm1851 = vmpackc.low %vm1850, %vm1849
      %v1852 = vsel %vm1851, 65537, 0
      %1853 = vrot.lane.b32.xlu0 %v1852, 120
      %v1854 = vpop.permute.xlu0 %1853
      %v1855 = vrot.slane %v1854, 4
      %vm1856 = vcmask 982016
      %v1857 = vsel %vm1856, %v1855, %v1854
      %v1858 = vunpack.c.l.b16 %v1857
      %v1859 = vunpack.c.h.b16 %v1857
      %v1860 = vunpack.c.l.b16 0
      %v1861 = vunpack.c.h.b16 0
      %vm1862 = vcmp.ne.s32.totalorder %v1858, %v1860
      %vm1863 = vcmp.ne.s32.totalorder %v1859, %v1861
      %vm1864 = vmpackc.low %vm1863, %vm1862
      %v1865 = vunpack.c.l.b16 %v1855
      %v1866 = vunpack.c.h.b16 %v1855
      %v1867 = vunpack.c.l.b16 0
      %v1868 = vunpack.c.h.b16 0
      %vm1869 = vcmp.ne.s32.totalorder %v1865, %v1867
      %vm1870 = vcmp.ne.s32.totalorder %v1866, %v1868
      %vm1871 = vmpackc.low %vm1870, %vm1869
      %v1872 = vsel %vm1864, %v1845, 0
      %v1873 = vsel %vm1871, %v1846, 0
      %1876 = vrot.lane.b32.xlu0 %v1872, 8
      %v1877 = vpop.permute.xlu0 %1876
      %1878 = vrot.lane.b32.xlu0 %v1873, 8
      %v1879 = vpop.permute.xlu0 %1878
      %v1880 = vrot.slane %v1877, 4
      %v1881 = vrot.slane %v1879, 4
      %v1882 = vsel %vm630, %v1880, %v1881
      %vm1883 = vcmask 64512
      %v1884 = vsel %vm1883, %v1877, %v1882
      %1886 = vst [vmem:[#allocation10] sm:$0xff] %v1884
      %v1887 = vld [vmem:[#allocation9 + $0x4] sm:$0xff]
      %1888 = vst [vmem:[#allocation10 + $0x8] sm:$0xff] %v1887
      %v1889 = vld [vmem:[#allocation9 + $0x4] sm:$0xff]
      %v1890 = vld [vmem:[#allocation9 + $0xc] sm:$0xf]
      %v1891 = vsel %vm1843, 1, 0
      %v1892 = vsel %vm1844, 1, 0
      %vm1893 = vcmp.eq.s32.totalorder %v1891, 1
      %vm1894 = vcmp.eq.s32.totalorder %v1892, 1
      %vm1895 = vmpackc.low %vm1894, %vm1893
      %v1896 = vsel %vm1895, 65537, 0
      %1897 = vrot.lane.b32.xlu0 %v1896, 8
      %v1898 = vpop.permute.xlu0 %1897
      %v1899 = vrot.slane %v1898, 4
      %v1900 = vsel %vm1883, %v1899, %v1898
      %v1901 = vunpack.c.l.b16 %v1900
      %v1902 = vunpack.c.h.b16 %v1900
      %v1903 = vunpack.c.l.b16 0
      %v1904 = vunpack.c.h.b16 0
      %vm1905 = vcmp.ne.s32.totalorder %v1901, %v1903
      %vm1906 = vcmp.ne.s32.totalorder %v1902, %v1904
      %vm1907 = vmpackc.low %vm1906, %vm1905
      %v1908 = vunpack.c.l.b16 %v1899
      %v1909 = vunpack.c.h.b16 %v1899
      %v1910 = vunpack.c.l.b16 0
      %v1911 = vunpack.c.h.b16 0
      %vm1912 = vcmp.ne.s32.totalorder %v1908, %v1910
      %vm1913 = vcmp.ne.s32.totalorder %v1909, %v1911
      %vm1914 = vmpackc.low %vm1913, %vm1912
      %v1915 = vsel %vm1907, %v1889, 0
      %v1916 = vsel %vm1914, %v1890, 0
      %1919 = vrot.lane.b32.xlu0 %v1915, 120
      %v1920 = vpop.permute.xlu0 %1919
      %1921 = vrot.lane.b32.xlu0 %v1916, 120
      %v1922 = vpop.permute.xlu0 %1921
      %v1923 = vrot.slane %v1920, 4
      %v1924 = vrot.slane %v1922, 4
      %v1925 = vsel %vm630, %v1923, %v1924
      %v1926 = vsel %vm1856, %v1920, %v1925
      %1928 = vst [vmem:[#allocation10 + $0x10] sm:$0xff] %v1926
      %v1929 = vld [vmem:[#allocation9 + $0x4] sm:$0xff]
      %v1930 = vld [vmem:[#allocation9 + $0xc] sm:$0xf]
      %v1931 = vsel %vm1864, %v1929, 0
      %v1932 = vsel %vm1871, %v1930, 0
      %1935 = vrot.lane.b32.xlu0 %v1931, 8
      %v1936 = vpop.permute.xlu0 %1935
      %1937 = vrot.lane.b32.xlu0 %v1932, 8
      %v1938 = vpop.permute.xlu0 %1937
      %v1939 = vrot.slane %v1936, 4
      %v1940 = vrot.slane %v1938, 4
      %v1941 = vsel %vm630, %v1939, %v1940
      %v1942 = vsel %vm1883, %v1936, %v1941
      %1944 = vst [vmem:[#allocation10 + $0x18] sm:$0xff] %v1942
      %v1945 = vld [vmem:[#allocation9 + $0x8] sm:$0xff]
      %1946 = vst [vmem:[#allocation10 + $0x20] sm:$0xff] %v1945
      %v1947 = vld [vmem:[#allocation9 + $0x8] sm:$0xff]
      %v1948 = vld [vmem:[#allocation9 + $0x10] sm:$0xf]
      %v1949 = vsel %vm1907, %v1947, 0
      %v1950 = vsel %vm1914, %v1948, 0
      %1953 = vrot.lane.b32.xlu0 %v1949, 120
      %v1954 = vpop.permute.xlu0 %1953
      %1955 = vrot.lane.b32.xlu0 %v1950, 120
      %v1956 = vpop.permute.xlu0 %1955
      %v1957 = vrot.slane %v1954, 4
      %v1958 = vrot.slane %v1956, 4
      %v1959 = vsel %vm630, %v1957, %v1958
      %v1960 = vsel %vm1856, %v1954, %v1959
      %1962 = vst [vmem:[#allocation10 + $0x28] sm:$0xff] %v1960
      %v1963 = vld [vmem:[#allocation9 + $0x8] sm:$0xff]
      %v1964 = vld [vmem:[#allocation9 + $0x10] sm:$0xf]
      %v1965 = vsel %vm1864, %v1963, 0
      %v1966 = vsel %vm1871, %v1964, 0
      %1969 = vrot.lane.b32.xlu0 %v1965, 8
      %v1970 = vpop.permute.xlu0 %1969
      %1971 = vrot.lane.b32.xlu0 %v1966, 8
      %v1972 = vpop.permute.xlu0 %1971
      %v1973 = vrot.slane %v1970, 4
      %v1974 = vrot.slane %v1972, 4
      %v1975 = vsel %vm630, %v1973, %v1974
      %v1976 = vsel %vm1883, %v1970, %v1975
      %1978 = vst [vmem:[#allocation10 + $0x30] sm:$0xff] %v1976
      %v1979 = vld [vmem:[#allocation9 + $0xc] sm:$0xff]
      %1980 = vst [vmem:[#allocation10 + $0x38] sm:$0xff] %v1979
      %v1981 = vld [vmem:[#allocation9 + $0xc] sm:$0xff]
      %v1982 = vld [vmem:[#allocation9 + $0x14] sm:$0xf]
      %v1983 = vsel %vm1907, %v1981, 0
      %v1984 = vsel %vm1914, %v1982, 0
      %1987 = vrot.lane.b32.xlu0 %v1983, 120
      %v1988 = vpop.permute.xlu0 %1987
      %1989 = vrot.lane.b32.xlu0 %v1984, 120
      %v1990 = vpop.permute.xlu0 %1989
      %v1991 = vrot.slane %v1988, 4
      %v1992 = vrot.slane %v1990, 4
      %v1993 = vsel %vm630, %v1991, %v1992
      %v1994 = vsel %vm1856, %v1988, %v1993
      %1996 = vst [vmem:[#allocation10 + $0x40] sm:$0xff] %v1994
      %v1997 = vld [vmem:[%s9] sm:$0xf]
      %v1998 = vld [vmem:[#allocation10] sm:$0xff]
      %v1999 = vld [vmem:[#allocation10 + $0x8] sm:$0xff]
      %v2000 = vld [vmem:[#allocation10 + $0x10] sm:$0xff]
      %v2001 = vld [vmem:[#allocation10 + $0x18] sm:$0xff]
      %v2002 = vld [vmem:[#allocation10 + $0x20] sm:$0xff]
      %v2003 = vld [vmem:[#allocation10 + $0x28] sm:$0xff]
      %v2004 = vld [vmem:[#allocation10 + $0x30] sm:$0xff]
      %v2005 = vld [vmem:[#allocation10 + $0x38] sm:$0xff]
      %v2006 = vld [vmem:[#allocation10 + $0x40] sm:$0xff]
      %v2007 = vld [vmem:[%s10] sm:$0xff]
      %2009 = vset.pattern.permute.xlu0 0
      %2010 = vperm.xlu0 %2009, %v2007
      %v2011 = vpop.permute.xlu0 %2010
      %v2022 = vunpack.c.l.b16 %v1998
      %v2023 = vunpack.c.h.b16 %v1998
      %v2024 = vunpack.c.l.b16 %v1999
      %v2025 = vunpack.c.h.b16 %v1999
      %v2026 = vunpack.c.l.b16 %v2000
      %v2027 = vunpack.c.h.b16 %v2000
      %v2028 = vunpack.c.l.b16 %v2001
      %v2029 = vunpack.c.h.b16 %v2001
      %v2030 = vunpack.c.l.b16 %v2002
      %v2031 = vunpack.c.h.b16 %v2002
      %v2032 = vunpack.c.l.b16 %v2003
      %v2033 = vunpack.c.h.b16 %v2003
      %v2034 = vunpack.c.l.b16 %v2004
      %v2035 = vunpack.c.h.b16 %v2004
      %v2036 = vunpack.c.l.b16 %v2005
      %v2037 = vunpack.c.h.b16 %v2005
      %v2038 = vunpack.c.l.b16 %v2006
      %v2039 = vunpack.c.h.b16 %v2006
      %v2040 = vpack.c.b16 %v2024, %v2022
      %v2041 = vpack.c.b16 %v2025, %v2023
      %v2042 = vpack.c.b16 %v2028, %v2026
      %v2043 = vpack.c.b16 %v2029, %v2027
      %v2044 = vpack.c.b16 %v2032, %v2030
      %v2045 = vpack.c.b16 %v2033, %v2031
      %v2046 = vpack.c.b16 %v2036, %v2034
      %v2047 = vpack.c.b16 %v2037, %v2035
      %v2048 = vpack.c.b16 %v2038, %v2038
      %v2049 = vpack.c.b16 %v2039, %v2039
      %v2059 = vsel %vm1477, %v1997, 0
      %v2062 = vsel %vm1481, %v2048, 0
      %v2065 = vsel %vm1481, %v2049, 0
      %2067 = vmatpush.bf16.msra.mxu0 0
      %2068 = vmatpush.bf16.msra.mxu0 0
      %2069 = vmatpush.bf16.msra.mxu0 0
      %2070 = vmatpush.bf16.msra.mxu0 %v2062
      %2071 = vmatpush.bf16.msra.mxu0 %v2046
      %2072 = vmatpush.bf16.msra.mxu0 %v2044
      %2073 = vmatpush.bf16.msra.mxu0 %v2042
      %2074 = vmatpush.bf16.msra.mxu0 %v2040
      %2075 = vmatmul.bf16.gmra.mxu0 %v2059
      %v2076 = vpop.f32.mrf.mxu0
      %v2077 = vadd.f32 %v2011, %v2076
      %v2078 = vpop.f32.mrf.mxu0
      %2079 = vdwg.mxu0
      %2080 = vmatpush.bf16.msra.mxu0 0
      %2081 = vmatpush.bf16.msra.mxu0 0
      %2082 = vmatpush.bf16.msra.mxu0 0
      %2083 = vmatpush.bf16.msra.mxu0 %v2065
      %2084 = vmatpush.bf16.msra.mxu0 %v2047
      %2085 = vmatpush.bf16.msra.mxu0 %v2045
      %2086 = vmatpush.bf16.msra.mxu0 %v2043
      %2087 = vmatpush.bf16.msra.mxu0 %v2041
      %2088 = vmatmul.bf16.gmra.mxu0 %v2059
      %v2089 = vpop.f32.mrf.mxu0
      %v2090 = vadd.f32 %v2011, %v2089
      %v2091 = vpop.f32.mrf.mxu0
      %2092 = vdwg.mxu0
      %v2093 = vmax.f32 %v2077, 0.0
      %v2094 = vmax.f32 %v2090, 0.0
      %v2095 = vpack.c.bf16 %v2094, %v2093
      %2096 = vst [vmem:[#allocation6] sm:$0xff] %v2095
      %v2097 = vld [vmem:[#allocation6] sm:$0xff]
      %v2098 = vld [vmem:[#allocation5] sm:$0xff]
      %2099 = vst [vmem:[#allocation9 + $0x8] sm:$0xff] %v2097
      %2100 = vst [vmem:[#allocation9 + $0x20] sm:$0xff] %v2098
      %v2101 = vld [vmem:[#allocation9 + $0x4] sm:$0xff]
      %v2102 = vld [vmem:[#allocation9 + $0xc] sm:$0xf]
      %v2103 = vld [vmem:[#allocation9 + $0x1c] sm:$0xff]
      %v2104 = vld [vmem:[#allocation9 + $0x24] sm:$0xf]
      %v2105 = vsel %vm1543, %v2101, 0
      %v2106 = vsel %vm1550, %v2102, 0
      %v2107 = vsel %vm1543, %v2103, 0
      %v2108 = vsel %vm1550, %v2104, 0
      %2113 = vrot.lane.b32.xlu0 %v2105, 68
      %v2114 = vpop.permute.xlu0 %2113
      %2115 = vrot.lane.b32.xlu0 %v2106, 68
      %v2116 = vpop.permute.xlu0 %2115
      %2117 = vrot.lane.b32.xlu0 %v2107, 68
      %v2118 = vpop.permute.xlu0 %2117
      %2119 = vrot.lane.b32.xlu0 %v2108, 68
      %v2120 = vpop.permute.xlu0 %2119
      %v2121 = vrot.slane %v2114, 4
      %v2122 = vrot.slane %v2116, 4
      %v2123 = vrot.slane %v2118, 4
      %v2124 = vrot.slane %v2120, 4
      %v2125 = vsel %vm630, %v2121, %v2122
      %v2126 = vsel %vm1562, %v2114, %v2125
      %v2127 = vsel %vm630, %v2123, %v2124
      %v2128 = vsel %vm1562, %v2118, %v2127
      %2131 = vst [vmem:[#allocation10] sm:$0xff] %v2126
      %2132 = vst [vmem:[#allocation10 + $0x8] sm:$0xff] %v2128
      %v2133 = vld [vmem:[#allocation9 + $0x4] sm:$0xff]
      %v2134 = vld [vmem:[#allocation9 + $0xc] sm:$0xf]
      %v2135 = vld [vmem:[#allocation9 + $0x1c] sm:$0xff]
      %v2136 = vld [vmem:[#allocation9 + $0x24] sm:$0xf]
      %2141 = vrot.lane.b32.xlu0 %v2133, 64
      %v2142 = vpop.permute.xlu0 %2141
      %2143 = vrot.lane.b32.xlu0 %v2134, 64
      %v2144 = vpop.permute.xlu0 %2143
      %2145 = vrot.lane.b32.xlu0 %v2135, 64
      %v2146 = vpop.permute.xlu0 %2145
      %2147 = vrot.lane.b32.xlu0 %v2136, 64
      %v2148 = vpop.permute.xlu0 %2147
      %v2149 = vrot.slane %v2142, 4
      %v2150 = vrot.slane %v2144, 4
      %v2151 = vrot.slane %v2146, 4
      %v2152 = vrot.slane %v2148, 4
      %v2153 = vsel %vm630, %v2149, %v2150
      %v2154 = vsel %vm1577, %v2142, %v2153
      %v2155 = vsel %vm630, %v2151, %v2152
      %v2156 = vsel %vm1577, %v2146, %v2155
      %2159 = vst [vmem:[#allocation10 + $0x10] sm:$0xff] %v2154
      %2160 = vst [vmem:[#allocation10 + $0x18] sm:$0xff] %v2156
      %v2161 = vld [vmem:[#allocation9 + $0x4] sm:$0xff]
      %v2162 = vld [vmem:[#allocation9 + $0xc] sm:$0xf]
      %v2163 = vld [vmem:[#allocation9 + $0x1c] sm:$0xff]
      %v2164 = vld [vmem:[#allocation9 + $0x24] sm:$0xf]
      %v2165 = vsel %vm1599, %v2161, 0
      %v2166 = vsel %vm1606, %v2162, 0
      %v2167 = vsel %vm1599, %v2163, 0
      %v2168 = vsel %vm1606, %v2164, 0
      %2173 = vrot.lane.b32.xlu0 %v2165, 60
      %v2174 = vpop.permute.xlu0 %2173
      %2175 = vrot.lane.b32.xlu0 %v2166, 60
      %v2176 = vpop.permute.xlu0 %2175
      %2177 = vrot.lane.b32.xlu0 %v2167, 60
      %v2178 = vpop.permute.xlu0 %2177
      %2179 = vrot.lane.b32.xlu0 %v2168, 60
      %v2180 = vpop.permute.xlu0 %2179
      %v2181 = vrot.slane %v2174, 4
      %v2182 = vrot.slane %v2176, 4
      %v2183 = vrot.slane %v2178, 4
      %v2184 = vrot.slane %v2180, 4
      %v2185 = vsel %vm630, %v2181, %v2182
      %v2186 = vsel %vm1535, %v2174, %v2185
      %v2187 = vsel %vm630, %v2183, %v2184
      %v2188 = vsel %vm1535, %v2178, %v2187
      %2191 = vst [vmem:[#allocation10 + $0x20] sm:$0xff] %v2186
      %2192 = vst [vmem:[#allocation10 + $0x28] sm:$0xff] %v2188
      %v2193 = vld [vmem:[#allocation9 + $0x4] sm:$0xff]
      %v2194 = vld [vmem:[#allocation9 + $0xc] sm:$0xf]
      %v2195 = vld [vmem:[#allocation9 + $0x1c] sm:$0xff]
      %v2196 = vld [vmem:[#allocation9 + $0x24] sm:$0xf]
      %v2197 = vsel %vm1634, %v2193, 0
      %v2198 = vsel %vm1641, %v2194, 0
      %v2199 = vsel %vm1634, %v2195, 0
      %v2200 = vsel %vm1641, %v2196, 0
      %2205 = vrot.lane.b32.xlu0 %v2197, 4
      %v2206 = vpop.permute.xlu0 %2205
      %2207 = vrot.lane.b32.xlu0 %v2198, 4
      %v2208 = vpop.permute.xlu0 %2207
      %2209 = vrot.lane.b32.xlu0 %v2199, 4
      %v2210 = vpop.permute.xlu0 %2209
      %2211 = vrot.lane.b32.xlu0 %v2200, 4
      %v2212 = vpop.permute.xlu0 %2211
      %v2213 = vrot.slane %v2206, 4
      %v2214 = vrot.slane %v2208, 4
      %v2215 = vrot.slane %v2210, 4
      %v2216 = vrot.slane %v2212, 4
      %v2217 = vsel %vm630, %v2213, %v2214
      %v2218 = vsel %vm1653, %v2206, %v2217
      %v2219 = vsel %vm630, %v2215, %v2216
      %v2220 = vsel %vm1653, %v2210, %v2219
      %2223 = vst [vmem:[#allocation10 + $0x30] sm:$0xff] %v2218
      %2224 = vst [vmem:[#allocation10 + $0x38] sm:$0xff] %v2220
      %v2225 = vld [vmem:[#allocation9 + $0x8] sm:$0xff]
      %v2226 = vld [vmem:[#allocation9 + $0x20] sm:$0xff]
      %2227 = vst [vmem:[#allocation10 + $0x40] sm:$0xff] %v2225
      %2228 = vst [vmem:[#allocation10 + $0x48] sm:$0xff] %v2226
      %v2229 = vld [vmem:[#allocation9 + $0x8] sm:$0xff]
      %v2230 = vld [vmem:[#allocation9 + $0x10] sm:$0xf]
      %v2231 = vld [vmem:[#allocation9 + $0x20] sm:$0xff]
      %v2232 = vld [vmem:[#allocation9 + $0x28] sm:$0xf]
      %v2233 = vsel %vm1671, %v2229, 0
      %v2234 = vsel %vm1678, %v2230, 0
      %v2235 = vsel %vm1671, %v2231, 0
      %v2236 = vsel %vm1678, %v2232, 0
      %2241 = vrot.lane.b32.xlu0 %v2233, 124
      %v2242 = vpop.permute.xlu0 %2241
      %2243 = vrot.lane.b32.xlu0 %v2234, 124
      %v2244 = vpop.permute.xlu0 %2243
      %2245 = vrot.lane.b32.xlu0 %v2235, 124
      %v2246 = vpop.permute.xlu0 %2245
      %2247 = vrot.lane.b32.xlu0 %v2236, 124
      %v2248 = vpop.permute.xlu0 %2247
      %v2249 = vrot.slane %v2242, 4
      %v2250 = vrot.slane %v2244, 4
      %v2251 = vrot.slane %v2246, 4
      %v2252 = vrot.slane %v2248, 4
      %v2253 = vsel %vm630, %v2249, %v2250
      %v2254 = vsel %vm1626, %v2242, %v2253
      %v2255 = vsel %vm630, %v2251, %v2252
      %v2256 = vsel %vm1626, %v2246, %v2255
      %2259 = vst [vmem:[#allocation10 + $0x50] sm:$0xff] %v2254
      %2260 = vst [vmem:[#allocation10 + $0x58] sm:$0xff] %v2256
      %v2261 = vld [vmem:[#allocation9 + $0x8] sm:$0xff]
      %v2262 = vld [vmem:[#allocation9 + $0x10] sm:$0xf]
      %v2263 = vld [vmem:[#allocation9 + $0x20] sm:$0xff]
      %v2264 = vld [vmem:[#allocation9 + $0x28] sm:$0xf]
      %v2265 = vsel %vm1543, %v2261, 0
      %v2266 = vsel %vm1550, %v2262, 0
      %v2267 = vsel %vm1543, %v2263, 0
      %v2268 = vsel %vm1550, %v2264, 0
      %2273 = vrot.lane.b32.xlu0 %v2265, 68
      %v2274 = vpop.permute.xlu0 %2273
      %2275 = vrot.lane.b32.xlu0 %v2266, 68
      %v2276 = vpop.permute.xlu0 %2275
      %2277 = vrot.lane.b32.xlu0 %v2267, 68
      %v2278 = vpop.permute.xlu0 %2277
      %2279 = vrot.lane.b32.xlu0 %v2268, 68
      %v2280 = vpop.permute.xlu0 %2279
      %v2281 = vrot.slane %v2274, 4
      %v2282 = vrot.slane %v2276, 4
      %v2283 = vrot.slane %v2278, 4
      %v2284 = vrot.slane %v2280, 4
      %v2285 = vsel %vm630, %v2281, %v2282
      %v2286 = vsel %vm1562, %v2274, %v2285
      %v2287 = vsel %vm630, %v2283, %v2284
      %v2288 = vsel %vm1562, %v2278, %v2287
      %2291 = vst [vmem:[#allocation10 + $0x60] sm:$0xff] %v2286
      %2292 = vst [vmem:[#allocation10 + $0x68] sm:$0xff] %v2288
      %v2293 = vld [vmem:[#allocation9 + $0x8] sm:$0xff]
      %v2294 = vld [vmem:[#allocation9 + $0x10] sm:$0xf]
      %v2295 = vld [vmem:[#allocation9 + $0x20] sm:$0xff]
      %v2296 = vld [vmem:[#allocation9 + $0x28] sm:$0xf]
      %2301 = vrot.lane.b32.xlu0 %v2293, 64
      %v2302 = vpop.permute.xlu0 %2301
      %2303 = vrot.lane.b32.xlu0 %v2294, 64
      %v2304 = vpop.permute.xlu0 %2303
      %2305 = vrot.lane.b32.xlu0 %v2295, 64
      %v2306 = vpop.permute.xlu0 %2305
      %2307 = vrot.lane.b32.xlu0 %v2296, 64
      %v2308 = vpop.permute.xlu0 %2307
      %v2309 = vrot.slane %v2302, 4
      %v2310 = vrot.slane %v2304, 4
      %v2311 = vrot.slane %v2306, 4
      %v2312 = vrot.slane %v2308, 4
      %v2313 = vsel %vm630, %v2309, %v2310
      %v2314 = vsel %vm1577, %v2302, %v2313
      %v2315 = vsel %vm630, %v2311, %v2312
      %v2316 = vsel %vm1577, %v2306, %v2315
      %2319 = vst [vmem:[#allocation10 + $0x70] sm:$0xff] %v2314
      %2320 = vst [vmem:[#allocation10 + $0x78] sm:$0xff] %v2316
      %v2321 = vld [vmem:[#allocation9 + $0x8] sm:$0xff]
      %v2322 = vld [vmem:[#allocation9 + $0x10] sm:$0xf]
      %v2323 = vld [vmem:[#allocation9 + $0x20] sm:$0xff]
      %v2324 = vld [vmem:[#allocation9 + $0x28] sm:$0xf]
      %v2325 = vsel %vm1599, %v2321, 0
      %v2326 = vsel %vm1606, %v2322, 0
      %v2327 = vsel %vm1599, %v2323, 0
      %v2328 = vsel %vm1606, %v2324, 0
      %2333 = vrot.lane.b32.xlu0 %v2325, 60
      %v2334 = vpop.permute.xlu0 %2333
      %2335 = vrot.lane.b32.xlu0 %v2326, 60
      %v2336 = vpop.permute.xlu0 %2335
      %2337 = vrot.lane.b32.xlu0 %v2327, 60
      %v2338 = vpop.permute.xlu0 %2337
      %2339 = vrot.lane.b32.xlu0 %v2328, 60
      %v2340 = vpop.permute.xlu0 %2339
      %v2341 = vrot.slane %v2334, 4
      %v2342 = vrot.slane %v2336, 4
      %v2343 = vrot.slane %v2338, 4
      %v2344 = vrot.slane %v2340, 4
      %v2345 = vsel %vm630, %v2341, %v2342
      %v2346 = vsel %vm1535, %v2334, %v2345
      %v2347 = vsel %vm630, %v2343, %v2344
      %v2348 = vsel %vm1535, %v2338, %v2347
      %2351 = vst [vmem:[#allocation10 + $0x80] sm:$0xff] %v2346
      %2352 = vst [vmem:[#allocation10 + $0x88] sm:$0xff] %v2348
      %v2353 = vld [vmem:[%s11] sm:$0xff]
      %v2354 = vld [vmem:[#allocation10] sm:$0xff]
      %v2355 = vld [vmem:[#allocation10 + $0x8] sm:$0xff]
      %v2356 = vld [vmem:[#allocation10 + $0x10] sm:$0xff]
      %v2357 = vld [vmem:[#allocation10 + $0x18] sm:$0xff]
      %v2358 = vld [vmem:[#allocation10 + $0x20] sm:$0xff]
      %v2359 = vld [vmem:[#allocation10 + $0x28] sm:$0xff]
      %v2360 = vld [vmem:[#allocation10 + $0x30] sm:$0xff]
      %v2361 = vld [vmem:[#allocation10 + $0x38] sm:$0xff]
      %v2362 = vld [vmem:[#allocation10 + $0x40] sm:$0xff]
      %v2363 = vld [vmem:[#allocation10 + $0x48] sm:$0xff]
      %v2364 = vld [vmem:[#allocation10 + $0x50] sm:$0xff]
      %v2365 = vld [vmem:[#allocation10 + $0x58] sm:$0xff]
      %v2366 = vld [vmem:[#allocation10 + $0x60] sm:$0xff]
      %v2367 = vld [vmem:[#allocation10 + $0x68] sm:$0xff]
      %v2368 = vld [vmem:[#allocation10 + $0x70] sm:$0xff]
      %v2369 = vld [vmem:[#allocation10 + $0x78] sm:$0xff]
      %v2370 = vld [vmem:[#allocation10 + $0x80] sm:$0xff]
      %v2371 = vld [vmem:[#allocation10 + $0x88] sm:$0xff]
      %v2372 = vld [vmem:[%s12] sm:$0xff]
      %2374 = vset.pattern.permute.xlu0 0
      %2375 = vperm.xlu0 %2374, %v2372
      %v2376 = vpop.permute.xlu0 %2375
      %v2379 = vunpack.c.l.b16 %v2353
      %v2380 = vunpack.c.h.b16 %v2353
      %v2381 = vpack.c.b16 %v2379, %v2379
      %v2382 = vpack.c.b16 %v2380, %v2380
      %v2402 = vunpack.c.l.b16 %v2354
      %v2403 = vunpack.c.h.b16 %v2354
      %v2404 = vunpack.c.l.b16 %v2355
      %v2405 = vunpack.c.h.b16 %v2355
      %v2406 = vunpack.c.l.b16 %v2356
      %v2407 = vunpack.c.h.b16 %v2356
      %v2408 = vunpack.c.l.b16 %v2357
      %v2409 = vunpack.c.h.b16 %v2357
      %v2410 = vunpack.c.l.b16 %v2358
      %v2411 = vunpack.c.h.b16 %v2358
      %v2412 = vunpack.c.l.b16 %v2359
      %v2413 = vunpack.c.h.b16 %v2359
      %v2414 = vunpack.c.l.b16 %v2360
      %v2415 = vunpack.c.h.b16 %v2360
      %v2416 = vunpack.c.l.b16 %v2361
      %v2417 = vunpack.c.h.b16 %v2361
      %v2418 = vunpack.c.l.b16 %v2362
      %v2419 = vunpack.c.h.b16 %v2362
      %v2420 = vunpack.c.l.b16 %v2363
      %v2421 = vunpack.c.h.b16 %v2363
      %v2422 = vunpack.c.l.b16 %v2364
      %v2423 = vunpack.c.h.b16 %v2364
      %v2424 = vunpack.c.l.b16 %v2365
      %v2425 = vunpack.c.h.b16 %v2365
      %v2426 = vunpack.c.l.b16 %v2366
      %v2427 = vunpack.c.h.b16 %v2366
      %v2428 = vunpack.c.l.b16 %v2367
      %v2429 = vunpack.c.h.b16 %v2367
      %v2430 = vunpack.c.l.b16 %v2368
      %v2431 = vunpack.c.h.b16 %v2368
      %v2432 = vunpack.c.l.b16 %v2369
      %v2433 = vunpack.c.h.b16 %v2369
      %v2434 = vunpack.c.l.b16 %v2370
      %v2435 = vunpack.c.h.b16 %v2370
      %v2436 = vunpack.c.l.b16 %v2371
      %v2437 = vunpack.c.h.b16 %v2371
      %v2438 = vpack.c.b16 %v2404, %v2402
      %v2439 = vpack.c.b16 %v2405, %v2403
      %v2440 = vpack.c.b16 %v2408, %v2406
      %v2441 = vpack.c.b16 %v2409, %v2407
      %v2442 = vpack.c.b16 %v2412, %v2410
      %v2443 = vpack.c.b16 %v2413, %v2411
      %v2444 = vpack.c.b16 %v2416, %v2414
      %v2445 = vpack.c.b16 %v2417, %v2415
      %v2446 = vpack.c.b16 %v2420, %v2418
      %v2447 = vpack.c.b16 %v2421, %v2419
      %v2448 = vpack.c.b16 %v2424, %v2422
      %v2449 = vpack.c.b16 %v2425, %v2423
      %v2450 = vpack.c.b16 %v2428, %v2426
      %v2451 = vpack.c.b16 %v2429, %v2427
      %v2452 = vpack.c.b16 %v2432, %v2430
      %v2453 = vpack.c.b16 %v2433, %v2431
      %v2454 = vpack.c.b16 %v2436, %v2434
      %v2455 = vpack.c.b16 %v2437, %v2435
      %vm2474 = vcmask 130048
      %v2476 = vsel %vm2474, %v2382, 0
      %2478 = vmatpush.bf16.msra.mxu0 %v2452
      %2479 = vmatpush.bf16.msra.mxu0 %v2450
      %2480 = vmatpush.bf16.msra.mxu0 %v2448
      %2481 = vmatpush.bf16.msra.mxu0 %v2446
      %2482 = vmatpush.bf16.msra.mxu0 %v2444
      %2483 = vmatpush.bf16.msra.mxu0 %v2442
      %2484 = vmatpush.bf16.msra.mxu0 %v2440
      %2485 = vmatpush.bf16.msra.mxu0 %v2438
      %2486 = vmatmul.bf16.gmra.mxu0 %v2381
      %v2487 = vpop.f32.mrf.mxu0
      %v2488 = vadd.f32 %v2376, %v2487
      %v2489 = vpop.f32.mrf.mxu0
      %2490 = vdwg.mxu0
      %2491 = vmatpush.bf16.msra.mxu0 0
      %2492 = vmatpush.bf16.msra.mxu0 0
      %2493 = vmatpush.bf16.msra.mxu0 0
      %2494 = vmatpush.bf16.msra.mxu0 0
      %2495 = vmatpush.bf16.msra.mxu0 0
      %2496 = vmatpush.bf16.msra.mxu0 0
      %2497 = vmatpush.bf16.msra.mxu0 0
      %2498 = vmatpush.bf16.msra.mxu0 %v2454
      %2499 = vmatmul.bf16.gmra.mxu0 %v2476
      %v2500 = vpop.f32.mrf.mxu0
      %v2501 = vadd.f32 %v2488, %v2500
      %v2502 = vpop.f32.mrf.mxu0
      %2503 = vdwg.mxu0
      %2504 = vmatpush.bf16.msra.mxu0 %v2453
      %2505 = vmatpush.bf16.msra.mxu0 %v2451
      %2506 = vmatpush.bf16.msra.mxu0 %v2449
      %2507 = vmatpush.bf16.msra.mxu0 %v2447
      %2508 = vmatpush.bf16.msra.mxu0 %v2445
      %2509 = vmatpush.bf16.msra.mxu0 %v2443
      %2510 = vmatpush.bf16.msra.mxu0 %v2441
      %2511 = vmatpush.bf16.msra.mxu0 %v2439
      %2512 = vmatmul.bf16.gmra.mxu0 %v2381
      %v2513 = vpop.f32.mrf.mxu0
      %v2514 = vadd.f32 %v2376, %v2513
      %v2515 = vpop.f32.mrf.mxu0
      %2516 = vdwg.mxu0
      %2517 = vmatpush.bf16.msra.mxu0 0
      %2518 = vmatpush.bf16.msra.mxu0 0
      %2519 = vmatpush.bf16.msra.mxu0 0
      %2520 = vmatpush.bf16.msra.mxu0 0
      %2521 = vmatpush.bf16.msra.mxu0 0
      %2522 = vmatpush.bf16.msra.mxu0 0
      %2523 = vmatpush.bf16.msra.mxu0 0
      %2524 = vmatpush.bf16.msra.mxu0 %v2455
      %2525 = vmatmul.bf16.gmra.mxu0 %v2476
      %v2526 = vpop.f32.mrf.mxu0
      %v2527 = vadd.f32 %v2514, %v2526
      %v2528 = vpop.f32.mrf.mxu0
      %2529 = vdwg.mxu0
      %v2530 = vmax.f32 %v2501, 0.0
      %v2531 = vmax.f32 %v2527, 0.0
      %v2532 = vpack.c.bf16 %v2531, %v2530
      %2533 = vst [vmem:[#allocation7] sm:$0xff] %v2532
      %v2534 = vld [vmem:[#allocation7] sm:$0xff]
      %v2535 = vld [vmem:[#allocation4] sm:$0xff]
      %2536 = vst [vmem:[#allocation9 + $0x8] sm:$0xff] %v2534
      %2537 = vst [vmem:[#allocation9 + $0x20] sm:$0xff] %v2535
      %v2538 = vld [vmem:[#allocation9 + $0x4] sm:$0xff]
      %v2539 = vld [vmem:[#allocation9 + $0xc] sm:$0xf]
      %v2540 = vld [vmem:[#allocation9 + $0x1c] sm:$0xff]
      %v2541 = vld [vmem:[#allocation9 + $0x24] sm:$0xf]
      %v2542 = vsel %vm1181, %v2538, 0
      %v2543 = vsel %vm1188, %v2539, 0
      %v2544 = vsel %vm1181, %v2540, 0
      %v2545 = vsel %vm1188, %v2541, 0
      %2550 = vrot.lane.b32.xlu0 %v2542, 34
      %v2551 = vpop.permute.xlu0 %2550
      %2552 = vrot.lane.b32.xlu0 %v2543, 34
      %v2553 = vpop.permute.xlu0 %2552
      %2554 = vrot.lane.b32.xlu0 %v2544, 34
      %v2555 = vpop.permute.xlu0 %2554
      %2556 = vrot.lane.b32.xlu0 %v2545, 34
      %v2557 = vpop.permute.xlu0 %2556
      %v2558 = vrot.slane %v2551, 4
      %v2559 = vrot.slane %v2553, 4
      %v2560 = vrot.slane %v2555, 4
      %v2561 = vrot.slane %v2557, 4
      %v2562 = vsel %vm630, %v2558, %v2559
      %v2563 = vsel %vm1200, %v2551, %v2562
      %v2564 = vsel %vm630, %v2560, %v2561
      %v2565 = vsel %vm1200, %v2555, %v2564
      %2568 = vst [vmem:[#allocation10] sm:$0xff] %v2563
      %2569 = vst [vmem:[#allocation10 + $0x8] sm:$0xff] %v2565
      %v2570 = vld [vmem:[#allocation9 + $0x4] sm:$0xff]
      %v2571 = vld [vmem:[#allocation9 + $0xc] sm:$0xf]
      %v2572 = vld [vmem:[#allocation9 + $0x1c] sm:$0xff]
      %v2573 = vld [vmem:[#allocation9 + $0x24] sm:$0xf]
      %2578 = vrot.lane.b32.xlu0 %v2570, 32
      %v2579 = vpop.permute.xlu0 %2578
      %2580 = vrot.lane.b32.xlu0 %v2571, 32
      %v2581 = vpop.permute.xlu0 %2580
      %2582 = vrot.lane.b32.xlu0 %v2572, 32
      %v2583 = vpop.permute.xlu0 %2582
      %2584 = vrot.lane.b32.xlu0 %v2573, 32
      %v2585 = vpop.permute.xlu0 %2584
      %v2586 = vrot.slane %v2579, 4
      %v2587 = vrot.slane %v2581, 4
      %v2588 = vrot.slane %v2583, 4
      %v2589 = vrot.slane %v2585, 4
      %v2590 = vsel %vm630, %v2586, %v2587
      %v2591 = vsel %vm1215, %v2579, %v2590
      %v2592 = vsel %vm630, %v2588, %v2589
      %v2593 = vsel %vm1215, %v2583, %v2592
      %2596 = vst [vmem:[#allocation10 + $0x10] sm:$0xff] %v2591
      %2597 = vst [vmem:[#allocation10 + $0x18] sm:$0xff] %v2593
      %v2598 = vld [vmem:[#allocation9 + $0x4] sm:$0xff]
      %v2599 = vld [vmem:[#allocation9 + $0xc] sm:$0xf]
      %v2600 = vld [vmem:[#allocation9 + $0x1c] sm:$0xff]
      %v2601 = vld [vmem:[#allocation9 + $0x24] sm:$0xf]
      %v2602 = vsel %vm1238, %v2598, 0
      %v2603 = vsel %vm1245, %v2599, 0
      %v2604 = vsel %vm1238, %v2600, 0
      %v2605 = vsel %vm1245, %v2601, 0
      %2610 = vrot.lane.b32.xlu0 %v2602, 30
      %v2611 = vpop.permute.xlu0 %2610
      %2612 = vrot.lane.b32.xlu0 %v2603, 30
      %v2613 = vpop.permute.xlu0 %2612
      %2614 = vrot.lane.b32.xlu0 %v2604, 30
      %v2615 = vpop.permute.xlu0 %2614
      %2616 = vrot.lane.b32.xlu0 %v2605, 30
      %v2617 = vpop.permute.xlu0 %2616
      %v2618 = vrot.slane %v2611, 4
      %v2619 = vrot.slane %v2613, 4
      %v2620 = vrot.slane %v2615, 4
      %v2621 = vrot.slane %v2617, 4
      %v2622 = vsel %vm630, %v2618, %v2619
      %v2623 = vsel %vm1257, %v2611, %v2622
      %v2624 = vsel %vm630, %v2620, %v2621
      %v2625 = vsel %vm1257, %v2615, %v2624
      %2628 = vst [vmem:[#allocation10 + $0x20] sm:$0xff] %v2623
      %2629 = vst [vmem:[#allocation10 + $0x28] sm:$0xff] %v2625
      %v2630 = vld [vmem:[#allocation9 + $0x4] sm:$0xff]
      %v2631 = vld [vmem:[#allocation9 + $0xc] sm:$0xf]
      %v2632 = vld [vmem:[#allocation9 + $0x1c] sm:$0xff]
      %v2633 = vld [vmem:[#allocation9 + $0x24] sm:$0xf]
      %v2634 = vsel %vm1274, %v2630, 0
      %v2635 = vsel %vm1281, %v2631, 0
      %v2636 = vsel %vm1274, %v2632, 0
      %v2637 = vsel %vm1281, %v2633, 0
      %2642 = vrot.lane.b32.xlu0 %v2634, 2
      %v2643 = vpop.permute.xlu0 %2642
      %2644 = vrot.lane.b32.xlu0 %v2635, 2
      %v2645 = vpop.permute.xlu0 %2644
      %2646 = vrot.lane.b32.xlu0 %v2636, 2
      %v2647 = vpop.permute.xlu0 %2646
      %2648 = vrot.lane.b32.xlu0 %v2637, 2
      %v2649 = vpop.permute.xlu0 %2648
      %v2650 = vrot.slane %v2643, 4
      %v2651 = vrot.slane %v2645, 4
      %v2652 = vrot.slane %v2647, 4
      %v2653 = vrot.slane %v2649, 4
      %v2654 = vsel %vm630, %v2650, %v2651
      %v2655 = vsel %vm1293, %v2643, %v2654
      %v2656 = vsel %vm630, %v2652, %v2653
      %v2657 = vsel %vm1293, %v2647, %v2656
      %2660 = vst [vmem:[#allocation10 + $0x30] sm:$0xff] %v2655
      %2661 = vst [vmem:[#allocation10 + $0x38] sm:$0xff] %v2657
      %v2662 = vld [vmem:[#allocation9 + $0x8] sm:$0xff]
      %v2663 = vld [vmem:[#allocation9 + $0x20] sm:$0xff]
      %2664 = vst [vmem:[#allocation10 + $0x40] sm:$0xff] %v2662
      %2665 = vst [vmem:[#allocation10 + $0x48] sm:$0xff] %v2663
      %v2666 = vld [vmem:[#allocation9 + $0x8] sm:$0xff]
      %v2667 = vld [vmem:[#allocation9 + $0x10] sm:$0xf]
      %v2668 = vld [vmem:[#allocation9 + $0x20] sm:$0xff]
      %v2669 = vld [vmem:[#allocation9 + $0x28] sm:$0xf]
      %v2670 = vsel %vm1311, %v2666, 0
      %v2671 = vsel %vm1318, %v2667, 0
      %v2672 = vsel %vm1311, %v2668, 0
      %v2673 = vsel %vm1318, %v2669, 0
      %2678 = vrot.lane.b32.xlu0 %v2670, 126
      %v2679 = vpop.permute.xlu0 %2678
      %2680 = vrot.lane.b32.xlu0 %v2671, 126
      %v2681 = vpop.permute.xlu0 %2680
      %2682 = vrot.lane.b32.xlu0 %v2672, 126
      %v2683 = vpop.permute.xlu0 %2682
      %2684 = vrot.lane.b32.xlu0 %v2673, 126
      %v2685 = vpop.permute.xlu0 %2684
      %v2686 = vrot.slane %v2679, 4
      %v2687 = vrot.slane %v2681, 4
      %v2688 = vrot.slane %v2683, 4
      %v2689 = vrot.slane %v2685, 4
      %v2690 = vsel %vm630, %v2686, %v2687
      %v2691 = vsel %vm1266, %v2679, %v2690
      %v2692 = vsel %vm630, %v2688, %v2689
      %v2693 = vsel %vm1266, %v2683, %v2692
      %2696 = vst [vmem:[#allocation10 + $0x50] sm:$0xff] %v2691
      %2697 = vst [vmem:[#allocation10 + $0x58] sm:$0xff] %v2693
      %v2698 = vld [vmem:[#allocation9 + $0x8] sm:$0xff]
      %v2699 = vld [vmem:[#allocation9 + $0x10] sm:$0xf]
      %v2700 = vld [vmem:[#allocation9 + $0x20] sm:$0xff]
      %v2701 = vld [vmem:[#allocation9 + $0x28] sm:$0xf]
      %v2702 = vsel %vm1345, %v2698, 0
      %v2703 = vsel %vm1352, %v2699, 0
      %v2704 = vsel %vm1345, %v2700, 0
      %v2705 = vsel %vm1352, %v2701, 0
      %2710 = vrot.lane.b32.xlu0 %v2702, 98
      %v2711 = vpop.permute.xlu0 %2710
      %2712 = vrot.lane.b32.xlu0 %v2703, 98
      %v2713 = vpop.permute.xlu0 %2712
      %2714 = vrot.lane.b32.xlu0 %v2704, 98
      %v2715 = vpop.permute.xlu0 %2714
      %2716 = vrot.lane.b32.xlu0 %v2705, 98
      %v2717 = vpop.permute.xlu0 %2716
      %v2718 = vrot.slane %v2711, 4
      %v2719 = vrot.slane %v2713, 4
      %v2720 = vrot.slane %v2715, 4
      %v2721 = vrot.slane %v2717, 4
      %v2722 = vsel %vm630, %v2718, %v2719
      %v2723 = vsel %vm1230, %v2711, %v2722
      %v2724 = vsel %vm630, %v2720, %v2721
      %v2725 = vsel %vm1230, %v2715, %v2724
      %2728 = vst [vmem:[#allocation10 + $0x60] sm:$0xff] %v2723
      %2729 = vst [vmem:[#allocation10 + $0x68] sm:$0xff] %v2725
      %v2730 = vld [vmem:[#allocation9 + $0x8] sm:$0xff]
      %v2731 = vld [vmem:[#allocation9 + $0x10] sm:$0xf]
      %v2732 = vld [vmem:[#allocation9 + $0x20] sm:$0xff]
      %v2733 = vld [vmem:[#allocation9 + $0x28] sm:$0xf]
      %2738 = vrot.lane.b32.xlu0 %v2730, 96
      %v2739 = vpop.permute.xlu0 %2738
      %2740 = vrot.lane.b32.xlu0 %v2731, 96
      %v2741 = vpop.permute.xlu0 %2740
      %2742 = vrot.lane.b32.xlu0 %v2732, 96
      %v2743 = vpop.permute.xlu0 %2742
      %2744 = vrot.lane.b32.xlu0 %v2733, 96
      %v2745 = vpop.permute.xlu0 %2744
      %v2746 = vrot.slane %v2739, 4
      %v2747 = vrot.slane %v2741, 4
      %v2748 = vrot.slane %v2743, 4
      %v2749 = vrot.slane %v2745, 4
      %v2750 = vsel %vm630, %v2746, %v2747
      %v2751 = vsel %vm1378, %v2739, %v2750
      %v2752 = vsel %vm630, %v2748, %v2749
      %v2753 = vsel %vm1378, %v2743, %v2752
      %2756 = vst [vmem:[#allocation10 + $0x70] sm:$0xff] %v2751
      %2757 = vst [vmem:[#allocation10 + $0x78] sm:$0xff] %v2753
      %v2758 = vld [vmem:[#allocation9 + $0x8] sm:$0xff]
      %v2759 = vld [vmem:[#allocation9 + $0x10] sm:$0xf]
      %v2760 = vld [vmem:[#allocation9 + $0x20] sm:$0xff]
      %v2761 = vld [vmem:[#allocation9 + $0x28] sm:$0xf]
      %v2762 = vsel %vm1394, %v2758, 0
      %v2763 = vsel %vm1401, %v2759, 0
      %v2764 = vsel %vm1394, %v2760, 0
      %v2765 = vsel %vm1401, %v2761, 0
      %2770 = vrot.lane.b32.xlu0 %v2762, 94
      %v2771 = vpop.permute.xlu0 %2770
      %2772 = vrot.lane.b32.xlu0 %v2763, 94
      %v2773 = vpop.permute.xlu0 %2772
      %2774 = vrot.lane.b32.xlu0 %v2764, 94
      %v2775 = vpop.permute.xlu0 %2774
      %2776 = vrot.lane.b32.xlu0 %v2765, 94
      %v2777 = vpop.permute.xlu0 %2776
      %v2778 = vrot.slane %v2771, 4
      %v2779 = vrot.slane %v2773, 4
      %v2780 = vrot.slane %v2775, 4
      %v2781 = vrot.slane %v2777, 4
      %v2782 = vsel %vm630, %v2778, %v2779
      %v2783 = vsel %vm1173, %v2771, %v2782
      %v2784 = vsel %vm630, %v2780, %v2781
      %v2785 = vsel %vm1173, %v2775, %v2784
      %2788 = vst [vmem:[#allocation10 + $0x80] sm:$0xff] %v2783
      %2789 = vst [vmem:[#allocation10 + $0x88] sm:$0xff] %v2785
      %v2790 = vld [vmem:[%s13] sm:$0xff]
      %v2791 = vld [vmem:[#allocation10] sm:$0xff]
      %v2792 = vld [vmem:[#allocation10 + $0x8] sm:$0xff]
      %v2793 = vld [vmem:[#allocation10 + $0x10] sm:$0xff]
      %v2794 = vld [vmem:[#allocation10 + $0x18] sm:$0xff]
      %v2795 = vld [vmem:[#allocation10 + $0x20] sm:$0xff]
      %v2796 = vld [vmem:[#allocation10 + $0x28] sm:$0xff]
      %v2797 = vld [vmem:[#allocation10 + $0x30] sm:$0xff]
      %v2798 = vld [vmem:[#allocation10 + $0x38] sm:$0xff]
      %v2799 = vld [vmem:[#allocation10 + $0x40] sm:$0xff]
      %v2800 = vld [vmem:[#allocation10 + $0x48] sm:$0xff]
      %v2801 = vld [vmem:[#allocation10 + $0x50] sm:$0xff]
      %v2802 = vld [vmem:[#allocation10 + $0x58] sm:$0xff]
      %v2803 = vld [vmem:[#allocation10 + $0x60] sm:$0xff]
      %v2804 = vld [vmem:[#allocation10 + $0x68] sm:$0xff]
      %v2805 = vld [vmem:[#allocation10 + $0x70] sm:$0xff]
      %v2806 = vld [vmem:[#allocation10 + $0x78] sm:$0xff]
      %v2807 = vld [vmem:[#allocation10 + $0x80] sm:$0xff]
      %v2808 = vld [vmem:[#allocation10 + $0x88] sm:$0xff]
      %v2809 = vld [vmem:[%s14] sm:$0xff]
      %2811 = vset.pattern.permute.xlu0 0
      %2812 = vperm.xlu0 %2811, %v2809
      %v2813 = vpop.permute.xlu0 %2812
      %v2816 = vunpack.c.l.b16 %v2790
      %v2817 = vunpack.c.h.b16 %v2790
      %v2818 = vpack.c.b16 %v2816, %v2816
      %v2819 = vpack.c.b16 %v2817, %v2817
      %v2839 = vunpack.c.l.b16 %v2791
      %v2840 = vunpack.c.h.b16 %v2791
      %v2841 = vunpack.c.l.b16 %v2792
      %v2842 = vunpack.c.h.b16 %v2792
      %v2843 = vunpack.c.l.b16 %v2793
      %v2844 = vunpack.c.h.b16 %v2793
      %v2845 = vunpack.c.l.b16 %v2794
      %v2846 = vunpack.c.h.b16 %v2794
      %v2847 = vunpack.c.l.b16 %v2795
      %v2848 = vunpack.c.h.b16 %v2795
      %v2849 = vunpack.c.l.b16 %v2796
      %v2850 = vunpack.c.h.b16 %v2796
      %v2851 = vunpack.c.l.b16 %v2797
      %v2852 = vunpack.c.h.b16 %v2797
      %v2853 = vunpack.c.l.b16 %v2798
      %v2854 = vunpack.c.h.b16 %v2798
      %v2855 = vunpack.c.l.b16 %v2799
      %v2856 = vunpack.c.h.b16 %v2799
      %v2857 = vunpack.c.l.b16 %v2800
      %v2858 = vunpack.c.h.b16 %v2800
      %v2859 = vunpack.c.l.b16 %v2801
      %v2860 = vunpack.c.h.b16 %v2801
      %v2861 = vunpack.c.l.b16 %v2802
      %v2862 = vunpack.c.h.b16 %v2802
      %v2863 = vunpack.c.l.b16 %v2803
      %v2864 = vunpack.c.h.b16 %v2803
      %v2865 = vunpack.c.l.b16 %v2804
      %v2866 = vunpack.c.h.b16 %v2804
      %v2867 = vunpack.c.l.b16 %v2805
      %v2868 = vunpack.c.h.b16 %v2805
      %v2869 = vunpack.c.l.b16 %v2806
      %v2870 = vunpack.c.h.b16 %v2806
      %v2871 = vunpack.c.l.b16 %v2807
      %v2872 = vunpack.c.h.b16 %v2807
      %v2873 = vunpack.c.l.b16 %v2808
      %v2874 = vunpack.c.h.b16 %v2808
      %v2875 = vpack.c.b16 %v2841, %v2839
      %v2876 = vpack.c.b16 %v2842, %v2840
      %v2877 = vpack.c.b16 %v2845, %v2843
      %v2878 = vpack.c.b16 %v2846, %v2844
      %v2879 = vpack.c.b16 %v2849, %v2847
      %v2880 = vpack.c.b16 %v2850, %v2848
      %v2881 = vpack.c.b16 %v2853, %v2851
      %v2882 = vpack.c.b16 %v2854, %v2852
      %v2883 = vpack.c.b16 %v2857, %v2855
      %v2884 = vpack.c.b16 %v2858, %v2856
      %v2885 = vpack.c.b16 %v2861, %v2859
      %v2886 = vpack.c.b16 %v2862, %v2860
      %v2887 = vpack.c.b16 %v2865, %v2863
      %v2888 = vpack.c.b16 %v2866, %v2864
      %v2889 = vpack.c.b16 %v2869, %v2867
      %v2890 = vpack.c.b16 %v2870, %v2868
      %v2891 = vpack.c.b16 %v2873, %v2871
      %v2892 = vpack.c.b16 %v2874, %v2872
      %v2912 = vsel %vm2474, %v2819, 0
      %2914 = vmatpush.bf16.msra.mxu0 %v2889
      %2915 = vmatpush.bf16.msra.mxu0 %v2887
      %2916 = vmatpush.bf16.msra.mxu0 %v2885
      %2917 = vmatpush.bf16.msra.mxu0 %v2883
      %2918 = vmatpush.bf16.msra.mxu0 %v2881
      %2919 = vmatpush.bf16.msra.mxu0 %v2879
      %2920 = vmatpush.bf16.msra.mxu0 %v2877
      %2921 = vmatpush.bf16.msra.mxu0 %v2875
      %2922 = vmatmul.bf16.gmra.mxu0 %v2818
      %v2923 = vpop.f32.mrf.mxu0
      %v2924 = vadd.f32 %v2813, %v2923
      %v2925 = vpop.f32.mrf.mxu0
      %2926 = vdwg.mxu0
      %2927 = vmatpush.bf16.msra.mxu0 0
      %2928 = vmatpush.bf16.msra.mxu0 0
      %2929 = vmatpush.bf16.msra.mxu0 0
      %2930 = vmatpush.bf16.msra.mxu0 0
      %2931 = vmatpush.bf16.msra.mxu0 0
      %2932 = vmatpush.bf16.msra.mxu0 0
      %2933 = vmatpush.bf16.msra.mxu0 0
      %2934 = vmatpush.bf16.msra.mxu0 %v2891
      %2935 = vmatmul.bf16.gmra.mxu0 %v2912
      %v2936 = vpop.f32.mrf.mxu0
      %v2937 = vadd.f32 %v2924, %v2936
      %v2938 = vpop.f32.mrf.mxu0
      %2939 = vdwg.mxu0
      %2940 = vmatpush.bf16.msra.mxu0 %v2890
      %2941 = vmatpush.bf16.msra.mxu0 %v2888
      %2942 = vmatpush.bf16.msra.mxu0 %v2886
      %2943 = vmatpush.bf16.msra.mxu0 %v2884
      %2944 = vmatpush.bf16.msra.mxu0 %v2882
      %2945 = vmatpush.bf16.msra.mxu0 %v2880
      %2946 = vmatpush.bf16.msra.mxu0 %v2878
      %2947 = vmatpush.bf16.msra.mxu0 %v2876
      %2948 = vmatmul.bf16.gmra.mxu0 %v2818
      %v2949 = vpop.f32.mrf.mxu0
      %v2950 = vadd.f32 %v2813, %v2949
      %v2951 = vpop.f32.mrf.mxu0
      %2952 = vdwg.mxu0
      %2953 = vmatpush.bf16.msra.mxu0 0
      %2954 = vmatpush.bf16.msra.mxu0 0
      %2955 = vmatpush.bf16.msra.mxu0 0
      %2956 = vmatpush.bf16.msra.mxu0 0
      %2957 = vmatpush.bf16.msra.mxu0 0
      %2958 = vmatpush.bf16.msra.mxu0 0
      %2959 = vmatpush.bf16.msra.mxu0 0
      %2960 = vmatpush.bf16.msra.mxu0 %v2892
      %2961 = vmatmul.bf16.gmra.mxu0 %v2912
      %v2962 = vpop.f32.mrf.mxu0
      %v2963 = vadd.f32 %v2950, %v2962
      %v2964 = vpop.f32.mrf.mxu0
      %2965 = vdwg.mxu0
      %v2966 = vmax.f32 %v2937, 0.0
      %v2967 = vmax.f32 %v2963, 0.0
      %v2968 = vpack.c.bf16 %v2967, %v2966
      %2969 = vst [vmem:[#allocation8] sm:$0xff] %v2968
      %v2970 = vld [vmem:[#allocation8] sm:$0xff]
      %v2971 = vld [vmem:[#allocation3] sm:$0xff]
      %2972 = vst [vmem:[#allocation9 + $0x8] sm:$0xff] %v2970
      %2973 = vst [vmem:[#allocation9 + $0x20] sm:$0xff] %v2971
      %v2974 = vld [vmem:[#allocation9 + $0x4] sm:$0xff]
      %v2975 = vld [vmem:[#allocation9 + $0xc] sm:$0xf]
      %v2976 = vld [vmem:[#allocation9 + $0x1c] sm:$0xff]
      %v2977 = vld [vmem:[#allocation9 + $0x24] sm:$0xf]
      %v2978 = vsel %vm612, %v2974, 0
      %v2979 = vsel %vm619, %v2975, 0
      %v2980 = vsel %vm612, %v2976, 0
      %v2981 = vsel %vm619, %v2977, 0
      %2986 = vrot.lane.b32.xlu0 %v2978, 17
      %v2987 = vpop.permute.xlu0 %2986
      %2988 = vrot.lane.b32.xlu0 %v2979, 17
      %v2989 = vpop.permute.xlu0 %2988
      %2990 = vrot.lane.b32.xlu0 %v2980, 17
      %v2991 = vpop.permute.xlu0 %2990
      %2992 = vrot.lane.b32.xlu0 %v2981, 17
      %v2993 = vpop.permute.xlu0 %2992
      %v2994 = vrot.slane %v2987, 4
      %v2995 = vrot.slane %v2989, 4
      %v2996 = vrot.slane %v2991, 4
      %v2997 = vrot.slane %v2993, 4
      %v2998 = vsel %vm630, %v2994, %v2995
      %v2999 = vsel %vm632, %v2987, %v2998
      %v3000 = vsel %vm630, %v2996, %v2997
      %v3001 = vsel %vm632, %v2991, %v3000
      %3004 = vst [vmem:[#allocation10] sm:$0xff] %v2999
      %3005 = vst [vmem:[#allocation10 + $0x8] sm:$0xff] %v3001
      %v3006 = vld [vmem:[#allocation9 + $0x4] sm:$0xff]
      %v3007 = vld [vmem:[#allocation9 + $0xc] sm:$0xf]
      %v3008 = vld [vmem:[#allocation9 + $0x1c] sm:$0xff]
      %v3009 = vld [vmem:[#allocation9 + $0x24] sm:$0xf]
      %3014 = vrot.lane.b32.xlu0 %v3006, 16
      %v3015 = vpop.permute.xlu0 %3014
      %3016 = vrot.lane.b32.xlu0 %v3007, 16
      %v3017 = vpop.permute.xlu0 %3016
      %3018 = vrot.lane.b32.xlu0 %v3008, 16
      %v3019 = vpop.permute.xlu0 %3018
      %3020 = vrot.lane.b32.xlu0 %v3009, 16
      %v3021 = vpop.permute.xlu0 %3020
      %v3022 = vrot.slane %v3015, 4
      %v3023 = vrot.slane %v3017, 4
      %v3024 = vrot.slane %v3019, 4
      %v3025 = vrot.slane %v3021, 4
      %v3026 = vsel %vm630, %v3022, %v3023
      %v3027 = vsel %vm649, %v3015, %v3026
      %v3028 = vsel %vm630, %v3024, %v3025
      %v3029 = vsel %vm649, %v3019, %v3028
      %3032 = vst [vmem:[#allocation10 + $0x10] sm:$0xff] %v3027
      %3033 = vst [vmem:[#allocation10 + $0x18] sm:$0xff] %v3029
      %v3034 = vld [vmem:[#allocation9 + $0x4] sm:$0xff]
      %v3035 = vld [vmem:[#allocation9 + $0xc] sm:$0xf]
      %v3036 = vld [vmem:[#allocation9 + $0x1c] sm:$0xff]
      %v3037 = vld [vmem:[#allocation9 + $0x24] sm:$0xf]
      %v3038 = vsel %vm672, %v3034, 0
      %v3039 = vsel %vm679, %v3035, 0
      %v3040 = vsel %vm672, %v3036, 0
      %v3041 = vsel %vm679, %v3037, 0
      %3046 = vrot.lane.b32.xlu0 %v3038, 15
      %v3047 = vpop.permute.xlu0 %3046
      %3048 = vrot.lane.b32.xlu0 %v3039, 15
      %v3049 = vpop.permute.xlu0 %3048
      %3050 = vrot.lane.b32.xlu0 %v3040, 15
      %v3051 = vpop.permute.xlu0 %3050
      %3052 = vrot.lane.b32.xlu0 %v3041, 15
      %v3053 = vpop.permute.xlu0 %3052
      %v3054 = vrot.slane %v3047, 4
      %v3055 = vrot.slane %v3049, 4
      %v3056 = vrot.slane %v3051, 4
      %v3057 = vrot.slane %v3053, 4
      %v3058 = vsel %vm630, %v3054, %v3055
      %v3059 = vsel %vm691, %v3047, %v3058
      %v3060 = vsel %vm630, %v3056, %v3057
      %v3061 = vsel %vm691, %v3051, %v3060
      %3064 = vst [vmem:[#allocation10 + $0x20] sm:$0xff] %v3059
      %3065 = vst [vmem:[#allocation10 + $0x28] sm:$0xff] %v3061
      %v3066 = vld [vmem:[#allocation9 + $0x4] sm:$0xff]
      %v3067 = vld [vmem:[#allocation9 + $0xc] sm:$0xf]
      %v3068 = vld [vmem:[#allocation9 + $0x1c] sm:$0xff]
      %v3069 = vld [vmem:[#allocation9 + $0x24] sm:$0xf]
      %v3070 = vsel %vm708, %v3066, 0
      %v3071 = vsel %vm715, %v3067, 0
      %v3072 = vsel %vm708, %v3068, 0
      %v3073 = vsel %vm715, %v3069, 0
      %3078 = vrot.lane.b32.xlu0 %v3070, 1
      %v3079 = vpop.permute.xlu0 %3078
      %3080 = vrot.lane.b32.xlu0 %v3071, 1
      %v3081 = vpop.permute.xlu0 %3080
      %3082 = vrot.lane.b32.xlu0 %v3072, 1
      %v3083 = vpop.permute.xlu0 %3082
      %3084 = vrot.lane.b32.xlu0 %v3073, 1
      %v3085 = vpop.permute.xlu0 %3084
      %v3086 = vrot.slane %v3079, 4
      %v3087 = vrot.slane %v3081, 4
      %v3088 = vrot.slane %v3083, 4
      %v3089 = vrot.slane %v3085, 4
      %v3090 = vsel %vm630, %v3086, %v3087
      %v3091 = vsel %vm729, %v3079, %v3090
      %v3092 = vsel %vm630, %v3088, %v3089
      %v3093 = vsel %vm729, %v3083, %v3092
      %3096 = vst [vmem:[#allocation10 + $0x30] sm:$0xff] %v3091
      %3097 = vst [vmem:[#allocation10 + $0x38] sm:$0xff] %v3093
      %v3098 = vld [vmem:[#allocation9 + $0x8] sm:$0xff]
      %v3099 = vld [vmem:[#allocation9 + $0x20] sm:$0xff]
      %3100 = vst [vmem:[#allocation10 + $0x40] sm:$0xff] %v3098
      %3101 = vst [vmem:[#allocation10 + $0x48] sm:$0xff] %v3099
      %v3102 = vld [vmem:[#allocation9 + $0x8] sm:$0xff]
      %v3103 = vld [vmem:[#allocation9 + $0x10] sm:$0xf]
      %v3104 = vld [vmem:[#allocation9 + $0x20] sm:$0xff]
      %v3105 = vld [vmem:[#allocation9 + $0x28] sm:$0xf]
      %v3106 = vsel %vm747, %v3102, 0
      %v3107 = vsel %vm754, %v3103, 0
      %v3108 = vsel %vm747, %v3104, 0
      %v3109 = vsel %vm754, %v3105, 0
      %3114 = vrot.lane.b32.xlu0 %v3106, 127
      %v3115 = vpop.permute.xlu0 %3114
      %3116 = vrot.lane.b32.xlu0 %v3107, 127
      %v3117 = vpop.permute.xlu0 %3116
      %3118 = vrot.lane.b32.xlu0 %v3108, 127
      %v3119 = vpop.permute.xlu0 %3118
      %3120 = vrot.lane.b32.xlu0 %v3109, 127
      %v3121 = vpop.permute.xlu0 %3120
      %v3122 = vrot.slane %v3115, 4
      %v3123 = vrot.slane %v3117, 4
      %v3124 = vrot.slane %v3119, 4
      %v3125 = vrot.slane %v3121, 4
      %v3126 = vsel %vm630, %v3122, %v3123
      %v3127 = vsel %vm700, %v3115, %v3126
      %v3128 = vsel %vm630, %v3124, %v3125
      %v3129 = vsel %vm700, %v3119, %v3128
      %3132 = vst [vmem:[#allocation10 + $0x50] sm:$0xff] %v3127
      %3133 = vst [vmem:[#allocation10 + $0x58] sm:$0xff] %v3129
      %v3134 = vld [vmem:[#allocation9 + $0x8] sm:$0xff]
      %v3135 = vld [vmem:[#allocation9 + $0x10] sm:$0xf]
      %v3136 = vld [vmem:[#allocation9 + $0x20] sm:$0xff]
      %v3137 = vld [vmem:[#allocation9 + $0x28] sm:$0xf]
      %v3138 = vsel %vm783, %v3134, 0
      %v3139 = vsel %vm790, %v3135, 0
      %v3140 = vsel %vm783, %v3136, 0
      %v3141 = vsel %vm790, %v3137, 0
      %3146 = vrot.lane.b32.xlu0 %v3138, 113
      %v3147 = vpop.permute.xlu0 %3146
      %3148 = vrot.lane.b32.xlu0 %v3139, 113
      %v3149 = vpop.permute.xlu0 %3148
      %3150 = vrot.lane.b32.xlu0 %v3140, 113
      %v3151 = vpop.permute.xlu0 %3150
      %3152 = vrot.lane.b32.xlu0 %v3141, 113
      %v3153 = vpop.permute.xlu0 %3152
      %v3154 = vrot.slane %v3147, 4
      %v3155 = vrot.slane %v3149, 4
      %v3156 = vrot.slane %v3151, 4
      %v3157 = vrot.slane %v3153, 4
      %v3158 = vsel %vm630, %v3154, %v3155
      %v3159 = vsel %vm664, %v3147, %v3158
      %v3160 = vsel %vm630, %v3156, %v3157
      %v3161 = vsel %vm664, %v3151, %v3160
      %3164 = vst [vmem:[#allocation10 + $0x60] sm:$0xff] %v3159
      %3165 = vst [vmem:[#allocation10 + $0x68] sm:$0xff] %v3161
      %v3166 = vld [vmem:[#allocation9 + $0x8] sm:$0xff]
      %v3167 = vld [vmem:[#allocation9 + $0x10] sm:$0xf]
      %v3168 = vld [vmem:[#allocation9 + $0x20] sm:$0xff]
      %v3169 = vld [vmem:[#allocation9 + $0x28] sm:$0xf]
      %3174 = vrot.lane.b32.xlu0 %v3166, 112
      %v3175 = vpop.permute.xlu0 %3174
      %3176 = vrot.lane.b32.xlu0 %v3167, 112
      %v3177 = vpop.permute.xlu0 %3176
      %3178 = vrot.lane.b32.xlu0 %v3168, 112
      %v3179 = vpop.permute.xlu0 %3178
      %3180 = vrot.lane.b32.xlu0 %v3169, 112
      %v3181 = vpop.permute.xlu0 %3180
      %v3182 = vrot.slane %v3175, 4
      %v3183 = vrot.slane %v3177, 4
      %v3184 = vrot.slane %v3179, 4
      %v3185 = vrot.slane %v3181, 4
      %v3186 = vsel %vm630, %v3182, %v3183
      %v3187 = vsel %vm818, %v3175, %v3186
      %v3188 = vsel %vm630, %v3184, %v3185
      %v3189 = vsel %vm818, %v3179, %v3188
      %3192 = vst [vmem:[#allocation10 + $0x70] sm:$0xff] %v3187
      %3193 = vst [vmem:[#allocation10 + $0x78] sm:$0xff] %v3189
      %v3194 = vld [vmem:[#allocation9 + $0x8] sm:$0xff]
      %v3195 = vld [vmem:[#allocation9 + $0x10] sm:$0xf]
      %v3196 = vld [vmem:[#allocation9 + $0x20] sm:$0xff]
      %v3197 = vld [vmem:[#allocation9 + $0x28] sm:$0xf]
      %v3198 = vsel %vm834, %v3194, 0
      %v3199 = vsel %vm841, %v3195, 0
      %v3200 = vsel %vm834, %v3196, 0
      %v3201 = vsel %vm841, %v3197, 0
      %3206 = vrot.lane.b32.xlu0 %v3198, 111
      %v3207 = vpop.permute.xlu0 %3206
      %3208 = vrot.lane.b32.xlu0 %v3199, 111
      %v3209 = vpop.permute.xlu0 %3208
      %3210 = vrot.lane.b32.xlu0 %v3200, 111
      %v3211 = vpop.permute.xlu0 %3210
      %3212 = vrot.lane.b32.xlu0 %v3201, 111
      %v3213 = vpop.permute.xlu0 %3212
      %v3214 = vrot.slane %v3207, 4
      %v3215 = vrot.slane %v3209, 4
      %v3216 = vrot.slane %v3211, 4
      %v3217 = vrot.slane %v3213, 4
      %v3218 = vsel %vm630, %v3214, %v3215
      %v3219 = vsel %vm604, %v3207, %v3218
      %v3220 = vsel %vm630, %v3216, %v3217
      %v3221 = vsel %vm604, %v3211, %v3220
      %3224 = vst [vmem:[#allocation10 + $0x80] sm:$0xff] %v3219
      %3225 = vst [vmem:[#allocation10 + $0x88] sm:$0xff] %v3221
      %v3226 = vld [vmem:[%s15] sm:$0xf]
      %v3227 = vld [vmem:[#allocation10] sm:$0xff]
      %v3228 = vld [vmem:[#allocation10 + $0x8] sm:$0xff]
      %v3229 = vld [vmem:[#allocation10 + $0x10] sm:$0xff]
      %v3230 = vld [vmem:[#allocation10 + $0x18] sm:$0xff]
      %v3231 = vld [vmem:[#allocation10 + $0x20] sm:$0xff]
      %v3232 = vld [vmem:[#allocation10 + $0x28] sm:$0xff]
      %v3233 = vld [vmem:[#allocation10 + $0x30] sm:$0xff]
      %v3234 = vld [vmem:[#allocation10 + $0x38] sm:$0xff]
      %v3235 = vld [vmem:[#allocation10 + $0x40] sm:$0xff]
      %v3236 = vld [vmem:[#allocation10 + $0x48] sm:$0xff]
      %v3237 = vld [vmem:[#allocation10 + $0x50] sm:$0xff]
      %v3238 = vld [vmem:[#allocation10 + $0x58] sm:$0xff]
      %v3239 = vld [vmem:[#allocation10 + $0x60] sm:$0xff]
      %v3240 = vld [vmem:[#allocation10 + $0x68] sm:$0xff]
      %v3241 = vld [vmem:[#allocation10 + $0x70] sm:$0xff]
      %v3242 = vld [vmem:[#allocation10 + $0x78] sm:$0xff]
      %v3243 = vld [vmem:[#allocation10 + $0x80] sm:$0xff]
      %v3244 = vld [vmem:[#allocation10 + $0x88] sm:$0xff]
      %v3245 = vld [vmem:[%s16] sm:$0xf]
      %3247 = vset.pattern.permute.xlu0 0
      %3248 = vperm.xlu0 %3247, %v3245
      %v3249 = vpop.permute.xlu0 %3248
      %3252 = vst [vmem:[#allocation1] ss:$4 sm:$0xff] %v3226
      %v3253 = vld.sshfl [vmem:[#allocation1] sm:$0xff pattern:$0x73625140]
      %v3254 = vld.sshfl [vmem:[#allocation1 + $0x8] sm:$0xff pattern:$0x73625140]
      %v3274 = vunpack.c.l.b16 %v3227
      %v3275 = vunpack.c.h.b16 %v3227
      %v3276 = vunpack.c.l.b16 %v3228
      %v3277 = vunpack.c.h.b16 %v3228
      %v3278 = vunpack.c.l.b16 %v3229
      %v3279 = vunpack.c.h.b16 %v3229
      %v3280 = vunpack.c.l.b16 %v3230
      %v3281 = vunpack.c.h.b16 %v3230
      %v3282 = vunpack.c.l.b16 %v3231
      %v3283 = vunpack.c.h.b16 %v3231
      %v3284 = vunpack.c.l.b16 %v3232
      %v3285 = vunpack.c.h.b16 %v3232
      %v3286 = vunpack.c.l.b16 %v3233
      %v3287 = vunpack.c.h.b16 %v3233
      %v3288 = vunpack.c.l.b16 %v3234
      %v3289 = vunpack.c.h.b16 %v3234
      %v3290 = vunpack.c.l.b16 %v3235
      %v3291 = vunpack.c.h.b16 %v3235
      %v3292 = vunpack.c.l.b16 %v3236
      %v3293 = vunpack.c.h.b16 %v3236
      %v3294 = vunpack.c.l.b16 %v3237
      %v3295 = vunpack.c.h.b16 %v3237
      %v3296 = vunpack.c.l.b16 %v3238
      %v3297 = vunpack.c.h.b16 %v3238
      %v3298 = vunpack.c.l.b16 %v3239
      %v3299 = vunpack.c.h.b16 %v3239
      %v3300 = vunpack.c.l.b16 %v3240
      %v3301 = vunpack.c.h.b16 %v3240
      %v3302 = vunpack.c.l.b16 %v3241
      %v3303 = vunpack.c.h.b16 %v3241
      %v3304 = vunpack.c.l.b16 %v3242
      %v3305 = vunpack.c.h.b16 %v3242
      %v3306 = vunpack.c.l.b16 %v3243
      %v3307 = vunpack.c.h.b16 %v3243
      %v3308 = vunpack.c.l.b16 %v3244
      %v3309 = vunpack.c.h.b16 %v3244
      %v3310 = vpack.c.b16 %v3276, %v3274
      %v3311 = vpack.c.b16 %v3277, %v3275
      %v3312 = vpack.c.b16 %v3280, %v3278
      %v3313 = vpack.c.b16 %v3281, %v3279
      %v3314 = vpack.c.b16 %v3284, %v3282
      %v3315 = vpack.c.b16 %v3285, %v3283
      %v3316 = vpack.c.b16 %v3288, %v3286
      %v3317 = vpack.c.b16 %v3289, %v3287
      %v3318 = vpack.c.b16 %v3292, %v3290
      %v3319 = vpack.c.b16 %v3293, %v3291
      %v3320 = vpack.c.b16 %v3296, %v3294
      %v3321 = vpack.c.b16 %v3297, %v3295
      %v3322 = vpack.c.b16 %v3300, %v3298
      %v3323 = vpack.c.b16 %v3301, %v3299
      %v3324 = vpack.c.b16 %v3304, %v3302
      %v3325 = vpack.c.b16 %v3305, %v3303
      %v3326 = vpack.c.b16 %v3308, %v3306
      %v3327 = vpack.c.b16 %v3309, %v3307
      %v3346 = vsel %vm2474, %v3254, 0
      %3348 = vmatpush.bf16.msra.mxu0 %v3324
      %3349 = vmatpush.bf16.msra.mxu0 %v3322
      %3350 = vmatpush.bf16.msra.mxu0 %v3320
      %3351 = vmatpush.bf16.msra.mxu0 %v3318
      %3352 = vmatpush.bf16.msra.mxu0 %v3316
      %3353 = vmatpush.bf16.msra.mxu0 %v3314
      %3354 = vmatpush.bf16.msra.mxu0 %v3312
      %3355 = vmatpush.bf16.msra.mxu0 %v3310
      %3356 = vmatmul.bf16.gmra.mxu0 %v3253
      %v3357 = vpop.f32.mrf.mxu0
      %v3358 = vadd.f32 %v3249, %v3357
      %v3359 = vpop.f32.mrf.mxu0
      %3360 = vdwg.mxu0
      %3361 = vmatpush.bf16.msra.mxu0 0
      %3362 = vmatpush.bf16.msra.mxu0 0
      %3363 = vmatpush.bf16.msra.mxu0 0
      %3364 = vmatpush.bf16.msra.mxu0 0
      %3365 = vmatpush.bf16.msra.mxu0 0
      %3366 = vmatpush.bf16.msra.mxu0 0
      %3367 = vmatpush.bf16.msra.mxu0 0
      %3368 = vmatpush.bf16.msra.mxu0 %v3326
      %3369 = vmatmul.bf16.gmra.mxu0 %v3346
      %v3370 = vpop.f32.mrf.mxu0
      %v3371 = vadd.f32 %v3358, %v3370
      %v3372 = vpop.f32.mrf.mxu0
      %3373 = vdwg.mxu0
      %3374 = vmatpush.bf16.msra.mxu0 %v3325
      %3375 = vmatpush.bf16.msra.mxu0 %v3323
      %3376 = vmatpush.bf16.msra.mxu0 %v3321
      %3377 = vmatpush.bf16.msra.mxu0 %v3319
      %3378 = vmatpush.bf16.msra.mxu0 %v3317
      %3379 = vmatpush.bf16.msra.mxu0 %v3315
      %3380 = vmatpush.bf16.msra.mxu0 %v3313
      %3381 = vmatpush.bf16.msra.mxu0 %v3311
      %3382 = vmatmul.bf16.gmra.mxu0 %v3253
      %v3383 = vpop.f32.mrf.mxu0
      %v3384 = vadd.f32 %v3249, %v3383
      %v3385 = vpop.f32.mrf.mxu0
      %3386 = vdwg.mxu0
      %3387 = vmatpush.bf16.msra.mxu0 0
      %3388 = vmatpush.bf16.msra.mxu0 0
      %3389 = vmatpush.bf16.msra.mxu0 0
      %3390 = vmatpush.bf16.msra.mxu0 0
      %3391 = vmatpush.bf16.msra.mxu0 0
      %3392 = vmatpush.bf16.msra.mxu0 0
      %3393 = vmatpush.bf16.msra.mxu0 0
      %3394 = vmatpush.bf16.msra.mxu0 %v3327
      %3395 = vmatmul.bf16.gmra.mxu0 %v3346
      %v3396 = vpop.f32.mrf.mxu0
      %v3397 = vadd.f32 %v3384, %v3396
      %v3398 = vpop.f32.mrf.mxu0
      %3399 = vdwg.mxu0
      %v3400 = vmax.f32 %v3371, 0.0
      %v3401 = vmax.f32 %v3397, 0.0
      %v3402 = vld [vmem:[#allocation2] sm:$0xf]
      %v3403 = vunpack.c.l.bf16 %v3402
      %3405 = vst [vmem:[#allocation1] ss:$2 sm:$0xff] %v3403
      %v3406 = vld.sshfl [vmem:[#allocation1] sm:$0xff pattern:$0x75316420]
      %v3407 = vld.sshfl [vmem:[#allocation1 + $0x8] sm:$0xff pattern:$0x75316420]
      %v3410 = vadd.f32 %v3400, %v3406
      %v3411 = vadd.f32 %v3401, %v3407
      %v3414 = vrot.slane %v3411, 4
      %v3415 = vsel %vm1481, %v3410, %v3414
      %3417 = vst [vmem:[%s548] sm:$0xff] %v3415
      %p3418 = scmp.lt.s32.totalorder %s28, 1
      %s3419 = scalar_select %p3418, %s28, 1
      %s3420 = smul.addr %s3419, 2
      %s3421 = smul.addr %s3420, 4
      %s3422 = scalar_lea.vmem %s17, %s3421
      // Predicated region
      $region89: #{rsu4f_forward.1} parent=87 // pred_check
        %p3423 = pneg %p408
      $region90: #{rsu4f_forward.1} parent=87 // pred_check_branch
        %3425 = sbr.rel (%p3423) target = $region92
      $region91: #{rsu4f_forward.1} parent=87 // pred_region
        _
      $region92: #{rsu4f_forward.1} parent=87 // pred_fallthru
        _
    $region88: #{rsu4f_forward.1} parent=5 // pred_fallthru
      _
    %p3426 = scmp.le.s32.totalorder 2, %s23
    // Predicated region
    $region93: #{rsu4f_forward.1} parent=5 // pred_check
      %p3427 = pneg %p3426
    $region94: #{rsu4f_forward.1} parent=5 // pred_check_branch
      %3429 = sbr.rel (%p3427) target = $region96
    $region95: #{rsu4f_forward.1} parent=5 // pred_region
      %s3430 = ssub.s32 %s23, 2
      // Predicated region
      $region97: #{rsu4f_forward.1} parent=95 // pred_check
        %p3431 = pneg %p414
      $region98: #{rsu4f_forward.1} parent=95 // pred_check_branch
        %3433 = sbr.rel (%p3431) target = $region100
      $region99: #{rsu4f_forward.1} parent=95 // pred_region
        %p3434 = scmp.lt.s32.totalorder %s29, 1
        %s3435 = scalar_select %p3434, %s29, 1
        %s3436 = smul.addr %s3435, 2
        %s3437 = smul.addr %s3436, 4
        %s3438 = scalar_lea.vmem %s17, %s3437
      $region100: #{rsu4f_forward.1} parent=95 // pred_fallthru
        _
    $region96: #{rsu4f_forward.1} parent=5 // pred_fallthru
      _
  $region6: #{rsu4f_forward.1} parent=0 // loop_footer
    %s27 = sadd.s32 1, %s23
  $region7: #{rsu4f_forward.1} parent=0 // loop_footer_branch
    %22 = sbr.rel target = $region3
  $region8: #{rsu4f_forward.1} parent=0 // loop_exit
    _

</llo_original>
